<compile_context>
chip_gen: v5e
topology: v5e:2x2
jax: 0.10.0
libtpu: 0.0.40
codegen_flags: <defaults>
</compile_context>

<pallas_src>
import functools

import numpy as np
import jax
import jax.numpy as jnp
from jax.experimental import pallas as pl
from jax.experimental.pallas import tpu as pltpu


def _round_up(x, m):
    return ((x + m - 1) // m) * m


def _icgmm_kernel(x_ref, u_ref, w_ref, c_ref, lp_ref, tri_ref,
                  post_ref, flog_ref, cll_ref, cll2_ref, cll3_ref,
                  *, n_valid, tile_n, needs_mask):
    """Lane-dense body: nodes on lanes (last dim), states/features on sublanes."""
    xt = x_ref[...]                                        # (K, TN)
    feat = jnp.concatenate([xt * xt, xt], axis=0)          # (2K, TN)

    # Diagonal-Gaussian emission log-likelihood, one fused matmul:
    #   f[k,u] = sum_d (-0.5/var_kd) x_ud^2 + (mu_kd/var_kd) x_ud + const_k
    f = (jnp.dot(w_ref[...], feat,
                 preferred_element_type=jnp.float32,
                 precision=jax.lax.Precision.HIGHEST)
         + c_ref[...])                                     # (C1, TN)
    flog_ref[...] = f

    # unnorm_log_p_zu = log(alpha*beta + njk[0]) + f   (first layer: j == 0)
    logits = f + lp_ref[...]
    m = jnp.max(logits, axis=0, keepdims=True)             # (1, TN)
    e = jnp.exp(logits - m)
    s = jnp.sum(e, axis=0, keepdims=True)                  # (1, TN)
    p = e * pl.reciprocal(s, approx=True)                  # (C1, TN) posterior
    post_ref[...] = p
    logp = (logits - m) - jnp.log(s)                       # (C1, TN) exact log p_zu

    # zu ~ Categorical(p) via inverse-CDF on one uniform per node.
    u = u_ref[...]                                         # (1, TN) in [0, 1)
    cum = jnp.dot(tri_ref[...], p,
                  preferred_element_type=jnp.float32,
                  precision=jax.lax.Precision.HIGHEST)     # (C1, TN) running CDF
    lower = cum - p
    c1 = p.shape[0]
    is_last = jax.lax.broadcasted_iota(jnp.int32, p.shape, 0) == (c1 - 1)
    upper = jnp.where(is_last, jnp.float32(2.0), cum)      # last state absorbs fp slack
    onehot = jnp.logical_and(u >= lower, u < upper).astype(jnp.float32)

    pf = p * f
    if needs_mask:
        node = (pl.program_id(0) * tile_n
                + jax.lax.broadcasted_iota(jnp.int32, (1, tile_n), 1))
        valid = (node < n_valid).astype(jnp.float32)       # (1, TN)
        onehot = onehot * valid
        pf = pf * valid

    # Per-tile partial reductions (per-state, summed in the wrapper).
    cll_ref[0] = jnp.sum(pf, axis=1, keepdims=True)                # (C1, 1)
    cll2_ref[0] = jnp.sum(onehot * f, axis=1, keepdims=True)       # (C1, 1)
    cll3_ref[0] = jnp.sum(onehot * logp, axis=1, keepdims=True)    # (C1, 1)


def icgmm_forward(x, mu, var, alpha, beta, njk, key, *, tile_n=4096):
    """x: (N, K) node features. mu, var: (C1, K). beta: (C1,). njk: (J, C1).

    Returns (result_tuple, posterior (C1,N), f_X_theta_log (C1,N), uniforms (1,N)).
    result_tuple mirrors torch: (None, None, cll/N, cll2/N, cll3/N, N).
    """
    N, K = x.shape
    C1 = mu.shape[0]

    # Emission parameters folded into one (C1, 2K) matrix + (C1, 1) bias.
    inv_var = 1.0 / var
    A = -0.5 * inv_var                                          # coeff of x^2
    B = mu * inv_var                                            # coeff of x
    W = jnp.concatenate([A, B], axis=1).astype(jnp.float32)     # (C1, 2K)
    c = (-0.5 * jnp.sum(mu * mu * inv_var + jnp.log(2.0 * jnp.pi * var),
                        axis=1, keepdims=True)).astype(jnp.float32)   # (C1, 1)
    # First layer: every node has macrostate j = 0.
    logprior = jnp.log(alpha * beta + njk[0])[:, None].astype(jnp.float32)  # (C1,1)
    tri = jnp.tril(jnp.ones((C1, C1), jnp.float32))             # CDF matrix

    # Lane-dense tiling: nodes on the 128-lane axis; large tiles (sweep 2048-8192).
    tile_n = _round_up(int(tile_n), 128)
    tile_n = int(max(128, min(tile_n, _round_up(N, 128))))
    n_pad = _round_up(N, tile_n)
    num_tiles = n_pad // tile_n
    needs_mask = n_pad != N

    xT = jnp.zeros((K, n_pad), jnp.float32).at[:, :N].set(
        x.astype(jnp.float32).T)
    u = jax.random.uniform(key, (1, n_pad), dtype=jnp.float32)  # per-node uniforms

    kernel = functools.partial(_icgmm_kernel, n_valid=N, tile_n=tile_n,
                               needs_mask=needs_mask)

    grid_spec = pl.GridSpec(
        grid=(num_tiles,),
        in_specs=[
            pl.BlockSpec((K, tile_n), lambda i: (0, i)),          # x^T
            pl.BlockSpec((1, tile_n), lambda i: (0, i)),          # uniforms
            pl.BlockSpec((C1, 2 * K), lambda i: (0, 0)),          # W
            pl.BlockSpec((C1, 1), lambda i: (0, 0)),              # const
            pl.BlockSpec((C1, 1), lambda i: (0, 0)),              # log prior
            pl.BlockSpec((C1, C1), lambda i: (0, 0)),             # tri (CDF)
        ],
        out_specs=[
            pl.BlockSpec((C1, tile_n), lambda i: (0, i)),         # posterior
            pl.BlockSpec((C1, tile_n), lambda i: (0, i)),         # f_X_theta_log
            pl.BlockSpec((1, C1, 1), lambda i: (i, 0, 0)),        # cll partials
            pl.BlockSpec((1, C1, 1), lambda i: (i, 0, 0)),        # cll2 partials
            pl.BlockSpec((1, C1, 1), lambda i: (i, 0, 0)),        # cll3 partials
        ],
    )

    posterior, flog, cll_p, cll2_p, cll3_p = pl.pallas_call(
        kernel,
        out_shape=(
            jax.ShapeDtypeStruct((C1, n_pad), jnp.float32),
            jax.ShapeDtypeStruct((C1, n_pad), jnp.float32),
            jax.ShapeDtypeStruct((num_tiles, C1, 1), jnp.float32),
            jax.ShapeDtypeStruct((num_tiles, C1, 1), jnp.float32),
            jax.ShapeDtypeStruct((num_tiles, C1, 1), jnp.float32),
        ),
        grid_spec=grid_spec,
        compiler_params=pltpu.CompilerParams(
            dimension_semantics=("parallel",),       # independent tiles (2 TCs on v7x)
            vmem_limit_bytes=32 * 1024 * 1024,
        ),
    )(xT, u, W, c, logprior, tri)

    num_nodes = N
    cll = jnp.sum(cll_p)
    cll2 = jnp.sum(cll2_p)
    cll3 = jnp.sum(cll3_p)
    # Mirrors torch forward return:
    # (None, embeddings=None, cll/N, cll2/N, cll3/N, num_nodes)
    result = (None, None, cll / num_nodes, cll2 / num_nodes, cll3 / num_nodes,
              num_nodes)
    return result, posterior[:, :N], flog[:, :N], u[:, :N]


def _ref_posterior(x, mu, var, alpha, beta, njk):
    """Plain-JAX reference for the deterministic parts (f, posterior, cll)."""
    inv_var = 1.0 / var
    f = (-0.5 * jnp.sum((x[:, None, :] - mu[None]) ** 2 * inv_var[None], axis=-1)
         - 0.5 * jnp.sum(jnp.log(2.0 * jnp.pi * var), axis=-1)[None])
    logits = f + jnp.log(alpha * beta + njk[0])[None]
    logz = jax.scipy.special.logsumexp(logits, axis=-1, keepdims=True)
    p = jnp.exp(logits - logz)
    return f, p, jnp.sum(p * f)


if __name__ == "__main__":
    # Small deterministic setup consistent with the module:
    #   dim_node_features K = 16, Ccurr = 2 -> C1 = 3 states, J = 4, N = 1000 nodes.
    N, K, C1, J = 1000, 16, 3, 4
    key = jax.random.PRNGKey(0)
    kx, kmu, kvar, ku = jax.random.split(key, 4)

    x = jax.random.normal(kx, (N, K), dtype=jnp.float32)              # data.x
    mu = 0.5 * jax.random.normal(kmu, (C1, K), dtype=jnp.float32)     # theta means
    var = 0.5 + jax.random.uniform(kvar, (C1, K), dtype=jnp.float32)  # theta vars

    alpha = jnp.float32(1.0)            # config['alpha']
    # Deterministic stick-breaking (Beta(1, gamma) draws fixed to 0.6, 0.7):
    beta = jnp.array([0.6, 0.4 * 0.7, 0.4 * 0.3], dtype=jnp.float32)  # sums to 1
    njk = jnp.zeros((J, C1), dtype=jnp.float32)                       # accumulators

    f_ref, p_ref, cll_expected = _ref_posterior(x, mu, var, alpha, beta, njk)
    f_ref_np = np.asarray(f_ref)
    p_ref_np = np.asarray(p_ref)

    # Run both the single-tile default path and a multi-tile + padded path.
    for tn in (4096, 256):
        result, posterior, flog, u = icgmm_forward(
            x, mu, var, alpha, beta, njk, ku, tile_n=tn)
        jax.block_until_ready(result[2])
        jax.block_until_ready(posterior)

        post_np = np.asarray(posterior)        # (C1, N)
        flog_np = np.asarray(flog)             # (C1, N)
        u_np = np.asarray(u)[0]                # (N,)

        # Deterministic parts vs plain-JAX reference.  Loose-ish tolerances
        # because the softmax uses the approximate (EUP) reciprocal.
        np.testing.assert_allclose(flog_np, f_ref_np.T, rtol=1e-3, atol=1e-3)
        np.testing.assert_allclose(post_np, p_ref_np.T, rtol=1e-2, atol=1e-2)
        np.testing.assert_allclose(post_np.sum(axis=0), np.ones(N), atol=2e-2)
        np.testing.assert_allclose(float(result[2]), float(cll_expected) / N,
                                   rtol=1e-2, atol=1e-2)

        # Reproduce the categorical draws on the host from the same uniforms.
        cum = np.cumsum(post_np, axis=0)
        zu = (u_np[None, :] >= cum[:-1]).sum(axis=0)
        cll2_host = flog_np[zu, np.arange(N)].mean()
        cll3_host = np.log(np.maximum(post_np[zu, np.arange(N)], 1e-30)).mean()
        np.testing.assert_allclose(float(result[3]), float(cll2_host),
                                   rtol=1e-2, atol=0.1)
        np.testing.assert_allclose(float(result[4]), float(cll3_host),
                                   rtol=1e-2, atol=0.1)

    print("KERNEL_OK")
</pallas_src>

<mosaic_0001>
module attributes {stable_mosaic.version = 11 : i64} {
  func.func @_icgmm_kernel(%arg0: i32, %arg1: memref<16x1024xf32, #tpu.memory_space<vmem>>, %arg2: memref<1x1024xf32, #tpu.memory_space<vmem>>, %arg3: memref<3x32xf32, #tpu.memory_space<vmem>>, %arg4: memref<3x1xf32, #tpu.memory_space<vmem>>, %arg5: memref<3x1xf32, #tpu.memory_space<vmem>>, %arg6: memref<3x3xf32, #tpu.memory_space<vmem>>, %arg7: memref<3x1024xf32, #tpu.memory_space<vmem>>, %arg8: memref<3x1024xf32, #tpu.memory_space<vmem>>, %arg9: memref<1x3x1xf32, #tpu.memory_space<vmem>>, %arg10: memref<1x3x1xf32, #tpu.memory_space<vmem>>, %arg11: memref<1x3x1xf32, #tpu.memory_space<vmem>>) attributes {dimension_semantics = [#tpu.dimension_semantics<parallel>], iteration_bounds = array<i64: 1>, scalar_prefetch = 0 : i64, scratch_operands = 0 : i64, tpu.core_type = #tpu.core_type<tc>, window_params = [{transform_indices = @transform_0, window_bounds = array<i64: 16, 1024>}, {transform_indices = @transform_1, window_bounds = array<i64: 1, 1024>}, {pipeline_mode = #tpu.pipeline_mode<synchronous>, transform_indices = @transform_2, window_bounds = array<i64: 3, 32>}, {pipeline_mode = #tpu.pipeline_mode<synchronous>, transform_indices = @transform_3, window_bounds = array<i64: 3, 1>}, {pipeline_mode = #tpu.pipeline_mode<synchronous>, transform_indices = @transform_4, window_bounds = array<i64: 3, 1>}, {pipeline_mode = #tpu.pipeline_mode<synchronous>, transform_indices = @transform_5, window_bounds = array<i64: 3, 3>}, {transform_indices = @transform_6, window_bounds = array<i64: 3, 1024>}, {transform_indices = @transform_7, window_bounds = array<i64: 3, 1024>}, {transform_indices = @transform_8, window_bounds = array<i64: 1, 3, 1>}, {transform_indices = @transform_9, window_bounds = array<i64: 1, 3, 1>}, {transform_indices = @transform_10, window_bounds = array<i64: 1, 3, 1>}]} {
    %c0 = arith.constant 0 : index
    %c0_0 = arith.constant 0 : index
    %0 = vector.load %arg1[%c0, %c0_0] : memref<16x1024xf32, #tpu.memory_space<vmem>>, vector<16x1024xf32>
    %1 = arith.mulf %0, %0 : vector<16x1024xf32>
    %2 = tpu.concatenate %1, %0 in 0 : vector<16x1024xf32>, vector<16x1024xf32> -> vector<32x1024xf32>
    %c0_1 = arith.constant 0 : index
    %c0_2 = arith.constant 0 : index
    %3 = vector.load %arg3[%c0_1, %c0_2] : memref<3x32xf32, #tpu.memory_space<vmem>>, vector<3x32xf32>
    %cst = arith.constant dense<0.000000e+00> : vector<3x1024xf32>
    %4 = tpu.matmul %3, %2, %cst {dimension_numbers = #tpu.dot_dimension_numbers<[1], [0], [0], [1], [0, 0, 1, 1], [], []>, precision = #tpu.contract_precision<fp32>} : vector<3x32xf32>, vector<32x1024xf32>, vector<3x1024xf32> -> vector<3x1024xf32>
    %c0_3 = arith.constant 0 : index
    %c0_4 = arith.constant 0 : index
    %5 = vector.load %arg4[%c0_3, %c0_4] : memref<3x1xf32, #tpu.memory_space<vmem>>, vector<3x1xf32>
    %6 = vector.broadcast %5 : vector<3x1xf32> to vector<3x1024xf32>
    %7 = arith.addf %4, %6 : vector<3x1024xf32>
    %c0_5 = arith.constant 0 : index
    %c0_6 = arith.constant 0 : index
    %8 = vector.load %arg8[%c0_5, %c0_6] : memref<3x1024xf32, #tpu.memory_space<vmem>>, vector<3x1024xf32>
    tpu.vector_store %arg8[%c0_5, %c0_6], %7 {strides = array<i32>} : memref<3x1024xf32, #tpu.memory_space<vmem>>, vector<3x1024xf32>,
    %c0_7 = arith.constant 0 : index
    %c0_8 = arith.constant 0 : index
    %9 = vector.load %arg5[%c0_7, %c0_8] : memref<3x1xf32, #tpu.memory_space<vmem>>, vector<3x1xf32>
    %10 = vector.broadcast %9 : vector<3x1xf32> to vector<3x1024xf32>
    %11 = arith.addf %7, %10 : vector<3x1024xf32>
    %cst_9 = arith.constant dense<0xFF800000> : vector<1024xf32>
    %12 = vector.multi_reduction <maximumf>, %11, %cst_9 [0] : vector<3x1024xf32> to vector<1024xf32>
    %13 = vector.shape_cast %12 : vector<1024xf32> to vector<1x1024xf32>
    %14 = vector.broadcast %13 : vector<1x1024xf32> to vector<3x1024xf32>
    %15 = arith.subf %11, %14 : vector<3x1024xf32>
    %16 = math.exp %15 : vector<3x1024xf32>
    %cst_10 = arith.constant dense<0.000000e+00> : vector<1024xf32>
    %17 = vector.multi_reduction <add>, %16, %cst_10 [0] : vector<3x1024xf32> to vector<1024xf32>
    %18 = vector.shape_cast %17 : vector<1024xf32> to vector<1x1024xf32>
    %19 = tpu.reciprocal %18 {approx = true} : vector<1x1024xf32> -> vector<1x1024xf32>
    %20 = vector.broadcast %19 : vector<1x1024xf32> to vector<3x1024xf32>
    %21 = arith.mulf %16, %20 : vector<3x1024xf32>
    %c0_11 = arith.constant 0 : index
    %c0_12 = arith.constant 0 : index
    %22 = vector.load %arg7[%c0_11, %c0_12] : memref<3x1024xf32, #tpu.memory_space<vmem>>, vector<3x1024xf32>
    tpu.vector_store %arg7[%c0_11, %c0_12], %21 {strides = array<i32>} : memref<3x1024xf32, #tpu.memory_space<vmem>>, vector<3x1024xf32>,
    %23 = vector.broadcast %13 : vector<1x1024xf32> to vector<3x1024xf32>
    %24 = arith.subf %11, %23 : vector<3x1024xf32>
    %25 = math.log %18 : vector<1x1024xf32>
    %26 = vector.broadcast %25 : vector<1x1024xf32> to vector<3x1024xf32>
    %27 = arith.subf %24, %26 : vector<3x1024xf32>
    %c0_13 = arith.constant 0 : index
    %c0_14 = arith.constant 0 : index
    %28 = vector.load %arg2[%c0_13, %c0_14] : memref<1x1024xf32, #tpu.memory_space<vmem>>, vector<1x1024xf32>
    %c0_15 = arith.constant 0 : index
    %c0_16 = arith.constant 0 : index
    %29 = vector.load %arg6[%c0_15, %c0_16] : memref<3x3xf32, #tpu.memory_space<vmem>>, vector<3x3xf32>
    %cst_17 = arith.constant dense<0.000000e+00> : vector<3x1024xf32>
    %30 = tpu.matmul %29, %21, %cst_17 {dimension_numbers = #tpu.dot_dimension_numbers<[1], [0], [0], [1], [0, 0, 1, 1], [], []>, precision = #tpu.contract_precision<fp32>} : vector<3x3xf32>, vector<3x1024xf32>, vector<3x1024xf32> -> vector<3x1024xf32>
    %31 = arith.subf %30, %21 : vector<3x1024xf32>
    %32 = tpu.iota {dimensions = array<i32: 0>} : vector<3x1024xi32>
    %c2_i32 = arith.constant 2 : i32
    %33 = vector.broadcast %c2_i32 : i32 to vector<3x1024xi32>
    %34 = arith.cmpi eq, %32, %33 : vector<3x1024xi32>
    %cst_18 = arith.constant 2.000000e+00 : f32
    %35 = vector.broadcast %cst_18 : f32 to vector<3x1024xf32>
    %36 = arith.select %34, %35, %30 : vector<3x1024xi1>, vector<3x1024xf32>
    %37 = vector.broadcast %28 : vector<1x1024xf32> to vector<3x1024xf32>
    %38 = arith.cmpf oge, %37, %31 : vector<3x1024xf32>
    %39 = vector.broadcast %28 : vector<1x1024xf32> to vector<3x1024xf32>
    %40 = arith.cmpf olt, %39, %36 : vector<3x1024xf32>
    %41 = arith.andi %38, %40 : vector<3x1024xi1>
    %42 = arith.extui %41 : vector<3x1024xi1> to vector<3x1024xi32>
    %43 = arith.sitofp %42 : vector<3x1024xi32> to vector<3x1024xf32>
    %44 = arith.mulf %21, %7 : vector<3x1024xf32>
    %c1024_i32 = arith.constant 1024 : i32
    %45 = arith.muli %arg0, %c1024_i32 : i32
    %46 = tpu.iota {dimensions = array<i32: 1>} : vector<1x1024xi32>
    %47 = vector.broadcast %45 : i32 to vector<1x1024xi32>
    %48 = arith.addi %47, %46 : vector<1x1024xi32>
    %c1000_i32 = arith.constant 1000 : i32
    %49 = vector.broadcast %c1000_i32 : i32 to vector<1x1024xi32>
    %50 = arith.cmpi slt, %48, %49 : vector<1x1024xi32>
    %51 = arith.extui %50 : vector<1x1024xi1> to vector<1x1024xi32>
    %52 = arith.sitofp %51 : vector<1x1024xi32> to vector<1x1024xf32>
    %53 = vector.broadcast %52 : vector<1x1024xf32> to vector<3x1024xf32>
    %54 = arith.mulf %43, %53 : vector<3x1024xf32>
    %55 = vector.broadcast %52 : vector<1x1024xf32> to vector<3x1024xf32>
    %56 = arith.mulf %44, %55 : vector<3x1024xf32>
    %cst_19 = arith.constant dense<0.000000e+00> : vector<3xf32>
    %57 = vector.multi_reduction <add>, %56, %cst_19 [1] : vector<3x1024xf32> to vector<3xf32>
    %58 = vector.shape_cast %57 : vector<3xf32> to vector<3x1xf32>
    %c0_20 = arith.constant 0 : index
    %c0_21 = arith.constant 0 : index
    %c0_22 = arith.constant 0 : index
    %59 = vector.load %arg9[%c0_20, %c0_21, %c0_22] : memref<1x3x1xf32, #tpu.memory_space<vmem>>, vector<1x3x1xf32>
    %60 = vector.shape_cast %59 : vector<1x3x1xf32> to vector<3x1xf32>
    %61 = vector.shape_cast %58 : vector<3x1xf32> to vector<1x3x1xf32>
    tpu.vector_store %arg9[%c0_20, %c0_21, %c0_22], %61 {strides = array<i32>} : memref<1x3x1xf32, #tpu.memory_space<vmem>>, vector<1x3x1xf32>,
    %62 = arith.mulf %54, %7 : vector<3x1024xf32>
    %cst_23 = arith.constant dense<0.000000e+00> : vector<3xf32>
    %63 = vector.multi_reduction <add>, %62, %cst_23 [1] : vector<3x1024xf32> to vector<3xf32>
    %64 = vector.shape_cast %63 : vector<3xf32> to vector<3x1xf32>
    %c0_24 = arith.constant 0 : index
    %c0_25 = arith.constant 0 : index
    %c0_26 = arith.constant 0 : index
    %65 = vector.load %arg10[%c0_24, %c0_25, %c0_26] : memref<1x3x1xf32, #tpu.memory_space<vmem>>, vector<1x3x1xf32>
    %66 = vector.shape_cast %65 : vector<1x3x1xf32> to vector<3x1xf32>
    %67 = vector.shape_cast %64 : vector<3x1xf32> to vector<1x3x1xf32>
    tpu.vector_store %arg10[%c0_24, %c0_25, %c0_26], %67 {strides = array<i32>} : memref<1x3x1xf32, #tpu.memory_space<vmem>>, vector<1x3x1xf32>,
    %68 = arith.mulf %54, %27 : vector<3x1024xf32>
    %cst_27 = arith.constant dense<0.000000e+00> : vector<3xf32>
    %69 = vector.multi_reduction <add>, %68, %cst_27 [1] : vector<3x1024xf32> to vector<3xf32>
    %70 = vector.shape_cast %69 : vector<3xf32> to vector<3x1xf32>
    %c0_28 = arith.constant 0 : index
    %c0_29 = arith.constant 0 : index
    %c0_30 = arith.constant 0 : index
    %71 = vector.load %arg11[%c0_28, %c0_29, %c0_30] : memref<1x3x1xf32, #tpu.memory_space<vmem>>, vector<1x3x1xf32>
    %72 = vector.shape_cast %71 : vector<1x3x1xf32> to vector<3x1xf32>
    %73 = vector.shape_cast %70 : vector<3x1xf32> to vector<1x3x1xf32>
    tpu.vector_store %arg11[%c0_28, %c0_29, %c0_30], %73 {strides = array<i32>} : memref<1x3x1xf32, #tpu.memory_space<vmem>>, vector<1x3x1xf32>,
    return
  }
  func.func @transform_0(%arg0: i32) -> (i32, i32) {
    %c0_i32 = arith.constant 0 : i32
    %c0_i32_0 = arith.constant 0 : i32
    return %c0_i32, %arg0 : i32, i32
  }
  func.func @transform_1(%arg0: i32) -> (i32, i32) {
    %c0_i32 = arith.constant 0 : i32
    %c0_i32_0 = arith.constant 0 : i32
    return %c0_i32, %arg0 : i32, i32
  }
  func.func @transform_2(%arg0: i32) -> (i32, i32) {
    %c0_i32 = arith.constant 0 : i32
    %c0_i32_0 = arith.constant 0 : i32
    %c0_i32_1 = arith.constant 0 : i32
    return %c0_i32, %c0_i32_0 : i32, i32
  }
  func.func @transform_3(%arg0: i32) -> (i32, i32) {
    %c0_i32 = arith.constant 0 : i32
    %c0_i32_0 = arith.constant 0 : i32
    %c0_i32_1 = arith.constant 0 : i32
    return %c0_i32, %c0_i32_0 : i32, i32
  }
  func.func @transform_4(%arg0: i32) -> (i32, i32) {
    %c0_i32 = arith.constant 0 : i32
    %c0_i32_0 = arith.constant 0 : i32
    %c0_i32_1 = arith.constant 0 : i32
    return %c0_i32, %c0_i32_0 : i32, i32
  }
  func.func @transform_5(%arg0: i32) -> (i32, i32) {
    %c0_i32 = arith.constant 0 : i32
    %c0_i32_0 = arith.constant 0 : i32
    %c0_i32_1 = arith.constant 0 : i32
    return %c0_i32, %c0_i32_0 : i32, i32
  }
  func.func @transform_6(%arg0: i32) -> (i32, i32) {
    %c0_i32 = arith.constant 0 : i32
    %c0_i32_0 = arith.constant 0 : i32
    return %c0_i32, %arg0 : i32, i32
  }
  func.func @transform_7(%arg0: i32) -> (i32, i32) {
    %c0_i32 = arith.constant 0 : i32
    %c0_i32_0 = arith.constant 0 : i32
    return %c0_i32, %arg0 : i32, i32
  }
  func.func @transform_8(%arg0: i32) -> (i32, i32, i32) {
    %c0_i32 = arith.constant 0 : i32
    %c0_i32_0 = arith.constant 0 : i32
    %c0_i32_1 = arith.constant 0 : i32
    return %arg0, %c0_i32, %c0_i32_0 : i32, i32, i32
  }
  func.func @transform_9(%arg0: i32) -> (i32, i32, i32) {
    %c0_i32 = arith.constant 0 : i32
    %c0_i32_0 = arith.constant 0 : i32
    %c0_i32_1 = arith.constant 0 : i32
    return %arg0, %c0_i32, %c0_i32_0 : i32, i32, i32
  }
  func.func @transform_10(%arg0: i32) -> (i32, i32, i32) {
    %c0_i32 = arith.constant 0 : i32
    %c0_i32_0 = arith.constant 0 : i32
    %c0_i32_1 = arith.constant 0 : i32
    return %arg0, %c0_i32, %c0_i32_0 : i32, i32, i32
  }
}

</mosaic_0001>

<llo_original>
// kernel: tpu_custom_call.1
$region0: #{tpu_custom_call.1}
  #allocation0 [shape = 'u32[]', space=smem, size = 0x4, offset = 0x4, fixed_abs, tag = 'smem constant byte address 0x4 - core index']
  #allocation1 [shape = 'u32[72,128]{1,0:T(1,128)}', space=vmem, size = 0x9000, scoped, tag = 'internal scratch']
  %s0 = inlined_call_operand.hbm [shape: f32[16,1024], index: 0, kind: input, shape index: {}]
  %s1 = inlined_call_operand.vmem [shape: f32[1,1024], index: 1, kind: input, shape index: {}]
  %s2 = inlined_call_operand.hbm [shape: f32[3,32], index: 2, kind: input, shape index: {}]
  %s3 = inlined_call_operand.vmem [shape: f32[3,1], index: 3, kind: input, shape index: {}]
  %s4 = inlined_call_operand.vmem [shape: f32[3,1], index: 4, kind: input, shape index: {}]
  %s5 = inlined_call_operand.hbm [shape: f32[3,3], index: 5, kind: input, shape index: {}]
  %s6 = inlined_call_operand.hbm [shape: f32[3,1024], index: 6, kind: output, shape index: {0}]
  %s7 = inlined_call_operand.hbm [shape: f32[3,1024], index: 7, kind: output, shape index: {1}]
  %s8 = inlined_call_operand.vmem [shape: f32[1,3,1], index: 8, kind: output, shape index: {2}]
  %s9 = inlined_call_operand.vmem [shape: f32[1,3,1], index: 9, kind: output, shape index: {3}]
  %s10 = inlined_call_operand.vmem [shape: f32[1,3,1], index: 10, kind: output, shape index: {4}]
  %11 = xla_tuple %s6, %s7, %s8, %s9, %s10
  %s12 = sld [smem:[#allocation0]]
  $region78: #{tpu_custom_call.1} parent=0
    _
  %s14 = ssub.s32 1, %s12
  %s15 = scalar_select 0, %s14, %s12
  $region1: #{tpu_custom_call.1} parent=0
    #allocation2 [shape = 'u8[65536]{0}', space=vmem, size = 0x10000, scoped, tag = 'input window, operand 0, single buffered']
    #allocation3 [shape = 's32[1]{0}', space=sflag, size = 0x4, scoped, tag = 'scoped memory for tpu_custom_call.1']
    #allocation4 [shape = 's32[1]{0}', space=sflag, size = 0x4, scoped, tag = 'scoped memory for tpu_custom_call.1']
    #allocation5 [shape = 'u8[2048]{0}', space=vmem, size = 0x800, scoped, tag = 'input window, operand 2, single buffered']
    #allocation6 [shape = 's32[1]{0}', space=sflag, size = 0x4, scoped, tag = 'scoped memory for tpu_custom_call.1']
    #allocation7 [shape = 'u8[2048]{0}', space=vmem, size = 0x800, scoped, tag = 'input window, operand 5, single buffered']
    #allocation8 [shape = 'u8[16384]{0}', space=vmem, size = 0x4000, scoped, tag = 'output window, operand 0, single buffered']
    #allocation9 [shape = 'u8[16384]{0}', space=vmem, size = 0x4000, scoped, tag = 'output window, operand 1, single buffered']
    #allocation10 [shape = 's32[1]{0}', space=sflag, size = 0x4, scoped, tag = 'scoped memory for tpu_custom_call.1']
    %16 = vsyncpa [#allocation3], 0
    %17 = vsyncpa [#allocation6], 0
    %18 = vsyncpa [#allocation4], 0
    %19 = vsyncpa [#allocation10], 0
    // Predicated region
    $region2: #{tpu_custom_call.1} parent=1 // pred_check
      _
    $region3: #{tpu_custom_call.1} parent=1 // pred_check_branch
      %21 = sbr.rel (0) target = $region5
    $region4: #{tpu_custom_call.1} parent=1 // pred_region
      %23 = vsyncadd [#allocation3], 0
      %s24 = sshll.u32 %s0, 4
      %s25 = int_to_ptr.hbm [resolvable:$true] %s24
      %s26 = sshll.u32 [#allocation2], 4
      %s27 = int_to_ptr.vmem [resolvable:$true] %s26
      %32 = dma.hbm_to_vmem [thread:$0]  %s25, 2048, %s27, [#allocation3], 1024, 1024, 64
    $region5: #{tpu_custom_call.1} parent=1 // pred_fallthru
      _
    // Predicated region
    $region6: #{tpu_custom_call.1} parent=1 // pred_check
      _
    $region7: #{tpu_custom_call.1} parent=1 // pred_check_branch
      %34 = sbr.rel (0) target = $region9
    $region8: #{tpu_custom_call.1} parent=1 // pred_region
      _
    $region9: #{tpu_custom_call.1} parent=1 // pred_fallthru
      _
    // Predicated region
    $region10: #{tpu_custom_call.1} parent=1 // pred_check
      _
    $region11: #{tpu_custom_call.1} parent=1 // pred_check_branch
      %36 = sbr.rel (0) target = $region13
    $region12: #{tpu_custom_call.1} parent=1 // pred_region
      %38 = vsyncadd [#allocation6], 0
      %s40 = sshll.u32 %s2, 4
      %s41 = int_to_ptr.hbm [resolvable:$true] %s40
      %s42 = sshll.u32 [#allocation5], 4
      %s43 = int_to_ptr.vmem [resolvable:$true] %s42
      %45 = dma.hbm_to_vmem [thread:$0]  %s41, 64, %s43, [#allocation6]
    $region13: #{tpu_custom_call.1} parent=1 // pred_fallthru
      _
    // Predicated region
    $region14: #{tpu_custom_call.1} parent=1 // pred_check
      _
    $region15: #{tpu_custom_call.1} parent=1 // pred_check_branch
      %47 = sbr.rel (0) target = $region17
    $region16: #{tpu_custom_call.1} parent=1 // pred_region
      _
    $region17: #{tpu_custom_call.1} parent=1 // pred_fallthru
      _
    // Predicated region
    $region18: #{tpu_custom_call.1} parent=1 // pred_check
      _
    $region19: #{tpu_custom_call.1} parent=1 // pred_check_branch
      %49 = sbr.rel (0) target = $region21
    $region20: #{tpu_custom_call.1} parent=1 // pred_region
      _
    $region21: #{tpu_custom_call.1} parent=1 // pred_fallthru
      _
    // Predicated region
    $region22: #{tpu_custom_call.1} parent=1 // pred_check
      _
    $region23: #{tpu_custom_call.1} parent=1 // pred_check_branch
      %51 = sbr.rel (0) target = $region25
    $region24: #{tpu_custom_call.1} parent=1 // pred_region
      %53 = vsyncadd [#allocation6], 0
      %s55 = sshll.u32 %s5, 4
      %s56 = int_to_ptr.hbm [resolvable:$true] %s55
      %s57 = sshll.u32 [#allocation7], 4
      %s58 = int_to_ptr.vmem [resolvable:$true] %s57
      %60 = dma.hbm_to_vmem [thread:$0]  %s56, 64, %s58, [#allocation6]
    $region25: #{tpu_custom_call.1} parent=1 // pred_fallthru
      _
    // Predicated region
    $region26: #{tpu_custom_call.1} parent=1 // pred_check
      _
    $region27: #{tpu_custom_call.1} parent=1 // pred_check_branch
      %62 = sbr.rel (0) target = $region29
    $region28: #{tpu_custom_call.1} parent=1 // pred_region
      %64 = dma.done [#allocation3], 2048
    $region29: #{tpu_custom_call.1} parent=1 // pred_fallthru
      _
    // Predicated region
    $region30: #{tpu_custom_call.1} parent=1 // pred_check
      _
    $region31: #{tpu_custom_call.1} parent=1 // pred_check_branch
      %66 = sbr.rel (0) target = $region33
    $region32: #{tpu_custom_call.1} parent=1 // pred_region
      %68 = dma.done [#allocation6], 64
    $region33: #{tpu_custom_call.1} parent=1 // pred_fallthru
      _
    // Predicated region
    $region34: #{tpu_custom_call.1} parent=1 // pred_check
      _
    $region35: #{tpu_custom_call.1} parent=1 // pred_check_branch
      %70 = sbr.rel (0) target = $region37
    $region36: #{tpu_custom_call.1} parent=1 // pred_region
      %72 = dma.done [#allocation6], 64
    $region37: #{tpu_custom_call.1} parent=1 // pred_fallthru
      _
    %v73 = vld [vmem:[#allocation2] sm:$0xff]
    %v74 = vld [vmem:[#allocation2 + $0x8] sm:$0xff]
    %v75 = vld [vmem:[#allocation2 + $0x10] sm:$0xff]
    %v76 = vld [vmem:[#allocation2 + $0x18] sm:$0xff]
    %v77 = vld [vmem:[#allocation2 + $0x20] sm:$0xff]
    %v78 = vld [vmem:[#allocation2 + $0x28] sm:$0xff]
    %v79 = vld [vmem:[#allocation2 + $0x30] sm:$0xff]
    %v80 = vld [vmem:[#allocation2 + $0x38] sm:$0xff]
    %v81 = vld [vmem:[#allocation2 + $0x40] sm:$0xff]
    %v82 = vld [vmem:[#allocation2 + $0x48] sm:$0xff]
    %v83 = vld [vmem:[#allocation2 + $0x50] sm:$0xff]
    %v84 = vld [vmem:[#allocation2 + $0x58] sm:$0xff]
    %v85 = vld [vmem:[#allocation2 + $0x60] sm:$0xff]
    %v86 = vld [vmem:[#allocation2 + $0x68] sm:$0xff]
    %v87 = vld [vmem:[#allocation2 + $0x70] sm:$0xff]
    %v88 = vld [vmem:[#allocation2 + $0x78] sm:$0xff]
    %v89 = vmul.f32 %v73, %v73
    %v90 = vmul.f32 %v74, %v74
    %v91 = vmul.f32 %v75, %v75
    %v92 = vmul.f32 %v76, %v76
    %v93 = vmul.f32 %v77, %v77
    %v94 = vmul.f32 %v78, %v78
    %v95 = vmul.f32 %v79, %v79
    %v96 = vmul.f32 %v80, %v80
    %v97 = vmul.f32 %v81, %v81
    %v98 = vmul.f32 %v82, %v82
    %v99 = vmul.f32 %v83, %v83
    %v100 = vmul.f32 %v84, %v84
    %v101 = vmul.f32 %v85, %v85
    %v102 = vmul.f32 %v86, %v86
    %v103 = vmul.f32 %v87, %v87
    %v104 = vmul.f32 %v88, %v88
    %v105 = vld [vmem:[#allocation5] sm:$0x7]
    %v106 = vld [vmem:[%s3] sm:$0x7]
    %108 = vset.pattern.permute.xlu0 0
    %109 = vperm.xlu0 %108, %v106
    %v110 = vpop.permute.xlu0 %109
    %vm112 = vcmask 261120
    %v114 = vsel %vm112, %v105, 0
    %116 = vmatpush.msra.mxu0 0.0
    %117 = vmatpush.msra.mxu0 0.0
    %118 = vmatpush.msra.mxu0 0.0
    %119 = vmatpush.msra.mxu0 0.0
    %120 = vmatpush.msra.mxu0 0.0
    %121 = vmatpush.msra.mxu0 0.0
    %122 = vmatpush.msra.mxu0 0.0
    %123 = vmatpush.msra.mxu0 0.0
    %124 = vmatpush.msra.mxu0 0.0
    %125 = vmatpush.msra.mxu0 0.0
    %126 = vmatpush.msra.mxu0 0.0
    %127 = vmatpush.msra.mxu0 0.0
    %v128 = vand.u32 %v81, 4294901760
    %129 = vmatpush.msra.mxu0 %v128
    %v130 = vand.u32 %v73, 4294901760
    %131 = vmatpush.msra.mxu0 %v130
    %v132 = vand.u32 %v97, 4294901760
    %133 = vmatpush.msra.mxu0 %v132
    %v134 = vand.u32 %v89, 4294901760
    %135 = vmatpush.msra.mxu0 %v134
    %v136 = vand.u32 %v114, 4294901760
    %v137 = vsub.f32 %v114, %v136
    %v138 = vand.u32 %v137, 4294901760
    %v139 = vsub.f32 %v137, %v138
    %v140 = vand.u32 %v139, 4294901760
    %141 = vmatmul.f32.gmra.mxu0 %v140
    %v142 = vpop.f32.mrf.mxu0
    %v143 = vadd.f32 %v110, %v142
    %144 = vdwg.mxu0
    %145 = vmatpush.msra.mxu0 0.0
    %146 = vmatpush.msra.mxu0 0.0
    %147 = vmatpush.msra.mxu0 0.0
    %148 = vmatpush.msra.mxu0 0.0
    %149 = vmatpush.msra.mxu0 0.0
    %150 = vmatpush.msra.mxu0 0.0
    %151 = vmatpush.msra.mxu0 0.0
    %152 = vmatpush.msra.mxu0 0.0
    %153 = vmatpush.msra.mxu0 0.0
    %154 = vmatpush.msra.mxu0 0.0
    %155 = vmatpush.msra.mxu0 0.0
    %156 = vmatpush.msra.mxu0 0.0
    %v157 = vand.u32 %v81, 4294901760
    %v158 = vsub.f32 %v81, %v157
    %v159 = vand.u32 %v158, 4294901760
    %v160 = vsub.f32 %v158, %v159
    %v161 = vand.u32 %v160, 4294901760
    %162 = vmatpush.msra.mxu0 %v161
    %v163 = vand.u32 %v73, 4294901760
    %v164 = vsub.f32 %v73, %v163
    %v165 = vand.u32 %v164, 4294901760
    %v166 = vsub.f32 %v164, %v165
    %v167 = vand.u32 %v166, 4294901760
    %168 = vmatpush.msra.mxu0 %v167
    %v169 = vand.u32 %v97, 4294901760
    %v170 = vsub.f32 %v97, %v169
    %v171 = vand.u32 %v170, 4294901760
    %v172 = vsub.f32 %v170, %v171
    %v173 = vand.u32 %v172, 4294901760
    %174 = vmatpush.msra.mxu0 %v173
    %v175 = vand.u32 %v89, 4294901760
    %v176 = vsub.f32 %v89, %v175
    %v177 = vand.u32 %v176, 4294901760
    %v178 = vsub.f32 %v176, %v177
    %v179 = vand.u32 %v178, 4294901760
    %180 = vmatpush.msra.mxu0 %v179
    %v181 = vand.u32 %v114, 4294901760
    %182 = vmatmul.f32.gmra.mxu0 %v181
    %v183 = vpop.f32.mrf.mxu0
    %v184 = vadd.f32 %v143, %v183
    %185 = vdwg.mxu0
    %186 = vmatpush.msra.mxu0 0.0
    %187 = vmatpush.msra.mxu0 0.0
    %188 = vmatpush.msra.mxu0 0.0
    %189 = vmatpush.msra.mxu0 0.0
    %190 = vmatpush.msra.mxu0 0.0
    %191 = vmatpush.msra.mxu0 0.0
    %192 = vmatpush.msra.mxu0 0.0
    %193 = vmatpush.msra.mxu0 0.0
    %194 = vmatpush.msra.mxu0 0.0
    %195 = vmatpush.msra.mxu0 0.0
    %196 = vmatpush.msra.mxu0 0.0
    %197 = vmatpush.msra.mxu0 0.0
    %v198 = vand.u32 %v81, 4294901760
    %v199 = vsub.f32 %v81, %v198
    %200 = vmatpush.msra.mxu0 %v199
    %v201 = vand.u32 %v73, 4294901760
    %v202 = vsub.f32 %v73, %v201
    %203 = vmatpush.msra.mxu0 %v202
    %v204 = vand.u32 %v97, 4294901760
    %v205 = vsub.f32 %v97, %v204
    %206 = vmatpush.msra.mxu0 %v205
    %v207 = vand.u32 %v89, 4294901760
    %v208 = vsub.f32 %v89, %v207
    %209 = vmatpush.msra.mxu0 %v208
    %v210 = vand.u32 %v114, 4294901760
    %v211 = vsub.f32 %v114, %v210
    %212 = vmatmul.f32.gmra.mxu0 %v211
    %v213 = vpop.f32.mrf.mxu0
    %v214 = vadd.f32 %v184, %v213
    %215 = vdwg.mxu0
    %216 = vmatpush.msra.mxu0 0.0
    %217 = vmatpush.msra.mxu0 0.0
    %218 = vmatpush.msra.mxu0 0.0
    %219 = vmatpush.msra.mxu0 0.0
    %220 = vmatpush.msra.mxu0 0.0
    %221 = vmatpush.msra.mxu0 0.0
    %222 = vmatpush.msra.mxu0 0.0
    %223 = vmatpush.msra.mxu0 0.0
    %224 = vmatpush.msra.mxu0 0.0
    %225 = vmatpush.msra.mxu0 0.0
    %226 = vmatpush.msra.mxu0 0.0
    %227 = vmatpush.msra.mxu0 0.0
    %v228 = vand.u32 %v81, 4294901760
    %229 = vmatpush.msra.mxu0 %v228
    %v230 = vand.u32 %v73, 4294901760
    %231 = vmatpush.msra.mxu0 %v230
    %v232 = vand.u32 %v97, 4294901760
    %233 = vmatpush.msra.mxu0 %v232
    %v234 = vand.u32 %v89, 4294901760
    %235 = vmatpush.msra.mxu0 %v234
    %v236 = vand.u32 %v114, 4294901760
    %v237 = vsub.f32 %v114, %v236
    %v238 = vand.u32 %v237, 4294901760
    %239 = vmatmul.f32.gmra.mxu0 %v238
    %v240 = vpop.f32.mrf.mxu0
    %v241 = vadd.f32 %v214, %v240
    %242 = vdwg.mxu0
    %243 = vmatpush.msra.mxu0 0.0
    %244 = vmatpush.msra.mxu0 0.0
    %245 = vmatpush.msra.mxu0 0.0
    %246 = vmatpush.msra.mxu0 0.0
    %247 = vmatpush.msra.mxu0 0.0
    %248 = vmatpush.msra.mxu0 0.0
    %249 = vmatpush.msra.mxu0 0.0
    %250 = vmatpush.msra.mxu0 0.0
    %251 = vmatpush.msra.mxu0 0.0
    %252 = vmatpush.msra.mxu0 0.0
    %253 = vmatpush.msra.mxu0 0.0
    %254 = vmatpush.msra.mxu0 0.0
    %v255 = vand.u32 %v81, 4294901760
    %v256 = vsub.f32 %v81, %v255
    %v257 = vand.u32 %v256, 4294901760
    %258 = vmatpush.msra.mxu0 %v257
    %v259 = vand.u32 %v73, 4294901760
    %v260 = vsub.f32 %v73, %v259
    %v261 = vand.u32 %v260, 4294901760
    %262 = vmatpush.msra.mxu0 %v261
    %v263 = vand.u32 %v97, 4294901760
    %v264 = vsub.f32 %v97, %v263
    %v265 = vand.u32 %v264, 4294901760
    %266 = vmatpush.msra.mxu0 %v265
    %v267 = vand.u32 %v89, 4294901760
    %v268 = vsub.f32 %v89, %v267
    %v269 = vand.u32 %v268, 4294901760
    %270 = vmatpush.msra.mxu0 %v269
    %v271 = vand.u32 %v114, 4294901760
    %272 = vmatmul.f32.gmra.mxu0 %v271
    %v273 = vpop.f32.mrf.mxu0
    %v274 = vadd.f32 %v241, %v273
    %275 = vdwg.mxu0
    %276 = vmatpush.msra.mxu0 0.0
    %277 = vmatpush.msra.mxu0 0.0
    %278 = vmatpush.msra.mxu0 0.0
    %279 = vmatpush.msra.mxu0 0.0
    %280 = vmatpush.msra.mxu0 0.0
    %281 = vmatpush.msra.mxu0 0.0
    %282 = vmatpush.msra.mxu0 0.0
    %283 = vmatpush.msra.mxu0 0.0
    %284 = vmatpush.msra.mxu0 0.0
    %285 = vmatpush.msra.mxu0 0.0
    %286 = vmatpush.msra.mxu0 0.0
    %287 = vmatpush.msra.mxu0 0.0
    %v288 = vand.u32 %v81, 4294901760
    %289 = vmatpush.msra.mxu0 %v288
    %v290 = vand.u32 %v73, 4294901760
    %291 = vmatpush.msra.mxu0 %v290
    %v292 = vand.u32 %v97, 4294901760
    %293 = vmatpush.msra.mxu0 %v292
    %v294 = vand.u32 %v89, 4294901760
    %295 = vmatpush.msra.mxu0 %v294
    %v296 = vand.u32 %v114, 4294901760
    %297 = vmatmul.f32.gmra.mxu0 %v296
    %v298 = vpop.f32.mrf.mxu0
    %v299 = vadd.f32 %v274, %v298
    %300 = vdwg.mxu0
    %301 = vmatpush.msra.mxu0 0.0
    %302 = vmatpush.msra.mxu0 0.0
    %303 = vmatpush.msra.mxu0 0.0
    %304 = vmatpush.msra.mxu0 0.0
    %305 = vmatpush.msra.mxu0 0.0
    %306 = vmatpush.msra.mxu0 0.0
    %307 = vmatpush.msra.mxu0 0.0
    %308 = vmatpush.msra.mxu0 0.0
    %309 = vmatpush.msra.mxu0 0.0
    %310 = vmatpush.msra.mxu0 0.0
    %311 = vmatpush.msra.mxu0 0.0
    %312 = vmatpush.msra.mxu0 0.0
    %v313 = vand.u32 %v82, 4294901760
    %314 = vmatpush.msra.mxu0 %v313
    %v315 = vand.u32 %v74, 4294901760
    %316 = vmatpush.msra.mxu0 %v315
    %v317 = vand.u32 %v98, 4294901760
    %318 = vmatpush.msra.mxu0 %v317
    %v319 = vand.u32 %v90, 4294901760
    %320 = vmatpush.msra.mxu0 %v319
    %v321 = vand.u32 %v114, 4294901760
    %v322 = vsub.f32 %v114, %v321
    %v323 = vand.u32 %v322, 4294901760
    %v324 = vsub.f32 %v322, %v323
    %v325 = vand.u32 %v324, 4294901760
    %326 = vmatmul.f32.gmra.mxu0 %v325
    %v327 = vpop.f32.mrf.mxu0
    %v328 = vadd.f32 %v110, %v327
    %329 = vdwg.mxu0
    %330 = vmatpush.msra.mxu0 0.0
    %331 = vmatpush.msra.mxu0 0.0
    %332 = vmatpush.msra.mxu0 0.0
    %333 = vmatpush.msra.mxu0 0.0
    %334 = vmatpush.msra.mxu0 0.0
    %335 = vmatpush.msra.mxu0 0.0
    %336 = vmatpush.msra.mxu0 0.0
    %337 = vmatpush.msra.mxu0 0.0
    %338 = vmatpush.msra.mxu0 0.0
    %339 = vmatpush.msra.mxu0 0.0
    %340 = vmatpush.msra.mxu0 0.0
    %341 = vmatpush.msra.mxu0 0.0
    %v342 = vand.u32 %v82, 4294901760
    %v343 = vsub.f32 %v82, %v342
    %v344 = vand.u32 %v343, 4294901760
    %v345 = vsub.f32 %v343, %v344
    %v346 = vand.u32 %v345, 4294901760
    %347 = vmatpush.msra.mxu0 %v346
    %v348 = vand.u32 %v74, 4294901760
    %v349 = vsub.f32 %v74, %v348
    %v350 = vand.u32 %v349, 4294901760
    %v351 = vsub.f32 %v349, %v350
    %v352 = vand.u32 %v351, 4294901760
    %353 = vmatpush.msra.mxu0 %v352
    %v354 = vand.u32 %v98, 4294901760
    %v355 = vsub.f32 %v98, %v354
    %v356 = vand.u32 %v355, 4294901760
    %v357 = vsub.f32 %v355, %v356
    %v358 = vand.u32 %v357, 4294901760
    %359 = vmatpush.msra.mxu0 %v358
    %v360 = vand.u32 %v90, 4294901760
    %v361 = vsub.f32 %v90, %v360
    %v362 = vand.u32 %v361, 4294901760
    %v363 = vsub.f32 %v361, %v362
    %v364 = vand.u32 %v363, 4294901760
    %365 = vmatpush.msra.mxu0 %v364
    %v366 = vand.u32 %v114, 4294901760
    %367 = vmatmul.f32.gmra.mxu0 %v366
    %v368 = vpop.f32.mrf.mxu0
    %v369 = vadd.f32 %v328, %v368
    %370 = vdwg.mxu0
    %371 = vmatpush.msra.mxu0 0.0
    %372 = vmatpush.msra.mxu0 0.0
    %373 = vmatpush.msra.mxu0 0.0
    %374 = vmatpush.msra.mxu0 0.0
    %375 = vmatpush.msra.mxu0 0.0
    %376 = vmatpush.msra.mxu0 0.0
    %377 = vmatpush.msra.mxu0 0.0
    %378 = vmatpush.msra.mxu0 0.0
    %379 = vmatpush.msra.mxu0 0.0
    %380 = vmatpush.msra.mxu0 0.0
    %381 = vmatpush.msra.mxu0 0.0
    %382 = vmatpush.msra.mxu0 0.0
    %v383 = vand.u32 %v82, 4294901760
    %v384 = vsub.f32 %v82, %v383
    %385 = vmatpush.msra.mxu0 %v384
    %v386 = vand.u32 %v74, 4294901760
    %v387 = vsub.f32 %v74, %v386
    %388 = vmatpush.msra.mxu0 %v387
    %v389 = vand.u32 %v98, 4294901760
    %v390 = vsub.f32 %v98, %v389
    %391 = vmatpush.msra.mxu0 %v390
    %v392 = vand.u32 %v90, 4294901760
    %v393 = vsub.f32 %v90, %v392
    %394 = vmatpush.msra.mxu0 %v393
    %v395 = vand.u32 %v114, 4294901760
    %v396 = vsub.f32 %v114, %v395
    %397 = vmatmul.f32.gmra.mxu0 %v396
    %v398 = vpop.f32.mrf.mxu0
    %v399 = vadd.f32 %v369, %v398
    %400 = vdwg.mxu0
    %401 = vmatpush.msra.mxu0 0.0
    %402 = vmatpush.msra.mxu0 0.0
    %403 = vmatpush.msra.mxu0 0.0
    %404 = vmatpush.msra.mxu0 0.0
    %405 = vmatpush.msra.mxu0 0.0
    %406 = vmatpush.msra.mxu0 0.0
    %407 = vmatpush.msra.mxu0 0.0
    %408 = vmatpush.msra.mxu0 0.0
    %409 = vmatpush.msra.mxu0 0.0
    %410 = vmatpush.msra.mxu0 0.0
    %411 = vmatpush.msra.mxu0 0.0
    %412 = vmatpush.msra.mxu0 0.0
    %v413 = vand.u32 %v82, 4294901760
    %414 = vmatpush.msra.mxu0 %v413
    %v415 = vand.u32 %v74, 4294901760
    %416 = vmatpush.msra.mxu0 %v415
    %v417 = vand.u32 %v98, 4294901760
    %418 = vmatpush.msra.mxu0 %v417
    %v419 = vand.u32 %v90, 4294901760
    %420 = vmatpush.msra.mxu0 %v419
    %v421 = vand.u32 %v114, 4294901760
    %v422 = vsub.f32 %v114, %v421
    %v423 = vand.u32 %v422, 4294901760
    %424 = vmatmul.f32.gmra.mxu0 %v423
    %v425 = vpop.f32.mrf.mxu0
    %v426 = vadd.f32 %v399, %v425
    %427 = vdwg.mxu0
    %428 = vmatpush.msra.mxu0 0.0
    %429 = vmatpush.msra.mxu0 0.0
    %430 = vmatpush.msra.mxu0 0.0
    %431 = vmatpush.msra.mxu0 0.0
    %432 = vmatpush.msra.mxu0 0.0
    %433 = vmatpush.msra.mxu0 0.0
    %434 = vmatpush.msra.mxu0 0.0
    %435 = vmatpush.msra.mxu0 0.0
    %436 = vmatpush.msra.mxu0 0.0
    %437 = vmatpush.msra.mxu0 0.0
    %438 = vmatpush.msra.mxu0 0.0
    %439 = vmatpush.msra.mxu0 0.0
    %v440 = vand.u32 %v82, 4294901760
    %v441 = vsub.f32 %v82, %v440
    %v442 = vand.u32 %v441, 4294901760
    %443 = vmatpush.msra.mxu0 %v442
    %v444 = vand.u32 %v74, 4294901760
    %v445 = vsub.f32 %v74, %v444
    %v446 = vand.u32 %v445, 4294901760
    %447 = vmatpush.msra.mxu0 %v446
    %v448 = vand.u32 %v98, 4294901760
    %v449 = vsub.f32 %v98, %v448
    %v450 = vand.u32 %v449, 4294901760
    %451 = vmatpush.msra.mxu0 %v450
    %v452 = vand.u32 %v90, 4294901760
    %v453 = vsub.f32 %v90, %v452
    %v454 = vand.u32 %v453, 4294901760
    %455 = vmatpush.msra.mxu0 %v454
    %v456 = vand.u32 %v114, 4294901760
    %457 = vmatmul.f32.gmra.mxu0 %v456
    %v458 = vpop.f32.mrf.mxu0
    %v459 = vadd.f32 %v426, %v458
    %460 = vdwg.mxu0
    %461 = vmatpush.msra.mxu0 0.0
    %462 = vmatpush.msra.mxu0 0.0
    %463 = vmatpush.msra.mxu0 0.0
    %464 = vmatpush.msra.mxu0 0.0
    %465 = vmatpush.msra.mxu0 0.0
    %466 = vmatpush.msra.mxu0 0.0
    %467 = vmatpush.msra.mxu0 0.0
    %468 = vmatpush.msra.mxu0 0.0
    %469 = vmatpush.msra.mxu0 0.0
    %470 = vmatpush.msra.mxu0 0.0
    %471 = vmatpush.msra.mxu0 0.0
    %472 = vmatpush.msra.mxu0 0.0
    %v473 = vand.u32 %v82, 4294901760
    %474 = vmatpush.msra.mxu0 %v473
    %v475 = vand.u32 %v74, 4294901760
    %476 = vmatpush.msra.mxu0 %v475
    %v477 = vand.u32 %v98, 4294901760
    %478 = vmatpush.msra.mxu0 %v477
    %v479 = vand.u32 %v90, 4294901760
    %480 = vmatpush.msra.mxu0 %v479
    %v481 = vand.u32 %v114, 4294901760
    %482 = vmatmul.f32.gmra.mxu0 %v481
    %v483 = vpop.f32.mrf.mxu0
    %v484 = vadd.f32 %v459, %v483
    %485 = vdwg.mxu0
    %486 = vmatpush.msra.mxu0 0.0
    %487 = vmatpush.msra.mxu0 0.0
    %488 = vmatpush.msra.mxu0 0.0
    %489 = vmatpush.msra.mxu0 0.0
    %490 = vmatpush.msra.mxu0 0.0
    %491 = vmatpush.msra.mxu0 0.0
    %492 = vmatpush.msra.mxu0 0.0
    %493 = vmatpush.msra.mxu0 0.0
    %494 = vmatpush.msra.mxu0 0.0
    %495 = vmatpush.msra.mxu0 0.0
    %496 = vmatpush.msra.mxu0 0.0
    %497 = vmatpush.msra.mxu0 0.0
    %v498 = vand.u32 %v83, 4294901760
    %499 = vmatpush.msra.mxu0 %v498
    %v500 = vand.u32 %v75, 4294901760
    %501 = vmatpush.msra.mxu0 %v500
    %v502 = vand.u32 %v99, 4294901760
    %503 = vmatpush.msra.mxu0 %v502
    %v504 = vand.u32 %v91, 4294901760
    %505 = vmatpush.msra.mxu0 %v504
    %v506 = vand.u32 %v114, 4294901760
    %v507 = vsub.f32 %v114, %v506
    %v508 = vand.u32 %v507, 4294901760
    %v509 = vsub.f32 %v507, %v508
    %v510 = vand.u32 %v509, 4294901760
    %511 = vmatmul.f32.gmra.mxu0 %v510
    %v512 = vpop.f32.mrf.mxu0
    %v513 = vadd.f32 %v110, %v512
    %514 = vdwg.mxu0
    %515 = vmatpush.msra.mxu0 0.0
    %516 = vmatpush.msra.mxu0 0.0
    %517 = vmatpush.msra.mxu0 0.0
    %518 = vmatpush.msra.mxu0 0.0
    %519 = vmatpush.msra.mxu0 0.0
    %520 = vmatpush.msra.mxu0 0.0
    %521 = vmatpush.msra.mxu0 0.0
    %522 = vmatpush.msra.mxu0 0.0
    %523 = vmatpush.msra.mxu0 0.0
    %524 = vmatpush.msra.mxu0 0.0
    %525 = vmatpush.msra.mxu0 0.0
    %526 = vmatpush.msra.mxu0 0.0
    %v527 = vand.u32 %v83, 4294901760
    %v528 = vsub.f32 %v83, %v527
    %v529 = vand.u32 %v528, 4294901760
    %v530 = vsub.f32 %v528, %v529
    %v531 = vand.u32 %v530, 4294901760
    %532 = vmatpush.msra.mxu0 %v531
    %v533 = vand.u32 %v75, 4294901760
    %v534 = vsub.f32 %v75, %v533
    %v535 = vand.u32 %v534, 4294901760
    %v536 = vsub.f32 %v534, %v535
    %v537 = vand.u32 %v536, 4294901760
    %538 = vmatpush.msra.mxu0 %v537
    %v539 = vand.u32 %v99, 4294901760
    %v540 = vsub.f32 %v99, %v539
    %v541 = vand.u32 %v540, 4294901760
    %v542 = vsub.f32 %v540, %v541
    %v543 = vand.u32 %v542, 4294901760
    %544 = vmatpush.msra.mxu0 %v543
    %v545 = vand.u32 %v91, 4294901760
    %v546 = vsub.f32 %v91, %v545
    %v547 = vand.u32 %v546, 4294901760
    %v548 = vsub.f32 %v546, %v547
    %v549 = vand.u32 %v548, 4294901760
    %550 = vmatpush.msra.mxu0 %v549
    %v551 = vand.u32 %v114, 4294901760
    %552 = vmatmul.f32.gmra.mxu0 %v551
    %v553 = vpop.f32.mrf.mxu0
    %v554 = vadd.f32 %v513, %v553
    %555 = vdwg.mxu0
    %556 = vmatpush.msra.mxu0 0.0
    %557 = vmatpush.msra.mxu0 0.0
    %558 = vmatpush.msra.mxu0 0.0
    %559 = vmatpush.msra.mxu0 0.0
    %560 = vmatpush.msra.mxu0 0.0
    %561 = vmatpush.msra.mxu0 0.0
    %562 = vmatpush.msra.mxu0 0.0
    %563 = vmatpush.msra.mxu0 0.0
    %564 = vmatpush.msra.mxu0 0.0
    %565 = vmatpush.msra.mxu0 0.0
    %566 = vmatpush.msra.mxu0 0.0
    %567 = vmatpush.msra.mxu0 0.0
    %v568 = vand.u32 %v83, 4294901760
    %v569 = vsub.f32 %v83, %v568
    %570 = vmatpush.msra.mxu0 %v569
    %v571 = vand.u32 %v75, 4294901760
    %v572 = vsub.f32 %v75, %v571
    %573 = vmatpush.msra.mxu0 %v572
    %v574 = vand.u32 %v99, 4294901760
    %v575 = vsub.f32 %v99, %v574
    %576 = vmatpush.msra.mxu0 %v575
    %v577 = vand.u32 %v91, 4294901760
    %v578 = vsub.f32 %v91, %v577
    %579 = vmatpush.msra.mxu0 %v578
    %v580 = vand.u32 %v114, 4294901760
    %v581 = vsub.f32 %v114, %v580
    %582 = vmatmul.f32.gmra.mxu0 %v581
    %v583 = vpop.f32.mrf.mxu0
    %v584 = vadd.f32 %v554, %v583
    %585 = vdwg.mxu0
    %586 = vmatpush.msra.mxu0 0.0
    %587 = vmatpush.msra.mxu0 0.0
    %588 = vmatpush.msra.mxu0 0.0
    %589 = vmatpush.msra.mxu0 0.0
    %590 = vmatpush.msra.mxu0 0.0
    %591 = vmatpush.msra.mxu0 0.0
    %592 = vmatpush.msra.mxu0 0.0
    %593 = vmatpush.msra.mxu0 0.0
    %594 = vmatpush.msra.mxu0 0.0
    %595 = vmatpush.msra.mxu0 0.0
    %596 = vmatpush.msra.mxu0 0.0
    %597 = vmatpush.msra.mxu0 0.0
    %v598 = vand.u32 %v83, 4294901760
    %599 = vmatpush.msra.mxu0 %v598
    %v600 = vand.u32 %v75, 4294901760
    %601 = vmatpush.msra.mxu0 %v600
    %v602 = vand.u32 %v99, 4294901760
    %603 = vmatpush.msra.mxu0 %v602
    %v604 = vand.u32 %v91, 4294901760
    %605 = vmatpush.msra.mxu0 %v604
    %v606 = vand.u32 %v114, 4294901760
    %v607 = vsub.f32 %v114, %v606
    %v608 = vand.u32 %v607, 4294901760
    %609 = vmatmul.f32.gmra.mxu0 %v608
    %v610 = vpop.f32.mrf.mxu0
    %v611 = vadd.f32 %v584, %v610
    %612 = vdwg.mxu0
    %613 = vmatpush.msra.mxu0 0.0
    %614 = vmatpush.msra.mxu0 0.0
    %615 = vmatpush.msra.mxu0 0.0
    %616 = vmatpush.msra.mxu0 0.0
    %617 = vmatpush.msra.mxu0 0.0
    %618 = vmatpush.msra.mxu0 0.0
    %619 = vmatpush.msra.mxu0 0.0
    %620 = vmatpush.msra.mxu0 0.0
    %621 = vmatpush.msra.mxu0 0.0
    %622 = vmatpush.msra.mxu0 0.0
    %623 = vmatpush.msra.mxu0 0.0
    %624 = vmatpush.msra.mxu0 0.0
    %v625 = vand.u32 %v83, 4294901760
    %v626 = vsub.f32 %v83, %v625
    %v627 = vand.u32 %v626, 4294901760
    %628 = vmatpush.msra.mxu0 %v627
    %v629 = vand.u32 %v75, 4294901760
    %v630 = vsub.f32 %v75, %v629
    %v631 = vand.u32 %v630, 4294901760
    %632 = vmatpush.msra.mxu0 %v631
    %v633 = vand.u32 %v99, 4294901760
    %v634 = vsub.f32 %v99, %v633
    %v635 = vand.u32 %v634, 4294901760
    %636 = vmatpush.msra.mxu0 %v635
    %v637 = vand.u32 %v91, 4294901760
    %v638 = vsub.f32 %v91, %v637
    %v639 = vand.u32 %v638, 4294901760
    %640 = vmatpush.msra.mxu0 %v639
    %v641 = vand.u32 %v114, 4294901760
    %642 = vmatmul.f32.gmra.mxu0 %v641
    %v643 = vpop.f32.mrf.mxu0
    %v644 = vadd.f32 %v611, %v643
    %645 = vdwg.mxu0
    %646 = vmatpush.msra.mxu0 0.0
    %647 = vmatpush.msra.mxu0 0.0
    %648 = vmatpush.msra.mxu0 0.0
    %649 = vmatpush.msra.mxu0 0.0
    %650 = vmatpush.msra.mxu0 0.0
    %651 = vmatpush.msra.mxu0 0.0
    %652 = vmatpush.msra.mxu0 0.0
    %653 = vmatpush.msra.mxu0 0.0
    %654 = vmatpush.msra.mxu0 0.0
    %655 = vmatpush.msra.mxu0 0.0
    %656 = vmatpush.msra.mxu0 0.0
    %657 = vmatpush.msra.mxu0 0.0
    %v658 = vand.u32 %v83, 4294901760
    %659 = vmatpush.msra.mxu0 %v658
    %v660 = vand.u32 %v75, 4294901760
    %661 = vmatpush.msra.mxu0 %v660
    %v662 = vand.u32 %v99, 4294901760
    %663 = vmatpush.msra.mxu0 %v662
    %v664 = vand.u32 %v91, 4294901760
    %665 = vmatpush.msra.mxu0 %v664
    %v666 = vand.u32 %v114, 4294901760
    %667 = vmatmul.f32.gmra.mxu0 %v666
    %v668 = vpop.f32.mrf.mxu0
    %v669 = vadd.f32 %v644, %v668
    %670 = vdwg.mxu0
    %671 = vmatpush.msra.mxu0 0.0
    %672 = vmatpush.msra.mxu0 0.0
    %673 = vmatpush.msra.mxu0 0.0
    %674 = vmatpush.msra.mxu0 0.0
    %675 = vmatpush.msra.mxu0 0.0
    %676 = vmatpush.msra.mxu0 0.0
    %677 = vmatpush.msra.mxu0 0.0
    %678 = vmatpush.msra.mxu0 0.0
    %679 = vmatpush.msra.mxu0 0.0
    %680 = vmatpush.msra.mxu0 0.0
    %681 = vmatpush.msra.mxu0 0.0
    %682 = vmatpush.msra.mxu0 0.0
    %v683 = vand.u32 %v84, 4294901760
    %684 = vmatpush.msra.mxu0 %v683
    %v685 = vand.u32 %v76, 4294901760
    %686 = vmatpush.msra.mxu0 %v685
    %v687 = vand.u32 %v100, 4294901760
    %688 = vmatpush.msra.mxu0 %v687
    %v689 = vand.u32 %v92, 4294901760
    %690 = vmatpush.msra.mxu0 %v689
    %v691 = vand.u32 %v114, 4294901760
    %v692 = vsub.f32 %v114, %v691
    %v693 = vand.u32 %v692, 4294901760
    %v694 = vsub.f32 %v692, %v693
    %v695 = vand.u32 %v694, 4294901760
    %696 = vmatmul.f32.gmra.mxu0 %v695
    %v697 = vpop.f32.mrf.mxu0
    %v698 = vadd.f32 %v110, %v697
    %699 = vdwg.mxu0
    %700 = vmatpush.msra.mxu0 0.0
    %701 = vmatpush.msra.mxu0 0.0
    %702 = vmatpush.msra.mxu0 0.0
    %703 = vmatpush.msra.mxu0 0.0
    %704 = vmatpush.msra.mxu0 0.0
    %705 = vmatpush.msra.mxu0 0.0
    %706 = vmatpush.msra.mxu0 0.0
    %707 = vmatpush.msra.mxu0 0.0
    %708 = vmatpush.msra.mxu0 0.0
    %709 = vmatpush.msra.mxu0 0.0
    %710 = vmatpush.msra.mxu0 0.0
    %711 = vmatpush.msra.mxu0 0.0
    %v712 = vand.u32 %v84, 4294901760
    %v713 = vsub.f32 %v84, %v712
    %v714 = vand.u32 %v713, 4294901760
    %v715 = vsub.f32 %v713, %v714
    %v716 = vand.u32 %v715, 4294901760
    %717 = vmatpush.msra.mxu0 %v716
    %v718 = vand.u32 %v76, 4294901760
    %v719 = vsub.f32 %v76, %v718
    %v720 = vand.u32 %v719, 4294901760
    %v721 = vsub.f32 %v719, %v720
    %v722 = vand.u32 %v721, 4294901760
    %723 = vmatpush.msra.mxu0 %v722
    %v724 = vand.u32 %v100, 4294901760
    %v725 = vsub.f32 %v100, %v724
    %v726 = vand.u32 %v725, 4294901760
    %v727 = vsub.f32 %v725, %v726
    %v728 = vand.u32 %v727, 4294901760
    %729 = vmatpush.msra.mxu0 %v728
    %v730 = vand.u32 %v92, 4294901760
    %v731 = vsub.f32 %v92, %v730
    %v732 = vand.u32 %v731, 4294901760
    %v733 = vsub.f32 %v731, %v732
    %v734 = vand.u32 %v733, 4294901760
    %735 = vmatpush.msra.mxu0 %v734
    %v736 = vand.u32 %v114, 4294901760
    %737 = vmatmul.f32.gmra.mxu0 %v736
    %v738 = vpop.f32.mrf.mxu0
    %v739 = vadd.f32 %v698, %v738
    %740 = vdwg.mxu0
    %741 = vmatpush.msra.mxu0 0.0
    %742 = vmatpush.msra.mxu0 0.0
    %743 = vmatpush.msra.mxu0 0.0
    %744 = vmatpush.msra.mxu0 0.0
    %745 = vmatpush.msra.mxu0 0.0
    %746 = vmatpush.msra.mxu0 0.0
    %747 = vmatpush.msra.mxu0 0.0
    %748 = vmatpush.msra.mxu0 0.0
    %749 = vmatpush.msra.mxu0 0.0
    %750 = vmatpush.msra.mxu0 0.0
    %751 = vmatpush.msra.mxu0 0.0
    %752 = vmatpush.msra.mxu0 0.0
    %v753 = vand.u32 %v84, 4294901760
    %v754 = vsub.f32 %v84, %v753
    %755 = vmatpush.msra.mxu0 %v754
    %v756 = vand.u32 %v76, 4294901760
    %v757 = vsub.f32 %v76, %v756
    %758 = vmatpush.msra.mxu0 %v757
    %v759 = vand.u32 %v100, 4294901760
    %v760 = vsub.f32 %v100, %v759
    %761 = vmatpush.msra.mxu0 %v760
    %v762 = vand.u32 %v92, 4294901760
    %v763 = vsub.f32 %v92, %v762
    %764 = vmatpush.msra.mxu0 %v763
    %v765 = vand.u32 %v114, 4294901760
    %v766 = vsub.f32 %v114, %v765
    %767 = vmatmul.f32.gmra.mxu0 %v766
    %v768 = vpop.f32.mrf.mxu0
    %v769 = vadd.f32 %v739, %v768
    %770 = vdwg.mxu0
    %771 = vmatpush.msra.mxu0 0.0
    %772 = vmatpush.msra.mxu0 0.0
    %773 = vmatpush.msra.mxu0 0.0
    %774 = vmatpush.msra.mxu0 0.0
    %775 = vmatpush.msra.mxu0 0.0
    %776 = vmatpush.msra.mxu0 0.0
    %777 = vmatpush.msra.mxu0 0.0
    %778 = vmatpush.msra.mxu0 0.0
    %779 = vmatpush.msra.mxu0 0.0
    %780 = vmatpush.msra.mxu0 0.0
    %781 = vmatpush.msra.mxu0 0.0
    %782 = vmatpush.msra.mxu0 0.0
    %v783 = vand.u32 %v84, 4294901760
    %784 = vmatpush.msra.mxu0 %v783
    %v785 = vand.u32 %v76, 4294901760
    %786 = vmatpush.msra.mxu0 %v785
    %v787 = vand.u32 %v100, 4294901760
    %788 = vmatpush.msra.mxu0 %v787
    %v789 = vand.u32 %v92, 4294901760
    %790 = vmatpush.msra.mxu0 %v789
    %v791 = vand.u32 %v114, 4294901760
    %v792 = vsub.f32 %v114, %v791
    %v793 = vand.u32 %v792, 4294901760
    %794 = vmatmul.f32.gmra.mxu0 %v793
    %v795 = vpop.f32.mrf.mxu0
    %v796 = vadd.f32 %v769, %v795
    %797 = vdwg.mxu0
    %798 = vmatpush.msra.mxu0 0.0
    %799 = vmatpush.msra.mxu0 0.0
    %800 = vmatpush.msra.mxu0 0.0
    %801 = vmatpush.msra.mxu0 0.0
    %802 = vmatpush.msra.mxu0 0.0
    %803 = vmatpush.msra.mxu0 0.0
    %804 = vmatpush.msra.mxu0 0.0
    %805 = vmatpush.msra.mxu0 0.0
    %806 = vmatpush.msra.mxu0 0.0
    %807 = vmatpush.msra.mxu0 0.0
    %808 = vmatpush.msra.mxu0 0.0
    %809 = vmatpush.msra.mxu0 0.0
    %v810 = vand.u32 %v84, 4294901760
    %v811 = vsub.f32 %v84, %v810
    %v812 = vand.u32 %v811, 4294901760
    %813 = vmatpush.msra.mxu0 %v812
    %v814 = vand.u32 %v76, 4294901760
    %v815 = vsub.f32 %v76, %v814
    %v816 = vand.u32 %v815, 4294901760
    %817 = vmatpush.msra.mxu0 %v816
    %v818 = vand.u32 %v100, 4294901760
    %v819 = vsub.f32 %v100, %v818
    %v820 = vand.u32 %v819, 4294901760
    %821 = vmatpush.msra.mxu0 %v820
    %v822 = vand.u32 %v92, 4294901760
    %v823 = vsub.f32 %v92, %v822
    %v824 = vand.u32 %v823, 4294901760
    %825 = vmatpush.msra.mxu0 %v824
    %v826 = vand.u32 %v114, 4294901760
    %827 = vmatmul.f32.gmra.mxu0 %v826
    %v828 = vpop.f32.mrf.mxu0
    %v829 = vadd.f32 %v796, %v828
    %830 = vdwg.mxu0
    %831 = vmatpush.msra.mxu0 0.0
    %832 = vmatpush.msra.mxu0 0.0
    %833 = vmatpush.msra.mxu0 0.0
    %834 = vmatpush.msra.mxu0 0.0
    %835 = vmatpush.msra.mxu0 0.0
    %836 = vmatpush.msra.mxu0 0.0
    %837 = vmatpush.msra.mxu0 0.0
    %838 = vmatpush.msra.mxu0 0.0
    %839 = vmatpush.msra.mxu0 0.0
    %840 = vmatpush.msra.mxu0 0.0
    %841 = vmatpush.msra.mxu0 0.0
    %842 = vmatpush.msra.mxu0 0.0
    %v843 = vand.u32 %v84, 4294901760
    %844 = vmatpush.msra.mxu0 %v843
    %v845 = vand.u32 %v76, 4294901760
    %846 = vmatpush.msra.mxu0 %v845
    %v847 = vand.u32 %v100, 4294901760
    %848 = vmatpush.msra.mxu0 %v847
    %v849 = vand.u32 %v92, 4294901760
    %850 = vmatpush.msra.mxu0 %v849
    %v851 = vand.u32 %v114, 4294901760
    %852 = vmatmul.f32.gmra.mxu0 %v851
    %v853 = vpop.f32.mrf.mxu0
    %v854 = vadd.f32 %v829, %v853
    %855 = vdwg.mxu0
    %856 = vmatpush.msra.mxu0 0.0
    %857 = vmatpush.msra.mxu0 0.0
    %858 = vmatpush.msra.mxu0 0.0
    %859 = vmatpush.msra.mxu0 0.0
    %860 = vmatpush.msra.mxu0 0.0
    %861 = vmatpush.msra.mxu0 0.0
    %862 = vmatpush.msra.mxu0 0.0
    %863 = vmatpush.msra.mxu0 0.0
    %864 = vmatpush.msra.mxu0 0.0
    %865 = vmatpush.msra.mxu0 0.0
    %866 = vmatpush.msra.mxu0 0.0
    %867 = vmatpush.msra.mxu0 0.0
    %v868 = vand.u32 %v85, 4294901760
    %869 = vmatpush.msra.mxu0 %v868
    %v870 = vand.u32 %v77, 4294901760
    %871 = vmatpush.msra.mxu0 %v870
    %v872 = vand.u32 %v101, 4294901760
    %873 = vmatpush.msra.mxu0 %v872
    %v874 = vand.u32 %v93, 4294901760
    %875 = vmatpush.msra.mxu0 %v874
    %v876 = vand.u32 %v114, 4294901760
    %v877 = vsub.f32 %v114, %v876
    %v878 = vand.u32 %v877, 4294901760
    %v879 = vsub.f32 %v877, %v878
    %v880 = vand.u32 %v879, 4294901760
    %881 = vmatmul.f32.gmra.mxu0 %v880
    %v882 = vpop.f32.mrf.mxu0
    %v883 = vadd.f32 %v110, %v882
    %884 = vdwg.mxu0
    %885 = vmatpush.msra.mxu0 0.0
    %886 = vmatpush.msra.mxu0 0.0
    %887 = vmatpush.msra.mxu0 0.0
    %888 = vmatpush.msra.mxu0 0.0
    %889 = vmatpush.msra.mxu0 0.0
    %890 = vmatpush.msra.mxu0 0.0
    %891 = vmatpush.msra.mxu0 0.0
    %892 = vmatpush.msra.mxu0 0.0
    %893 = vmatpush.msra.mxu0 0.0
    %894 = vmatpush.msra.mxu0 0.0
    %895 = vmatpush.msra.mxu0 0.0
    %896 = vmatpush.msra.mxu0 0.0
    %v897 = vand.u32 %v85, 4294901760
    %v898 = vsub.f32 %v85, %v897
    %v899 = vand.u32 %v898, 4294901760
    %v900 = vsub.f32 %v898, %v899
    %v901 = vand.u32 %v900, 4294901760
    %902 = vmatpush.msra.mxu0 %v901
    %v903 = vand.u32 %v77, 4294901760
    %v904 = vsub.f32 %v77, %v903
    %v905 = vand.u32 %v904, 4294901760
    %v906 = vsub.f32 %v904, %v905
    %v907 = vand.u32 %v906, 4294901760
    %908 = vmatpush.msra.mxu0 %v907
    %v909 = vand.u32 %v101, 4294901760
    %v910 = vsub.f32 %v101, %v909
    %v911 = vand.u32 %v910, 4294901760
    %v912 = vsub.f32 %v910, %v911
    %v913 = vand.u32 %v912, 4294901760
    %914 = vmatpush.msra.mxu0 %v913
    %v915 = vand.u32 %v93, 4294901760
    %v916 = vsub.f32 %v93, %v915
    %v917 = vand.u32 %v916, 4294901760
    %v918 = vsub.f32 %v916, %v917
    %v919 = vand.u32 %v918, 4294901760
    %920 = vmatpush.msra.mxu0 %v919
    %v921 = vand.u32 %v114, 4294901760
    %922 = vmatmul.f32.gmra.mxu0 %v921
    %v923 = vpop.f32.mrf.mxu0
    %v924 = vadd.f32 %v883, %v923
    %925 = vdwg.mxu0
    %926 = vmatpush.msra.mxu0 0.0
    %927 = vmatpush.msra.mxu0 0.0
    %928 = vmatpush.msra.mxu0 0.0
    %929 = vmatpush.msra.mxu0 0.0
    %930 = vmatpush.msra.mxu0 0.0
    %931 = vmatpush.msra.mxu0 0.0
    %932 = vmatpush.msra.mxu0 0.0
    %933 = vmatpush.msra.mxu0 0.0
    %934 = vmatpush.msra.mxu0 0.0
    %935 = vmatpush.msra.mxu0 0.0
    %936 = vmatpush.msra.mxu0 0.0
    %937 = vmatpush.msra.mxu0 0.0
    %v938 = vand.u32 %v85, 4294901760
    %v939 = vsub.f32 %v85, %v938
    %940 = vmatpush.msra.mxu0 %v939
    %v941 = vand.u32 %v77, 4294901760
    %v942 = vsub.f32 %v77, %v941
    %943 = vmatpush.msra.mxu0 %v942
    %v944 = vand.u32 %v101, 4294901760
    %v945 = vsub.f32 %v101, %v944
    %946 = vmatpush.msra.mxu0 %v945
    %v947 = vand.u32 %v93, 4294901760
    %v948 = vsub.f32 %v93, %v947
    %949 = vmatpush.msra.mxu0 %v948
    %v950 = vand.u32 %v114, 4294901760
    %v951 = vsub.f32 %v114, %v950
    %952 = vmatmul.f32.gmra.mxu0 %v951
    %v953 = vpop.f32.mrf.mxu0
    %v954 = vadd.f32 %v924, %v953
    %955 = vdwg.mxu0
    %956 = vmatpush.msra.mxu0 0.0
    %957 = vmatpush.msra.mxu0 0.0
    %958 = vmatpush.msra.mxu0 0.0
    %959 = vmatpush.msra.mxu0 0.0
    %960 = vmatpush.msra.mxu0 0.0
    %961 = vmatpush.msra.mxu0 0.0
    %962 = vmatpush.msra.mxu0 0.0
    %963 = vmatpush.msra.mxu0 0.0
    %964 = vmatpush.msra.mxu0 0.0
    %965 = vmatpush.msra.mxu0 0.0
    %966 = vmatpush.msra.mxu0 0.0
    %967 = vmatpush.msra.mxu0 0.0
    %v968 = vand.u32 %v85, 4294901760
    %969 = vmatpush.msra.mxu0 %v968
    %v970 = vand.u32 %v77, 4294901760
    %971 = vmatpush.msra.mxu0 %v970
    %v972 = vand.u32 %v101, 4294901760
    %973 = vmatpush.msra.mxu0 %v972
    %v974 = vand.u32 %v93, 4294901760
    %975 = vmatpush.msra.mxu0 %v974
    %v976 = vand.u32 %v114, 4294901760
    %v977 = vsub.f32 %v114, %v976
    %v978 = vand.u32 %v977, 4294901760
    %979 = vmatmul.f32.gmra.mxu0 %v978
    %v980 = vpop.f32.mrf.mxu0
    %v981 = vadd.f32 %v954, %v980
    %982 = vdwg.mxu0
    %983 = vmatpush.msra.mxu0 0.0
    %984 = vmatpush.msra.mxu0 0.0
    %985 = vmatpush.msra.mxu0 0.0
    %986 = vmatpush.msra.mxu0 0.0
    %987 = vmatpush.msra.mxu0 0.0
    %988 = vmatpush.msra.mxu0 0.0
    %989 = vmatpush.msra.mxu0 0.0
    %990 = vmatpush.msra.mxu0 0.0
    %991 = vmatpush.msra.mxu0 0.0
    %992 = vmatpush.msra.mxu0 0.0
    %993 = vmatpush.msra.mxu0 0.0
    %994 = vmatpush.msra.mxu0 0.0
    %v995 = vand.u32 %v85, 4294901760
    %v996 = vsub.f32 %v85, %v995
    %v997 = vand.u32 %v996, 4294901760
    %998 = vmatpush.msra.mxu0 %v997
    %v999 = vand.u32 %v77, 4294901760
    %v1000 = vsub.f32 %v77, %v999
    %v1001 = vand.u32 %v1000, 4294901760
    %1002 = vmatpush.msra.mxu0 %v1001
    %v1003 = vand.u32 %v101, 4294901760
    %v1004 = vsub.f32 %v101, %v1003
    %v1005 = vand.u32 %v1004, 4294901760
    %1006 = vmatpush.msra.mxu0 %v1005
    %v1007 = vand.u32 %v93, 4294901760
    %v1008 = vsub.f32 %v93, %v1007
    %v1009 = vand.u32 %v1008, 4294901760
    %1010 = vmatpush.msra.mxu0 %v1009
    %v1011 = vand.u32 %v114, 4294901760
    %1012 = vmatmul.f32.gmra.mxu0 %v1011
    %v1013 = vpop.f32.mrf.mxu0
    %v1014 = vadd.f32 %v981, %v1013
    %1015 = vdwg.mxu0
    %1016 = vmatpush.msra.mxu0 0.0
    %1017 = vmatpush.msra.mxu0 0.0
    %1018 = vmatpush.msra.mxu0 0.0
    %1019 = vmatpush.msra.mxu0 0.0
    %1020 = vmatpush.msra.mxu0 0.0
    %1021 = vmatpush.msra.mxu0 0.0
    %1022 = vmatpush.msra.mxu0 0.0
    %1023 = vmatpush.msra.mxu0 0.0
    %1024 = vmatpush.msra.mxu0 0.0
    %1025 = vmatpush.msra.mxu0 0.0
    %1026 = vmatpush.msra.mxu0 0.0
    %1027 = vmatpush.msra.mxu0 0.0
    %v1028 = vand.u32 %v85, 4294901760
    %1029 = vmatpush.msra.mxu0 %v1028
    %v1030 = vand.u32 %v77, 4294901760
    %1031 = vmatpush.msra.mxu0 %v1030
    %v1032 = vand.u32 %v101, 4294901760
    %1033 = vmatpush.msra.mxu0 %v1032
    %v1034 = vand.u32 %v93, 4294901760
    %1035 = vmatpush.msra.mxu0 %v1034
    %v1036 = vand.u32 %v114, 4294901760
    %1037 = vmatmul.f32.gmra.mxu0 %v1036
    %v1038 = vpop.f32.mrf.mxu0
    %v1039 = vadd.f32 %v1014, %v1038
    %1040 = vdwg.mxu0
    %1041 = vmatpush.msra.mxu0 0.0
    %1042 = vmatpush.msra.mxu0 0.0
    %1043 = vmatpush.msra.mxu0 0.0
    %1044 = vmatpush.msra.mxu0 0.0
    %1045 = vmatpush.msra.mxu0 0.0
    %1046 = vmatpush.msra.mxu0 0.0
    %1047 = vmatpush.msra.mxu0 0.0
    %1048 = vmatpush.msra.mxu0 0.0
    %1049 = vmatpush.msra.mxu0 0.0
    %1050 = vmatpush.msra.mxu0 0.0
    %1051 = vmatpush.msra.mxu0 0.0
    %1052 = vmatpush.msra.mxu0 0.0
    %v1053 = vand.u32 %v86, 4294901760
    %1054 = vmatpush.msra.mxu0 %v1053
    %v1055 = vand.u32 %v78, 4294901760
    %1056 = vmatpush.msra.mxu0 %v1055
    %v1057 = vand.u32 %v102, 4294901760
    %1058 = vmatpush.msra.mxu0 %v1057
    %v1059 = vand.u32 %v94, 4294901760
    %1060 = vmatpush.msra.mxu0 %v1059
    %v1061 = vand.u32 %v114, 4294901760
    %v1062 = vsub.f32 %v114, %v1061
    %v1063 = vand.u32 %v1062, 4294901760
    %v1064 = vsub.f32 %v1062, %v1063
    %v1065 = vand.u32 %v1064, 4294901760
    %1066 = vmatmul.f32.gmra.mxu0 %v1065
    %v1067 = vpop.f32.mrf.mxu0
    %v1068 = vadd.f32 %v110, %v1067
    %1069 = vdwg.mxu0
    %1070 = vmatpush.msra.mxu0 0.0
    %1071 = vmatpush.msra.mxu0 0.0
    %1072 = vmatpush.msra.mxu0 0.0
    %1073 = vmatpush.msra.mxu0 0.0
    %1074 = vmatpush.msra.mxu0 0.0
    %1075 = vmatpush.msra.mxu0 0.0
    %1076 = vmatpush.msra.mxu0 0.0
    %1077 = vmatpush.msra.mxu0 0.0
    %1078 = vmatpush.msra.mxu0 0.0
    %1079 = vmatpush.msra.mxu0 0.0
    %1080 = vmatpush.msra.mxu0 0.0
    %1081 = vmatpush.msra.mxu0 0.0
    %v1082 = vand.u32 %v86, 4294901760
    %v1083 = vsub.f32 %v86, %v1082
    %v1084 = vand.u32 %v1083, 4294901760
    %v1085 = vsub.f32 %v1083, %v1084
    %v1086 = vand.u32 %v1085, 4294901760
    %1087 = vmatpush.msra.mxu0 %v1086
    %v1088 = vand.u32 %v78, 4294901760
    %v1089 = vsub.f32 %v78, %v1088
    %v1090 = vand.u32 %v1089, 4294901760
    %v1091 = vsub.f32 %v1089, %v1090
    %v1092 = vand.u32 %v1091, 4294901760
    %1093 = vmatpush.msra.mxu0 %v1092
    %v1094 = vand.u32 %v102, 4294901760
    %v1095 = vsub.f32 %v102, %v1094
    %v1096 = vand.u32 %v1095, 4294901760
    %v1097 = vsub.f32 %v1095, %v1096
    %v1098 = vand.u32 %v1097, 4294901760
    %1099 = vmatpush.msra.mxu0 %v1098
    %v1100 = vand.u32 %v94, 4294901760
    %v1101 = vsub.f32 %v94, %v1100
    %v1102 = vand.u32 %v1101, 4294901760
    %v1103 = vsub.f32 %v1101, %v1102
    %v1104 = vand.u32 %v1103, 4294901760
    %1105 = vmatpush.msra.mxu0 %v1104
    %v1106 = vand.u32 %v114, 4294901760
    %1107 = vmatmul.f32.gmra.mxu0 %v1106
    %v1108 = vpop.f32.mrf.mxu0
    %v1109 = vadd.f32 %v1068, %v1108
    %1110 = vdwg.mxu0
    %1111 = vmatpush.msra.mxu0 0.0
    %1112 = vmatpush.msra.mxu0 0.0
    %1113 = vmatpush.msra.mxu0 0.0
    %1114 = vmatpush.msra.mxu0 0.0
    %1115 = vmatpush.msra.mxu0 0.0
    %1116 = vmatpush.msra.mxu0 0.0
    %1117 = vmatpush.msra.mxu0 0.0
    %1118 = vmatpush.msra.mxu0 0.0
    %1119 = vmatpush.msra.mxu0 0.0
    %1120 = vmatpush.msra.mxu0 0.0
    %1121 = vmatpush.msra.mxu0 0.0
    %1122 = vmatpush.msra.mxu0 0.0
    %v1123 = vand.u32 %v86, 4294901760
    %v1124 = vsub.f32 %v86, %v1123
    %1125 = vmatpush.msra.mxu0 %v1124
    %v1126 = vand.u32 %v78, 4294901760
    %v1127 = vsub.f32 %v78, %v1126
    %1128 = vmatpush.msra.mxu0 %v1127
    %v1129 = vand.u32 %v102, 4294901760
    %v1130 = vsub.f32 %v102, %v1129
    %1131 = vmatpush.msra.mxu0 %v1130
    %v1132 = vand.u32 %v94, 4294901760
    %v1133 = vsub.f32 %v94, %v1132
    %1134 = vmatpush.msra.mxu0 %v1133
    %v1135 = vand.u32 %v114, 4294901760
    %v1136 = vsub.f32 %v114, %v1135
    %1137 = vmatmul.f32.gmra.mxu0 %v1136
    %v1138 = vpop.f32.mrf.mxu0
    %v1139 = vadd.f32 %v1109, %v1138
    %1140 = vdwg.mxu0
    %1141 = vmatpush.msra.mxu0 0.0
    %1142 = vmatpush.msra.mxu0 0.0
    %1143 = vmatpush.msra.mxu0 0.0
    %1144 = vmatpush.msra.mxu0 0.0
    %1145 = vmatpush.msra.mxu0 0.0
    %1146 = vmatpush.msra.mxu0 0.0
    %1147 = vmatpush.msra.mxu0 0.0
    %1148 = vmatpush.msra.mxu0 0.0
    %1149 = vmatpush.msra.mxu0 0.0
    %1150 = vmatpush.msra.mxu0 0.0
    %1151 = vmatpush.msra.mxu0 0.0
    %1152 = vmatpush.msra.mxu0 0.0
    %v1153 = vand.u32 %v86, 4294901760
    %1154 = vmatpush.msra.mxu0 %v1153
    %v1155 = vand.u32 %v78, 4294901760
    %1156 = vmatpush.msra.mxu0 %v1155
    %v1157 = vand.u32 %v102, 4294901760
    %1158 = vmatpush.msra.mxu0 %v1157
    %v1159 = vand.u32 %v94, 4294901760
    %1160 = vmatpush.msra.mxu0 %v1159
    %v1161 = vand.u32 %v114, 4294901760
    %v1162 = vsub.f32 %v114, %v1161
    %v1163 = vand.u32 %v1162, 4294901760
    %1164 = vmatmul.f32.gmra.mxu0 %v1163
    %v1165 = vpop.f32.mrf.mxu0
    %v1166 = vadd.f32 %v1139, %v1165
    %1167 = vdwg.mxu0
    %1168 = vmatpush.msra.mxu0 0.0
    %1169 = vmatpush.msra.mxu0 0.0
    %1170 = vmatpush.msra.mxu0 0.0
    %1171 = vmatpush.msra.mxu0 0.0
    %1172 = vmatpush.msra.mxu0 0.0
    %1173 = vmatpush.msra.mxu0 0.0
    %1174 = vmatpush.msra.mxu0 0.0
    %1175 = vmatpush.msra.mxu0 0.0
    %1176 = vmatpush.msra.mxu0 0.0
    %1177 = vmatpush.msra.mxu0 0.0
    %1178 = vmatpush.msra.mxu0 0.0
    %1179 = vmatpush.msra.mxu0 0.0
    %v1180 = vand.u32 %v86, 4294901760
    %v1181 = vsub.f32 %v86, %v1180
    %v1182 = vand.u32 %v1181, 4294901760
    %1183 = vmatpush.msra.mxu0 %v1182
    %v1184 = vand.u32 %v78, 4294901760
    %v1185 = vsub.f32 %v78, %v1184
    %v1186 = vand.u32 %v1185, 4294901760
    %1187 = vmatpush.msra.mxu0 %v1186
    %v1188 = vand.u32 %v102, 4294901760
    %v1189 = vsub.f32 %v102, %v1188
    %v1190 = vand.u32 %v1189, 4294901760
    %1191 = vmatpush.msra.mxu0 %v1190
    %v1192 = vand.u32 %v94, 4294901760
    %v1193 = vsub.f32 %v94, %v1192
    %v1194 = vand.u32 %v1193, 4294901760
    %1195 = vmatpush.msra.mxu0 %v1194
    %v1196 = vand.u32 %v114, 4294901760
    %1197 = vmatmul.f32.gmra.mxu0 %v1196
    %v1198 = vpop.f32.mrf.mxu0
    %v1199 = vadd.f32 %v1166, %v1198
    %1200 = vdwg.mxu0
    %1201 = vmatpush.msra.mxu0 0.0
    %1202 = vmatpush.msra.mxu0 0.0
    %1203 = vmatpush.msra.mxu0 0.0
    %1204 = vmatpush.msra.mxu0 0.0
    %1205 = vmatpush.msra.mxu0 0.0
    %1206 = vmatpush.msra.mxu0 0.0
    %1207 = vmatpush.msra.mxu0 0.0
    %1208 = vmatpush.msra.mxu0 0.0
    %1209 = vmatpush.msra.mxu0 0.0
    %1210 = vmatpush.msra.mxu0 0.0
    %1211 = vmatpush.msra.mxu0 0.0
    %1212 = vmatpush.msra.mxu0 0.0
    %v1213 = vand.u32 %v86, 4294901760
    %1214 = vmatpush.msra.mxu0 %v1213
    %v1215 = vand.u32 %v78, 4294901760
    %1216 = vmatpush.msra.mxu0 %v1215
    %v1217 = vand.u32 %v102, 4294901760
    %1218 = vmatpush.msra.mxu0 %v1217
    %v1219 = vand.u32 %v94, 4294901760
    %1220 = vmatpush.msra.mxu0 %v1219
    %v1221 = vand.u32 %v114, 4294901760
    %1222 = vmatmul.f32.gmra.mxu0 %v1221
    %v1223 = vpop.f32.mrf.mxu0
    %v1224 = vadd.f32 %v1199, %v1223
    %1225 = vdwg.mxu0
    %1226 = vmatpush.msra.mxu0 0.0
    %1227 = vmatpush.msra.mxu0 0.0
    %1228 = vmatpush.msra.mxu0 0.0
    %1229 = vmatpush.msra.mxu0 0.0
    %1230 = vmatpush.msra.mxu0 0.0
    %1231 = vmatpush.msra.mxu0 0.0
    %1232 = vmatpush.msra.mxu0 0.0
    %1233 = vmatpush.msra.mxu0 0.0
    %1234 = vmatpush.msra.mxu0 0.0
    %1235 = vmatpush.msra.mxu0 0.0
    %1236 = vmatpush.msra.mxu0 0.0
    %1237 = vmatpush.msra.mxu0 0.0
    %v1238 = vand.u32 %v87, 4294901760
    %1239 = vmatpush.msra.mxu0 %v1238
    %v1240 = vand.u32 %v79, 4294901760
    %1241 = vmatpush.msra.mxu0 %v1240
    %v1242 = vand.u32 %v103, 4294901760
    %1243 = vmatpush.msra.mxu0 %v1242
    %v1244 = vand.u32 %v95, 4294901760
    %1245 = vmatpush.msra.mxu0 %v1244
    %v1246 = vand.u32 %v114, 4294901760
    %v1247 = vsub.f32 %v114, %v1246
    %v1248 = vand.u32 %v1247, 4294901760
    %v1249 = vsub.f32 %v1247, %v1248
    %v1250 = vand.u32 %v1249, 4294901760
    %1251 = vmatmul.f32.gmra.mxu0 %v1250
    %v1252 = vpop.f32.mrf.mxu0
    %v1253 = vadd.f32 %v110, %v1252
    %1254 = vdwg.mxu0
    %1255 = vmatpush.msra.mxu0 0.0
    %1256 = vmatpush.msra.mxu0 0.0
    %1257 = vmatpush.msra.mxu0 0.0
    %1258 = vmatpush.msra.mxu0 0.0
    %1259 = vmatpush.msra.mxu0 0.0
    %1260 = vmatpush.msra.mxu0 0.0
    %1261 = vmatpush.msra.mxu0 0.0
    %1262 = vmatpush.msra.mxu0 0.0
    %1263 = vmatpush.msra.mxu0 0.0
    %1264 = vmatpush.msra.mxu0 0.0
    %1265 = vmatpush.msra.mxu0 0.0
    %1266 = vmatpush.msra.mxu0 0.0
    %v1267 = vand.u32 %v87, 4294901760
    %v1268 = vsub.f32 %v87, %v1267
    %v1269 = vand.u32 %v1268, 4294901760
    %v1270 = vsub.f32 %v1268, %v1269
    %v1271 = vand.u32 %v1270, 4294901760
    %1272 = vmatpush.msra.mxu0 %v1271
    %v1273 = vand.u32 %v79, 4294901760
    %v1274 = vsub.f32 %v79, %v1273
    %v1275 = vand.u32 %v1274, 4294901760
    %v1276 = vsub.f32 %v1274, %v1275
    %v1277 = vand.u32 %v1276, 4294901760
    %1278 = vmatpush.msra.mxu0 %v1277
    %v1279 = vand.u32 %v103, 4294901760
    %v1280 = vsub.f32 %v103, %v1279
    %v1281 = vand.u32 %v1280, 4294901760
    %v1282 = vsub.f32 %v1280, %v1281
    %v1283 = vand.u32 %v1282, 4294901760
    %1284 = vmatpush.msra.mxu0 %v1283
    %v1285 = vand.u32 %v95, 4294901760
    %v1286 = vsub.f32 %v95, %v1285
    %v1287 = vand.u32 %v1286, 4294901760
    %v1288 = vsub.f32 %v1286, %v1287
    %v1289 = vand.u32 %v1288, 4294901760
    %1290 = vmatpush.msra.mxu0 %v1289
    %v1291 = vand.u32 %v114, 4294901760
    %1292 = vmatmul.f32.gmra.mxu0 %v1291
    %v1293 = vpop.f32.mrf.mxu0
    %v1294 = vadd.f32 %v1253, %v1293
    %1295 = vdwg.mxu0
    %1296 = vmatpush.msra.mxu0 0.0
    %1297 = vmatpush.msra.mxu0 0.0
    %1298 = vmatpush.msra.mxu0 0.0
    %1299 = vmatpush.msra.mxu0 0.0
    %1300 = vmatpush.msra.mxu0 0.0
    %1301 = vmatpush.msra.mxu0 0.0
    %1302 = vmatpush.msra.mxu0 0.0
    %1303 = vmatpush.msra.mxu0 0.0
    %1304 = vmatpush.msra.mxu0 0.0
    %1305 = vmatpush.msra.mxu0 0.0
    %1306 = vmatpush.msra.mxu0 0.0
    %1307 = vmatpush.msra.mxu0 0.0
    %v1308 = vand.u32 %v87, 4294901760
    %v1309 = vsub.f32 %v87, %v1308
    %1310 = vmatpush.msra.mxu0 %v1309
    %v1311 = vand.u32 %v79, 4294901760
    %v1312 = vsub.f32 %v79, %v1311
    %1313 = vmatpush.msra.mxu0 %v1312
    %v1314 = vand.u32 %v103, 4294901760
    %v1315 = vsub.f32 %v103, %v1314
    %1316 = vmatpush.msra.mxu0 %v1315
    %v1317 = vand.u32 %v95, 4294901760
    %v1318 = vsub.f32 %v95, %v1317
    %1319 = vmatpush.msra.mxu0 %v1318
    %v1320 = vand.u32 %v114, 4294901760
    %v1321 = vsub.f32 %v114, %v1320
    %1322 = vmatmul.f32.gmra.mxu0 %v1321
    %v1323 = vpop.f32.mrf.mxu0
    %v1324 = vadd.f32 %v1294, %v1323
    %1325 = vdwg.mxu0
    %1326 = vmatpush.msra.mxu0 0.0
    %1327 = vmatpush.msra.mxu0 0.0
    %1328 = vmatpush.msra.mxu0 0.0
    %1329 = vmatpush.msra.mxu0 0.0
    %1330 = vmatpush.msra.mxu0 0.0
    %1331 = vmatpush.msra.mxu0 0.0
    %1332 = vmatpush.msra.mxu0 0.0
    %1333 = vmatpush.msra.mxu0 0.0
    %1334 = vmatpush.msra.mxu0 0.0
    %1335 = vmatpush.msra.mxu0 0.0
    %1336 = vmatpush.msra.mxu0 0.0
    %1337 = vmatpush.msra.mxu0 0.0
    %v1338 = vand.u32 %v87, 4294901760
    %1339 = vmatpush.msra.mxu0 %v1338
    %v1340 = vand.u32 %v79, 4294901760
    %1341 = vmatpush.msra.mxu0 %v1340
    %v1342 = vand.u32 %v103, 4294901760
    %1343 = vmatpush.msra.mxu0 %v1342
    %v1344 = vand.u32 %v95, 4294901760
    %1345 = vmatpush.msra.mxu0 %v1344
    %v1346 = vand.u32 %v114, 4294901760
    %v1347 = vsub.f32 %v114, %v1346
    %v1348 = vand.u32 %v1347, 4294901760
    %1349 = vmatmul.f32.gmra.mxu0 %v1348
    %v1350 = vpop.f32.mrf.mxu0
    %v1351 = vadd.f32 %v1324, %v1350
    %1352 = vdwg.mxu0
    %1353 = vmatpush.msra.mxu0 0.0
    %1354 = vmatpush.msra.mxu0 0.0
    %1355 = vmatpush.msra.mxu0 0.0
    %1356 = vmatpush.msra.mxu0 0.0
    %1357 = vmatpush.msra.mxu0 0.0
    %1358 = vmatpush.msra.mxu0 0.0
    %1359 = vmatpush.msra.mxu0 0.0
    %1360 = vmatpush.msra.mxu0 0.0
    %1361 = vmatpush.msra.mxu0 0.0
    %1362 = vmatpush.msra.mxu0 0.0
    %1363 = vmatpush.msra.mxu0 0.0
    %1364 = vmatpush.msra.mxu0 0.0
    %v1365 = vand.u32 %v87, 4294901760
    %v1366 = vsub.f32 %v87, %v1365
    %v1367 = vand.u32 %v1366, 4294901760
    %1368 = vmatpush.msra.mxu0 %v1367
    %v1369 = vand.u32 %v79, 4294901760
    %v1370 = vsub.f32 %v79, %v1369
    %v1371 = vand.u32 %v1370, 4294901760
    %1372 = vmatpush.msra.mxu0 %v1371
    %v1373 = vand.u32 %v103, 4294901760
    %v1374 = vsub.f32 %v103, %v1373
    %v1375 = vand.u32 %v1374, 4294901760
    %1376 = vmatpush.msra.mxu0 %v1375
    %v1377 = vand.u32 %v95, 4294901760
    %v1378 = vsub.f32 %v95, %v1377
    %v1379 = vand.u32 %v1378, 4294901760
    %1380 = vmatpush.msra.mxu0 %v1379
    %v1381 = vand.u32 %v114, 4294901760
    %1382 = vmatmul.f32.gmra.mxu0 %v1381
    %v1383 = vpop.f32.mrf.mxu0
    %v1384 = vadd.f32 %v1351, %v1383
    %1385 = vdwg.mxu0
    %1386 = vmatpush.msra.mxu0 0.0
    %1387 = vmatpush.msra.mxu0 0.0
    %1388 = vmatpush.msra.mxu0 0.0
    %1389 = vmatpush.msra.mxu0 0.0
    %1390 = vmatpush.msra.mxu0 0.0
    %1391 = vmatpush.msra.mxu0 0.0
    %1392 = vmatpush.msra.mxu0 0.0
    %1393 = vmatpush.msra.mxu0 0.0
    %1394 = vmatpush.msra.mxu0 0.0
    %1395 = vmatpush.msra.mxu0 0.0
    %1396 = vmatpush.msra.mxu0 0.0
    %1397 = vmatpush.msra.mxu0 0.0
    %v1398 = vand.u32 %v87, 4294901760
    %1399 = vmatpush.msra.mxu0 %v1398
    %v1400 = vand.u32 %v79, 4294901760
    %1401 = vmatpush.msra.mxu0 %v1400
    %v1402 = vand.u32 %v103, 4294901760
    %1403 = vmatpush.msra.mxu0 %v1402
    %v1404 = vand.u32 %v95, 4294901760
    %1405 = vmatpush.msra.mxu0 %v1404
    %v1406 = vand.u32 %v114, 4294901760
    %1407 = vmatmul.f32.gmra.mxu0 %v1406
    %v1408 = vpop.f32.mrf.mxu0
    %v1409 = vadd.f32 %v1384, %v1408
    %1410 = vdwg.mxu0
    %1411 = vmatpush.msra.mxu0 0.0
    %1412 = vmatpush.msra.mxu0 0.0
    %1413 = vmatpush.msra.mxu0 0.0
    %1414 = vmatpush.msra.mxu0 0.0
    %1415 = vmatpush.msra.mxu0 0.0
    %1416 = vmatpush.msra.mxu0 0.0
    %1417 = vmatpush.msra.mxu0 0.0
    %1418 = vmatpush.msra.mxu0 0.0
    %1419 = vmatpush.msra.mxu0 0.0
    %1420 = vmatpush.msra.mxu0 0.0
    %1421 = vmatpush.msra.mxu0 0.0
    %1422 = vmatpush.msra.mxu0 0.0
    %v1423 = vand.u32 %v88, 4294901760
    %1424 = vmatpush.msra.mxu0 %v1423
    %v1425 = vand.u32 %v80, 4294901760
    %1426 = vmatpush.msra.mxu0 %v1425
    %v1427 = vand.u32 %v104, 4294901760
    %1428 = vmatpush.msra.mxu0 %v1427
    %v1429 = vand.u32 %v96, 4294901760
    %1430 = vmatpush.msra.mxu0 %v1429
    %v1431 = vand.u32 %v114, 4294901760
    %v1432 = vsub.f32 %v114, %v1431
    %v1433 = vand.u32 %v1432, 4294901760
    %v1434 = vsub.f32 %v1432, %v1433
    %v1435 = vand.u32 %v1434, 4294901760
    %1436 = vmatmul.f32.gmra.mxu0 %v1435
    %v1437 = vpop.f32.mrf.mxu0
    %v1438 = vadd.f32 %v110, %v1437
    %1439 = vdwg.mxu0
    %1440 = vmatpush.msra.mxu0 0.0
    %1441 = vmatpush.msra.mxu0 0.0
    %1442 = vmatpush.msra.mxu0 0.0
    %1443 = vmatpush.msra.mxu0 0.0
    %1444 = vmatpush.msra.mxu0 0.0
    %1445 = vmatpush.msra.mxu0 0.0
    %1446 = vmatpush.msra.mxu0 0.0
    %1447 = vmatpush.msra.mxu0 0.0
    %1448 = vmatpush.msra.mxu0 0.0
    %1449 = vmatpush.msra.mxu0 0.0
    %1450 = vmatpush.msra.mxu0 0.0
    %1451 = vmatpush.msra.mxu0 0.0
    %v1452 = vand.u32 %v88, 4294901760
    %v1453 = vsub.f32 %v88, %v1452
    %v1454 = vand.u32 %v1453, 4294901760
    %v1455 = vsub.f32 %v1453, %v1454
    %v1456 = vand.u32 %v1455, 4294901760
    %1457 = vmatpush.msra.mxu0 %v1456
    %v1458 = vand.u32 %v80, 4294901760
    %v1459 = vsub.f32 %v80, %v1458
    %v1460 = vand.u32 %v1459, 4294901760
    %v1461 = vsub.f32 %v1459, %v1460
    %v1462 = vand.u32 %v1461, 4294901760
    %1463 = vmatpush.msra.mxu0 %v1462
    %v1464 = vand.u32 %v104, 4294901760
    %v1465 = vsub.f32 %v104, %v1464
    %v1466 = vand.u32 %v1465, 4294901760
    %v1467 = vsub.f32 %v1465, %v1466
    %v1468 = vand.u32 %v1467, 4294901760
    %1469 = vmatpush.msra.mxu0 %v1468
    %v1470 = vand.u32 %v96, 4294901760
    %v1471 = vsub.f32 %v96, %v1470
    %v1472 = vand.u32 %v1471, 4294901760
    %v1473 = vsub.f32 %v1471, %v1472
    %v1474 = vand.u32 %v1473, 4294901760
    %1475 = vmatpush.msra.mxu0 %v1474
    %v1476 = vand.u32 %v114, 4294901760
    %1477 = vmatmul.f32.gmra.mxu0 %v1476
    %v1478 = vpop.f32.mrf.mxu0
    %v1479 = vadd.f32 %v1438, %v1478
    %1480 = vdwg.mxu0
    %1481 = vmatpush.msra.mxu0 0.0
    %1482 = vmatpush.msra.mxu0 0.0
    %1483 = vmatpush.msra.mxu0 0.0
    %1484 = vmatpush.msra.mxu0 0.0
    %1485 = vmatpush.msra.mxu0 0.0
    %1486 = vmatpush.msra.mxu0 0.0
    %1487 = vmatpush.msra.mxu0 0.0
    %1488 = vmatpush.msra.mxu0 0.0
    %1489 = vmatpush.msra.mxu0 0.0
    %1490 = vmatpush.msra.mxu0 0.0
    %1491 = vmatpush.msra.mxu0 0.0
    %1492 = vmatpush.msra.mxu0 0.0
    %v1493 = vand.u32 %v88, 4294901760
    %v1494 = vsub.f32 %v88, %v1493
    %1495 = vmatpush.msra.mxu0 %v1494
    %v1496 = vand.u32 %v80, 4294901760
    %v1497 = vsub.f32 %v80, %v1496
    %1498 = vmatpush.msra.mxu0 %v1497
    %v1499 = vand.u32 %v104, 4294901760
    %v1500 = vsub.f32 %v104, %v1499
    %1501 = vmatpush.msra.mxu0 %v1500
    %v1502 = vand.u32 %v96, 4294901760
    %v1503 = vsub.f32 %v96, %v1502
    %1504 = vmatpush.msra.mxu0 %v1503
    %v1505 = vand.u32 %v114, 4294901760
    %v1506 = vsub.f32 %v114, %v1505
    %1507 = vmatmul.f32.gmra.mxu0 %v1506
    %v1508 = vpop.f32.mrf.mxu0
    %v1509 = vadd.f32 %v1479, %v1508
    %1510 = vdwg.mxu0
    %1511 = vmatpush.msra.mxu0 0.0
    %1512 = vmatpush.msra.mxu0 0.0
    %1513 = vmatpush.msra.mxu0 0.0
    %1514 = vmatpush.msra.mxu0 0.0
    %1515 = vmatpush.msra.mxu0 0.0
    %1516 = vmatpush.msra.mxu0 0.0
    %1517 = vmatpush.msra.mxu0 0.0
    %1518 = vmatpush.msra.mxu0 0.0
    %1519 = vmatpush.msra.mxu0 0.0
    %1520 = vmatpush.msra.mxu0 0.0
    %1521 = vmatpush.msra.mxu0 0.0
    %1522 = vmatpush.msra.mxu0 0.0
    %v1523 = vand.u32 %v88, 4294901760
    %1524 = vmatpush.msra.mxu0 %v1523
    %v1525 = vand.u32 %v80, 4294901760
    %1526 = vmatpush.msra.mxu0 %v1525
    %v1527 = vand.u32 %v104, 4294901760
    %1528 = vmatpush.msra.mxu0 %v1527
    %v1529 = vand.u32 %v96, 4294901760
    %1530 = vmatpush.msra.mxu0 %v1529
    %v1531 = vand.u32 %v114, 4294901760
    %v1532 = vsub.f32 %v114, %v1531
    %v1533 = vand.u32 %v1532, 4294901760
    %1534 = vmatmul.f32.gmra.mxu0 %v1533
    %v1535 = vpop.f32.mrf.mxu0
    %v1536 = vadd.f32 %v1509, %v1535
    %1537 = vdwg.mxu0
    %1538 = vmatpush.msra.mxu0 0.0
    %1539 = vmatpush.msra.mxu0 0.0
    %1540 = vmatpush.msra.mxu0 0.0
    %1541 = vmatpush.msra.mxu0 0.0
    %1542 = vmatpush.msra.mxu0 0.0
    %1543 = vmatpush.msra.mxu0 0.0
    %1544 = vmatpush.msra.mxu0 0.0
    %1545 = vmatpush.msra.mxu0 0.0
    %1546 = vmatpush.msra.mxu0 0.0
    %1547 = vmatpush.msra.mxu0 0.0
    %1548 = vmatpush.msra.mxu0 0.0
    %1549 = vmatpush.msra.mxu0 0.0
    %v1550 = vand.u32 %v88, 4294901760
    %v1551 = vsub.f32 %v88, %v1550
    %v1552 = vand.u32 %v1551, 4294901760
    %1553 = vmatpush.msra.mxu0 %v1552
    %v1554 = vand.u32 %v80, 4294901760
    %v1555 = vsub.f32 %v80, %v1554
    %v1556 = vand.u32 %v1555, 4294901760
    %1557 = vmatpush.msra.mxu0 %v1556
    %v1558 = vand.u32 %v104, 4294901760
    %v1559 = vsub.f32 %v104, %v1558
    %v1560 = vand.u32 %v1559, 4294901760
    %1561 = vmatpush.msra.mxu0 %v1560
    %v1562 = vand.u32 %v96, 4294901760
    %v1563 = vsub.f32 %v96, %v1562
    %v1564 = vand.u32 %v1563, 4294901760
    %1565 = vmatpush.msra.mxu0 %v1564
    %v1566 = vand.u32 %v114, 4294901760
    %1567 = vmatmul.f32.gmra.mxu0 %v1566
    %v1568 = vpop.f32.mrf.mxu0
    %v1569 = vadd.f32 %v1536, %v1568
    %1570 = vdwg.mxu0
    %1571 = vmatpush.msra.mxu0 0.0
    %1572 = vmatpush.msra.mxu0 0.0
    %1573 = vmatpush.msra.mxu0 0.0
    %1574 = vmatpush.msra.mxu0 0.0
    %1575 = vmatpush.msra.mxu0 0.0
    %1576 = vmatpush.msra.mxu0 0.0
    %1577 = vmatpush.msra.mxu0 0.0
    %1578 = vmatpush.msra.mxu0 0.0
    %1579 = vmatpush.msra.mxu0 0.0
    %1580 = vmatpush.msra.mxu0 0.0
    %1581 = vmatpush.msra.mxu0 0.0
    %1582 = vmatpush.msra.mxu0 0.0
    %v1583 = vand.u32 %v88, 4294901760
    %1584 = vmatpush.msra.mxu0 %v1583
    %v1585 = vand.u32 %v80, 4294901760
    %1586 = vmatpush.msra.mxu0 %v1585
    %v1587 = vand.u32 %v104, 4294901760
    %1588 = vmatpush.msra.mxu0 %v1587
    %v1589 = vand.u32 %v96, 4294901760
    %1590 = vmatpush.msra.mxu0 %v1589
    %v1591 = vand.u32 %v114, 4294901760
    %1592 = vmatmul.f32.gmra.mxu0 %v1591
    %v1593 = vpop.f32.mrf.mxu0
    %v1594 = vadd.f32 %v1569, %v1593
    %1595 = vdwg.mxu0
    %v1604 = vrot.slane %v484, 4
    %v1605 = vrot.slane %v854, 4
    %v1606 = vrot.slane %v1224, 4
    %v1607 = vrot.slane %v1594, 4
    %vm1608 = vcmask 1043456
    %v1609 = vsel %vm1608, %v299, %v1604
    %v1610 = vsel %vm1608, %v669, %v1605
    %v1611 = vsel %vm1608, %v1039, %v1606
    %v1612 = vsel %vm1608, %v1409, %v1607
    %1617 = vst [vmem:[#allocation9] sm:$0x77] %v1609
    %1618 = vst [vmem:[#allocation9 + $0x8] sm:$0x77] %v1610
    %1619 = vst [vmem:[#allocation9 + $0x10] sm:$0x77] %v1611
    %1620 = vst [vmem:[#allocation9 + $0x18] sm:$0x77] %v1612
    %v1621 = vld [vmem:[%s4] sm:$0x7]
    %1623 = vset.pattern.permute.xlu0 0
    %1624 = vperm.xlu0 %1623, %v1621
    %v1625 = vpop.permute.xlu0 %1624
    %v1627 = vadd.f32 %v299, %v1625
    %v1628 = vadd.f32 %v484, %v1625
    %v1629 = vadd.f32 %v669, %v1625
    %v1630 = vadd.f32 %v854, %v1625
    %v1631 = vadd.f32 %v1039, %v1625
    %v1632 = vadd.f32 %v1224, %v1625
    %v1633 = vadd.f32 %v1409, %v1625
    %v1634 = vadd.f32 %v1594, %v1625
    %vm1635 = vcmask 1042432
    %v1636 = vsel %vm1635, %v1627, -inf
    %v1637 = vrot.slane %v1636, 4
    %v1638 = vmax.f32 %v1636, %v1637
    %v1639 = vrot.slane %v1638, 2
    %v1640 = vmax.f32 %v1638, %v1639
    %v1641 = vrot.slane %v1640, 1
    %v1642 = vmax.f32 %v1640, %v1641
    %v1643 = vsel %vm1635, %v1628, -inf
    %v1644 = vrot.slane %v1643, 4
    %v1645 = vmax.f32 %v1643, %v1644
    %v1646 = vrot.slane %v1645, 2
    %v1647 = vmax.f32 %v1645, %v1646
    %v1648 = vrot.slane %v1647, 1
    %v1649 = vmax.f32 %v1647, %v1648
    %v1650 = vsel %vm1635, %v1629, -inf
    %v1651 = vrot.slane %v1650, 4
    %v1652 = vmax.f32 %v1650, %v1651
    %v1653 = vrot.slane %v1652, 2
    %v1654 = vmax.f32 %v1652, %v1653
    %v1655 = vrot.slane %v1654, 1
    %v1656 = vmax.f32 %v1654, %v1655
    %v1657 = vsel %vm1635, %v1630, -inf
    %v1658 = vrot.slane %v1657, 4
    %v1659 = vmax.f32 %v1657, %v1658
    %v1660 = vrot.slane %v1659, 2
    %v1661 = vmax.f32 %v1659, %v1660
    %v1662 = vrot.slane %v1661, 1
    %v1663 = vmax.f32 %v1661, %v1662
    %v1664 = vsel %vm1635, %v1631, -inf
    %v1665 = vrot.slane %v1664, 4
    %v1666 = vmax.f32 %v1664, %v1665
    %v1667 = vrot.slane %v1666, 2
    %v1668 = vmax.f32 %v1666, %v1667
    %v1669 = vrot.slane %v1668, 1
    %v1670 = vmax.f32 %v1668, %v1669
    %v1671 = vsel %vm1635, %v1632, -inf
    %v1672 = vrot.slane %v1671, 4
    %v1673 = vmax.f32 %v1671, %v1672
    %v1674 = vrot.slane %v1673, 2
    %v1675 = vmax.f32 %v1673, %v1674
    %v1676 = vrot.slane %v1675, 1
    %v1677 = vmax.f32 %v1675, %v1676
    %v1678 = vsel %vm1635, %v1633, -inf
    %v1679 = vrot.slane %v1678, 4
    %v1680 = vmax.f32 %v1678, %v1679
    %v1681 = vrot.slane %v1680, 2
    %v1682 = vmax.f32 %v1680, %v1681
    %v1683 = vrot.slane %v1682, 1
    %v1684 = vmax.f32 %v1682, %v1683
    %v1685 = vsel %vm1635, %v1634, -inf
    %v1686 = vrot.slane %v1685, 4
    %v1687 = vmax.f32 %v1685, %v1686
    %v1688 = vrot.slane %v1687, 2
    %v1689 = vmax.f32 %v1687, %v1688
    %v1690 = vrot.slane %v1689, 1
    %v1691 = vmax.f32 %v1689, %v1690
    %v1692 = vsub.f32 %v1627, %v1642
    %v1693 = vsub.f32 %v1628, %v1649
    %v1694 = vsub.f32 %v1629, %v1656
    %v1695 = vsub.f32 %v1630, %v1663
    %v1696 = vsub.f32 %v1631, %v1670
    %v1697 = vsub.f32 %v1632, %v1677
    %v1698 = vsub.f32 %v1633, %v1684
    %v1699 = vsub.f32 %v1634, %v1691
    %v1700 = vmul.f32 %v1692, 1.442695
    %v1701 = vpow.pop %v1700
    %v1702 = vmul.f32 %v1693, 1.442695
    %v1703 = vpow.pop %v1702
    %v1704 = vmul.f32 %v1694, 1.442695
    %v1705 = vpow.pop %v1704
    %v1706 = vmul.f32 %v1695, 1.442695
    %v1707 = vpow.pop %v1706
    %v1708 = vmul.f32 %v1696, 1.442695
    %v1709 = vpow.pop %v1708
    %v1710 = vmul.f32 %v1697, 1.442695
    %v1711 = vpow.pop %v1710
    %v1712 = vmul.f32 %v1698, 1.442695
    %v1713 = vpow.pop %v1712
    %v1714 = vmul.f32 %v1699, 1.442695
    %v1715 = vpow.pop %v1714
    %v1716 = vsel %vm1635, %v1701, 0.0
    %v1717 = vrot.slane %v1716, 4
    %v1718 = vadd.f32 %v1716, %v1717
    %v1719 = vrot.slane %v1718, 2
    %v1720 = vadd.f32 %v1718, %v1719
    %v1721 = vrot.slane %v1720, 1
    %v1722 = vadd.f32 %v1720, %v1721
    %v1723 = vsel %vm1635, %v1703, 0.0
    %v1724 = vrot.slane %v1723, 4
    %v1725 = vadd.f32 %v1723, %v1724
    %v1726 = vrot.slane %v1725, 2
    %v1727 = vadd.f32 %v1725, %v1726
    %v1728 = vrot.slane %v1727, 1
    %v1729 = vadd.f32 %v1727, %v1728
    %v1730 = vsel %vm1635, %v1705, 0.0
    %v1731 = vrot.slane %v1730, 4
    %v1732 = vadd.f32 %v1730, %v1731
    %v1733 = vrot.slane %v1732, 2
    %v1734 = vadd.f32 %v1732, %v1733
    %v1735 = vrot.slane %v1734, 1
    %v1736 = vadd.f32 %v1734, %v1735
    %v1737 = vsel %vm1635, %v1707, 0.0
    %v1738 = vrot.slane %v1737, 4
    %v1739 = vadd.f32 %v1737, %v1738
    %v1740 = vrot.slane %v1739, 2
    %v1741 = vadd.f32 %v1739, %v1740
    %v1742 = vrot.slane %v1741, 1
    %v1743 = vadd.f32 %v1741, %v1742
    %v1744 = vsel %vm1635, %v1709, 0.0
    %v1745 = vrot.slane %v1744, 4
    %v1746 = vadd.f32 %v1744, %v1745
    %v1747 = vrot.slane %v1746, 2
    %v1748 = vadd.f32 %v1746, %v1747
    %v1749 = vrot.slane %v1748, 1
    %v1750 = vadd.f32 %v1748, %v1749
    %v1751 = vsel %vm1635, %v1711, 0.0
    %v1752 = vrot.slane %v1751, 4
    %v1753 = vadd.f32 %v1751, %v1752
    %v1754 = vrot.slane %v1753, 2
    %v1755 = vadd.f32 %v1753, %v1754
    %v1756 = vrot.slane %v1755, 1
    %v1757 = vadd.f32 %v1755, %v1756
    %v1758 = vsel %vm1635, %v1713, 0.0
    %v1759 = vrot.slane %v1758, 4
    %v1760 = vadd.f32 %v1758, %v1759
    %v1761 = vrot.slane %v1760, 2
    %v1762 = vadd.f32 %v1760, %v1761
    %v1763 = vrot.slane %v1762, 1
    %v1764 = vadd.f32 %v1762, %v1763
    %v1765 = vsel %vm1635, %v1715, 0.0
    %v1766 = vrot.slane %v1765, 4
    %v1767 = vadd.f32 %v1765, %v1766
    %v1768 = vrot.slane %v1767, 2
    %v1769 = vadd.f32 %v1767, %v1768
    %v1770 = vrot.slane %v1769, 1
    %v1771 = vadd.f32 %v1769, %v1770
    %v1772 = vrcp.pop %v1722
    %v1773 = vrcp.pop %v1729
    %v1774 = vrcp.pop %v1736
    %v1775 = vrcp.pop %v1743
    %v1776 = vrcp.pop %v1750
    %v1777 = vrcp.pop %v1757
    %v1778 = vrcp.pop %v1764
    %v1779 = vrcp.pop %v1771
    %v1780 = vmul.f32 %v1701, %v1772
    %v1781 = vmul.f32 %v1703, %v1773
    %v1782 = vmul.f32 %v1705, %v1774
    %v1783 = vmul.f32 %v1707, %v1775
    %v1784 = vmul.f32 %v1709, %v1776
    %v1785 = vmul.f32 %v1711, %v1777
    %v1786 = vmul.f32 %v1713, %v1778
    %v1787 = vmul.f32 %v1715, %v1779
    %v1796 = vrot.slane %v1781, 4
    %v1797 = vrot.slane %v1783, 4
    %v1798 = vrot.slane %v1785, 4
    %v1799 = vrot.slane %v1787, 4
    %v1800 = vsel %vm1608, %v1780, %v1796
    %v1801 = vsel %vm1608, %v1782, %v1797
    %v1802 = vsel %vm1608, %v1784, %v1798
    %v1803 = vsel %vm1608, %v1786, %v1799
    %1808 = vst [vmem:[#allocation8] sm:$0x77] %v1800
    %1809 = vst [vmem:[#allocation8 + $0x8] sm:$0x77] %v1801
    %1810 = vst [vmem:[#allocation8 + $0x10] sm:$0x77] %v1802
    %1811 = vst [vmem:[#allocation8 + $0x18] sm:$0x77] %v1803
    %v1812 = vlog2.pop %v1722
    %v1813 = vmul.f32 %v1812, 0.6931472
    %v1814 = vlog2.pop %v1729
    %v1815 = vmul.f32 %v1814, 0.6931472
    %v1816 = vlog2.pop %v1736
    %v1817 = vmul.f32 %v1816, 0.6931472
    %v1818 = vlog2.pop %v1743
    %v1819 = vmul.f32 %v1818, 0.6931472
    %v1820 = vlog2.pop %v1750
    %v1821 = vmul.f32 %v1820, 0.6931472
    %v1822 = vlog2.pop %v1757
    %v1823 = vmul.f32 %v1822, 0.6931472
    %v1824 = vlog2.pop %v1764
    %v1825 = vmul.f32 %v1824, 0.6931472
    %v1826 = vlog2.pop %v1771
    %v1827 = vmul.f32 %v1826, 0.6931472
    %v1828 = vsub.f32 %v1692, %v1813
    %v1829 = vsub.f32 %v1693, %v1815
    %v1830 = vsub.f32 %v1694, %v1817
    %v1831 = vsub.f32 %v1695, %v1819
    %v1832 = vsub.f32 %v1696, %v1821
    %v1833 = vsub.f32 %v1697, %v1823
    %v1834 = vsub.f32 %v1698, %v1825
    %v1835 = vsub.f32 %v1699, %v1827
    %v1836 = vld [vmem:[%s1] sm:$0xff]
    %v1837 = vld [vmem:[#allocation7] sm:$0x7]
    %vm1838 = vcmask 23552
    %v1840 = vsel %vm1838, %v1837, 0
    %v1842 = vsel %vm1635, %v1780, 0
    %v1844 = vsel %vm1635, %v1781, 0
    %v1846 = vsel %vm1635, %v1782, 0
    %v1848 = vsel %vm1635, %v1783, 0
    %v1850 = vsel %vm1635, %v1784, 0
    %v1852 = vsel %vm1635, %v1785, 0
    %v1854 = vsel %vm1635, %v1786, 0
    %v1856 = vsel %vm1635, %v1787, 0
    %1858 = vmatpush.msra.mxu0 0.0
    %1859 = vmatpush.msra.mxu0 0.0
    %1860 = vmatpush.msra.mxu0 0.0
    %1861 = vmatpush.msra.mxu0 0.0
    %1862 = vmatpush.msra.mxu0 0.0
    %1863 = vmatpush.msra.mxu0 0.0
    %1864 = vmatpush.msra.mxu0 0.0
    %1865 = vmatpush.msra.mxu0 0.0
    %1866 = vmatpush.msra.mxu0 0.0
    %1867 = vmatpush.msra.mxu0 0.0
    %1868 = vmatpush.msra.mxu0 0.0
    %1869 = vmatpush.msra.mxu0 0.0
    %1870 = vmatpush.msra.mxu0 0.0
    %1871 = vmatpush.msra.mxu0 0.0
    %1872 = vmatpush.msra.mxu0 0.0
    %v1873 = vand.u32 %v1842, 4294901760
    %1874 = vmatpush.msra.mxu0 %v1873
    %v1875 = vand.u32 %v1840, 4294901760
    %v1876 = vsub.f32 %v1840, %v1875
    %v1877 = vand.u32 %v1876, 4294901760
    %v1878 = vsub.f32 %v1876, %v1877
    %v1879 = vand.u32 %v1878, 4294901760
    %1880 = vmatmul.f32.gmra.mxu0 %v1879
    %v1881 = vpop.f32.mrf.mxu0
    %v1882 = vadd.f32 0.0, %v1881
    %1883 = vdwg.mxu0
    %1884 = vmatpush.msra.mxu0 0.0
    %1885 = vmatpush.msra.mxu0 0.0
    %1886 = vmatpush.msra.mxu0 0.0
    %1887 = vmatpush.msra.mxu0 0.0
    %1888 = vmatpush.msra.mxu0 0.0
    %1889 = vmatpush.msra.mxu0 0.0
    %1890 = vmatpush.msra.mxu0 0.0
    %1891 = vmatpush.msra.mxu0 0.0
    %1892 = vmatpush.msra.mxu0 0.0
    %1893 = vmatpush.msra.mxu0 0.0
    %1894 = vmatpush.msra.mxu0 0.0
    %1895 = vmatpush.msra.mxu0 0.0
    %1896 = vmatpush.msra.mxu0 0.0
    %1897 = vmatpush.msra.mxu0 0.0
    %1898 = vmatpush.msra.mxu0 0.0
    %v1899 = vand.u32 %v1842, 4294901760
    %v1900 = vsub.f32 %v1842, %v1899
    %v1901 = vand.u32 %v1900, 4294901760
    %v1902 = vsub.f32 %v1900, %v1901
    %v1903 = vand.u32 %v1902, 4294901760
    %1904 = vmatpush.msra.mxu0 %v1903
    %v1905 = vand.u32 %v1840, 4294901760
    %1906 = vmatmul.f32.gmra.mxu0 %v1905
    %v1907 = vpop.f32.mrf.mxu0
    %v1908 = vadd.f32 %v1882, %v1907
    %1909 = vdwg.mxu0
    %1910 = vmatpush.msra.mxu0 0.0
    %1911 = vmatpush.msra.mxu0 0.0
    %1912 = vmatpush.msra.mxu0 0.0
    %1913 = vmatpush.msra.mxu0 0.0
    %1914 = vmatpush.msra.mxu0 0.0
    %1915 = vmatpush.msra.mxu0 0.0
    %1916 = vmatpush.msra.mxu0 0.0
    %1917 = vmatpush.msra.mxu0 0.0
    %1918 = vmatpush.msra.mxu0 0.0
    %1919 = vmatpush.msra.mxu0 0.0
    %1920 = vmatpush.msra.mxu0 0.0
    %1921 = vmatpush.msra.mxu0 0.0
    %1922 = vmatpush.msra.mxu0 0.0
    %1923 = vmatpush.msra.mxu0 0.0
    %1924 = vmatpush.msra.mxu0 0.0
    %v1925 = vand.u32 %v1842, 4294901760
    %v1926 = vsub.f32 %v1842, %v1925
    %1927 = vmatpush.msra.mxu0 %v1926
    %v1928 = vand.u32 %v1840, 4294901760
    %v1929 = vsub.f32 %v1840, %v1928
    %1930 = vmatmul.f32.gmra.mxu0 %v1929
    %v1931 = vpop.f32.mrf.mxu0
    %v1932 = vadd.f32 %v1908, %v1931
    %1933 = vdwg.mxu0
    %1934 = vmatpush.msra.mxu0 0.0
    %1935 = vmatpush.msra.mxu0 0.0
    %1936 = vmatpush.msra.mxu0 0.0
    %1937 = vmatpush.msra.mxu0 0.0
    %1938 = vmatpush.msra.mxu0 0.0
    %1939 = vmatpush.msra.mxu0 0.0
    %1940 = vmatpush.msra.mxu0 0.0
    %1941 = vmatpush.msra.mxu0 0.0
    %1942 = vmatpush.msra.mxu0 0.0
    %1943 = vmatpush.msra.mxu0 0.0
    %1944 = vmatpush.msra.mxu0 0.0
    %1945 = vmatpush.msra.mxu0 0.0
    %1946 = vmatpush.msra.mxu0 0.0
    %1947 = vmatpush.msra.mxu0 0.0
    %1948 = vmatpush.msra.mxu0 0.0
    %v1949 = vand.u32 %v1842, 4294901760
    %1950 = vmatpush.msra.mxu0 %v1949
    %v1951 = vand.u32 %v1840, 4294901760
    %v1952 = vsub.f32 %v1840, %v1951
    %v1953 = vand.u32 %v1952, 4294901760
    %1954 = vmatmul.f32.gmra.mxu0 %v1953
    %v1955 = vpop.f32.mrf.mxu0
    %v1956 = vadd.f32 %v1932, %v1955
    %1957 = vdwg.mxu0
    %1958 = vmatpush.msra.mxu0 0.0
    %1959 = vmatpush.msra.mxu0 0.0
    %1960 = vmatpush.msra.mxu0 0.0
    %1961 = vmatpush.msra.mxu0 0.0
    %1962 = vmatpush.msra.mxu0 0.0
    %1963 = vmatpush.msra.mxu0 0.0
    %1964 = vmatpush.msra.mxu0 0.0
    %1965 = vmatpush.msra.mxu0 0.0
    %1966 = vmatpush.msra.mxu0 0.0
    %1967 = vmatpush.msra.mxu0 0.0
    %1968 = vmatpush.msra.mxu0 0.0
    %1969 = vmatpush.msra.mxu0 0.0
    %1970 = vmatpush.msra.mxu0 0.0
    %1971 = vmatpush.msra.mxu0 0.0
    %1972 = vmatpush.msra.mxu0 0.0
    %v1973 = vand.u32 %v1842, 4294901760
    %v1974 = vsub.f32 %v1842, %v1973
    %v1975 = vand.u32 %v1974, 4294901760
    %1976 = vmatpush.msra.mxu0 %v1975
    %v1977 = vand.u32 %v1840, 4294901760
    %1978 = vmatmul.f32.gmra.mxu0 %v1977
    %v1979 = vpop.f32.mrf.mxu0
    %v1980 = vadd.f32 %v1956, %v1979
    %1981 = vdwg.mxu0
    %1982 = vmatpush.msra.mxu0 0.0
    %1983 = vmatpush.msra.mxu0 0.0
    %1984 = vmatpush.msra.mxu0 0.0
    %1985 = vmatpush.msra.mxu0 0.0
    %1986 = vmatpush.msra.mxu0 0.0
    %1987 = vmatpush.msra.mxu0 0.0
    %1988 = vmatpush.msra.mxu0 0.0
    %1989 = vmatpush.msra.mxu0 0.0
    %1990 = vmatpush.msra.mxu0 0.0
    %1991 = vmatpush.msra.mxu0 0.0
    %1992 = vmatpush.msra.mxu0 0.0
    %1993 = vmatpush.msra.mxu0 0.0
    %1994 = vmatpush.msra.mxu0 0.0
    %1995 = vmatpush.msra.mxu0 0.0
    %1996 = vmatpush.msra.mxu0 0.0
    %v1997 = vand.u32 %v1842, 4294901760
    %1998 = vmatpush.msra.mxu0 %v1997
    %v1999 = vand.u32 %v1840, 4294901760
    %2000 = vmatmul.f32.gmra.mxu0 %v1999
    %v2001 = vpop.f32.mrf.mxu0
    %v2002 = vadd.f32 %v1980, %v2001
    %2003 = vdwg.mxu0
    %2004 = vmatpush.msra.mxu0 0.0
    %2005 = vmatpush.msra.mxu0 0.0
    %2006 = vmatpush.msra.mxu0 0.0
    %2007 = vmatpush.msra.mxu0 0.0
    %2008 = vmatpush.msra.mxu0 0.0
    %2009 = vmatpush.msra.mxu0 0.0
    %2010 = vmatpush.msra.mxu0 0.0
    %2011 = vmatpush.msra.mxu0 0.0
    %2012 = vmatpush.msra.mxu0 0.0
    %2013 = vmatpush.msra.mxu0 0.0
    %2014 = vmatpush.msra.mxu0 0.0
    %2015 = vmatpush.msra.mxu0 0.0
    %2016 = vmatpush.msra.mxu0 0.0
    %2017 = vmatpush.msra.mxu0 0.0
    %2018 = vmatpush.msra.mxu0 0.0
    %v2019 = vand.u32 %v1844, 4294901760
    %2020 = vmatpush.msra.mxu0 %v2019
    %v2021 = vand.u32 %v1840, 4294901760
    %v2022 = vsub.f32 %v1840, %v2021
    %v2023 = vand.u32 %v2022, 4294901760
    %v2024 = vsub.f32 %v2022, %v2023
    %v2025 = vand.u32 %v2024, 4294901760
    %2026 = vmatmul.f32.gmra.mxu0 %v2025
    %v2027 = vpop.f32.mrf.mxu0
    %v2028 = vadd.f32 0.0, %v2027
    %2029 = vdwg.mxu0
    %2030 = vmatpush.msra.mxu0 0.0
    %2031 = vmatpush.msra.mxu0 0.0
    %2032 = vmatpush.msra.mxu0 0.0
    %2033 = vmatpush.msra.mxu0 0.0
    %2034 = vmatpush.msra.mxu0 0.0
    %2035 = vmatpush.msra.mxu0 0.0
    %2036 = vmatpush.msra.mxu0 0.0
    %2037 = vmatpush.msra.mxu0 0.0
    %2038 = vmatpush.msra.mxu0 0.0
    %2039 = vmatpush.msra.mxu0 0.0
    %2040 = vmatpush.msra.mxu0 0.0
    %2041 = vmatpush.msra.mxu0 0.0
    %2042 = vmatpush.msra.mxu0 0.0
    %2043 = vmatpush.msra.mxu0 0.0
    %2044 = vmatpush.msra.mxu0 0.0
    %v2045 = vand.u32 %v1844, 4294901760
    %v2046 = vsub.f32 %v1844, %v2045
    %v2047 = vand.u32 %v2046, 4294901760
    %v2048 = vsub.f32 %v2046, %v2047
    %v2049 = vand.u32 %v2048, 4294901760
    %2050 = vmatpush.msra.mxu0 %v2049
    %v2051 = vand.u32 %v1840, 4294901760
    %2052 = vmatmul.f32.gmra.mxu0 %v2051
    %v2053 = vpop.f32.mrf.mxu0
    %v2054 = vadd.f32 %v2028, %v2053
    %2055 = vdwg.mxu0
    %2056 = vmatpush.msra.mxu0 0.0
    %2057 = vmatpush.msra.mxu0 0.0
    %2058 = vmatpush.msra.mxu0 0.0
    %2059 = vmatpush.msra.mxu0 0.0
    %2060 = vmatpush.msra.mxu0 0.0
    %2061 = vmatpush.msra.mxu0 0.0
    %2062 = vmatpush.msra.mxu0 0.0
    %2063 = vmatpush.msra.mxu0 0.0
    %2064 = vmatpush.msra.mxu0 0.0
    %2065 = vmatpush.msra.mxu0 0.0
    %2066 = vmatpush.msra.mxu0 0.0
    %2067 = vmatpush.msra.mxu0 0.0
    %2068 = vmatpush.msra.mxu0 0.0
    %2069 = vmatpush.msra.mxu0 0.0
    %2070 = vmatpush.msra.mxu0 0.0
    %v2071 = vand.u32 %v1844, 4294901760
    %v2072 = vsub.f32 %v1844, %v2071
    %2073 = vmatpush.msra.mxu0 %v2072
    %v2074 = vand.u32 %v1840, 4294901760
    %v2075 = vsub.f32 %v1840, %v2074
    %2076 = vmatmul.f32.gmra.mxu0 %v2075
    %v2077 = vpop.f32.mrf.mxu0
    %v2078 = vadd.f32 %v2054, %v2077
    %2079 = vdwg.mxu0
    %2080 = vmatpush.msra.mxu0 0.0
    %2081 = vmatpush.msra.mxu0 0.0
    %2082 = vmatpush.msra.mxu0 0.0
    %2083 = vmatpush.msra.mxu0 0.0
    %2084 = vmatpush.msra.mxu0 0.0
    %2085 = vmatpush.msra.mxu0 0.0
    %2086 = vmatpush.msra.mxu0 0.0
    %2087 = vmatpush.msra.mxu0 0.0
    %2088 = vmatpush.msra.mxu0 0.0
    %2089 = vmatpush.msra.mxu0 0.0
    %2090 = vmatpush.msra.mxu0 0.0
    %2091 = vmatpush.msra.mxu0 0.0
    %2092 = vmatpush.msra.mxu0 0.0
    %2093 = vmatpush.msra.mxu0 0.0
    %2094 = vmatpush.msra.mxu0 0.0
    %v2095 = vand.u32 %v1844, 4294901760
    %2096 = vmatpush.msra.mxu0 %v2095
    %v2097 = vand.u32 %v1840, 4294901760
    %v2098 = vsub.f32 %v1840, %v2097
    %v2099 = vand.u32 %v2098, 4294901760
    %2100 = vmatmul.f32.gmra.mxu0 %v2099
    %v2101 = vpop.f32.mrf.mxu0
    %v2102 = vadd.f32 %v2078, %v2101
    %2103 = vdwg.mxu0
    %2104 = vmatpush.msra.mxu0 0.0
    %2105 = vmatpush.msra.mxu0 0.0
    %2106 = vmatpush.msra.mxu0 0.0
    %2107 = vmatpush.msra.mxu0 0.0
    %2108 = vmatpush.msra.mxu0 0.0
    %2109 = vmatpush.msra.mxu0 0.0
    %2110 = vmatpush.msra.mxu0 0.0
    %2111 = vmatpush.msra.mxu0 0.0
    %2112 = vmatpush.msra.mxu0 0.0
    %2113 = vmatpush.msra.mxu0 0.0
    %2114 = vmatpush.msra.mxu0 0.0
    %2115 = vmatpush.msra.mxu0 0.0
    %2116 = vmatpush.msra.mxu0 0.0
    %2117 = vmatpush.msra.mxu0 0.0
    %2118 = vmatpush.msra.mxu0 0.0
    %v2119 = vand.u32 %v1844, 4294901760
    %v2120 = vsub.f32 %v1844, %v2119
    %v2121 = vand.u32 %v2120, 4294901760
    %2122 = vmatpush.msra.mxu0 %v2121
    %v2123 = vand.u32 %v1840, 4294901760
    %2124 = vmatmul.f32.gmra.mxu0 %v2123
    %v2125 = vpop.f32.mrf.mxu0
    %v2126 = vadd.f32 %v2102, %v2125
    %2127 = vdwg.mxu0
    %2128 = vmatpush.msra.mxu0 0.0
    %2129 = vmatpush.msra.mxu0 0.0
    %2130 = vmatpush.msra.mxu0 0.0
    %2131 = vmatpush.msra.mxu0 0.0
    %2132 = vmatpush.msra.mxu0 0.0
    %2133 = vmatpush.msra.mxu0 0.0
    %2134 = vmatpush.msra.mxu0 0.0
    %2135 = vmatpush.msra.mxu0 0.0
    %2136 = vmatpush.msra.mxu0 0.0
    %2137 = vmatpush.msra.mxu0 0.0
    %2138 = vmatpush.msra.mxu0 0.0
    %2139 = vmatpush.msra.mxu0 0.0
    %2140 = vmatpush.msra.mxu0 0.0
    %2141 = vmatpush.msra.mxu0 0.0
    %2142 = vmatpush.msra.mxu0 0.0
    %v2143 = vand.u32 %v1844, 4294901760
    %2144 = vmatpush.msra.mxu0 %v2143
    %v2145 = vand.u32 %v1840, 4294901760
    %2146 = vmatmul.f32.gmra.mxu0 %v2145
    %v2147 = vpop.f32.mrf.mxu0
    %v2148 = vadd.f32 %v2126, %v2147
    %2149 = vdwg.mxu0
    %2150 = vmatpush.msra.mxu0 0.0
    %2151 = vmatpush.msra.mxu0 0.0
    %2152 = vmatpush.msra.mxu0 0.0
    %2153 = vmatpush.msra.mxu0 0.0
    %2154 = vmatpush.msra.mxu0 0.0
    %2155 = vmatpush.msra.mxu0 0.0
    %2156 = vmatpush.msra.mxu0 0.0
    %2157 = vmatpush.msra.mxu0 0.0
    %2158 = vmatpush.msra.mxu0 0.0
    %2159 = vmatpush.msra.mxu0 0.0
    %2160 = vmatpush.msra.mxu0 0.0
    %2161 = vmatpush.msra.mxu0 0.0
    %2162 = vmatpush.msra.mxu0 0.0
    %2163 = vmatpush.msra.mxu0 0.0
    %2164 = vmatpush.msra.mxu0 0.0
    %v2165 = vand.u32 %v1846, 4294901760
    %2166 = vmatpush.msra.mxu0 %v2165
    %v2167 = vand.u32 %v1840, 4294901760
    %v2168 = vsub.f32 %v1840, %v2167
    %v2169 = vand.u32 %v2168, 4294901760
    %v2170 = vsub.f32 %v2168, %v2169
    %v2171 = vand.u32 %v2170, 4294901760
    %2172 = vmatmul.f32.gmra.mxu0 %v2171
    %v2173 = vpop.f32.mrf.mxu0
    %v2174 = vadd.f32 0.0, %v2173
    %2175 = vdwg.mxu0
    %2176 = vmatpush.msra.mxu0 0.0
    %2177 = vmatpush.msra.mxu0 0.0
    %2178 = vmatpush.msra.mxu0 0.0
    %2179 = vmatpush.msra.mxu0 0.0
    %2180 = vmatpush.msra.mxu0 0.0
    %2181 = vmatpush.msra.mxu0 0.0
    %2182 = vmatpush.msra.mxu0 0.0
    %2183 = vmatpush.msra.mxu0 0.0
    %2184 = vmatpush.msra.mxu0 0.0
    %2185 = vmatpush.msra.mxu0 0.0
    %2186 = vmatpush.msra.mxu0 0.0
    %2187 = vmatpush.msra.mxu0 0.0
    %2188 = vmatpush.msra.mxu0 0.0
    %2189 = vmatpush.msra.mxu0 0.0
    %2190 = vmatpush.msra.mxu0 0.0
    %v2191 = vand.u32 %v1846, 4294901760
    %v2192 = vsub.f32 %v1846, %v2191
    %v2193 = vand.u32 %v2192, 4294901760
    %v2194 = vsub.f32 %v2192, %v2193
    %v2195 = vand.u32 %v2194, 4294901760
    %2196 = vmatpush.msra.mxu0 %v2195
    %v2197 = vand.u32 %v1840, 4294901760
    %2198 = vmatmul.f32.gmra.mxu0 %v2197
    %v2199 = vpop.f32.mrf.mxu0
    %v2200 = vadd.f32 %v2174, %v2199
    %2201 = vdwg.mxu0
    %2202 = vmatpush.msra.mxu0 0.0
    %2203 = vmatpush.msra.mxu0 0.0
    %2204 = vmatpush.msra.mxu0 0.0
    %2205 = vmatpush.msra.mxu0 0.0
    %2206 = vmatpush.msra.mxu0 0.0
    %2207 = vmatpush.msra.mxu0 0.0
    %2208 = vmatpush.msra.mxu0 0.0
    %2209 = vmatpush.msra.mxu0 0.0
    %2210 = vmatpush.msra.mxu0 0.0
    %2211 = vmatpush.msra.mxu0 0.0
    %2212 = vmatpush.msra.mxu0 0.0
    %2213 = vmatpush.msra.mxu0 0.0
    %2214 = vmatpush.msra.mxu0 0.0
    %2215 = vmatpush.msra.mxu0 0.0
    %2216 = vmatpush.msra.mxu0 0.0
    %v2217 = vand.u32 %v1846, 4294901760
    %v2218 = vsub.f32 %v1846, %v2217
    %2219 = vmatpush.msra.mxu0 %v2218
    %v2220 = vand.u32 %v1840, 4294901760
    %v2221 = vsub.f32 %v1840, %v2220
    %2222 = vmatmul.f32.gmra.mxu0 %v2221
    %v2223 = vpop.f32.mrf.mxu0
    %v2224 = vadd.f32 %v2200, %v2223
    %2225 = vdwg.mxu0
    %2226 = vmatpush.msra.mxu0 0.0
    %2227 = vmatpush.msra.mxu0 0.0
    %2228 = vmatpush.msra.mxu0 0.0
    %2229 = vmatpush.msra.mxu0 0.0
    %2230 = vmatpush.msra.mxu0 0.0
    %2231 = vmatpush.msra.mxu0 0.0
    %2232 = vmatpush.msra.mxu0 0.0
    %2233 = vmatpush.msra.mxu0 0.0
    %2234 = vmatpush.msra.mxu0 0.0
    %2235 = vmatpush.msra.mxu0 0.0
    %2236 = vmatpush.msra.mxu0 0.0
    %2237 = vmatpush.msra.mxu0 0.0
    %2238 = vmatpush.msra.mxu0 0.0
    %2239 = vmatpush.msra.mxu0 0.0
    %2240 = vmatpush.msra.mxu0 0.0
    %v2241 = vand.u32 %v1846, 4294901760
    %2242 = vmatpush.msra.mxu0 %v2241
    %v2243 = vand.u32 %v1840, 4294901760
    %v2244 = vsub.f32 %v1840, %v2243
    %v2245 = vand.u32 %v2244, 4294901760
    %2246 = vmatmul.f32.gmra.mxu0 %v2245
    %v2247 = vpop.f32.mrf.mxu0
    %v2248 = vadd.f32 %v2224, %v2247
    %2249 = vdwg.mxu0
    %2250 = vmatpush.msra.mxu0 0.0
    %2251 = vmatpush.msra.mxu0 0.0
    %2252 = vmatpush.msra.mxu0 0.0
    %2253 = vmatpush.msra.mxu0 0.0
    %2254 = vmatpush.msra.mxu0 0.0
    %2255 = vmatpush.msra.mxu0 0.0
    %2256 = vmatpush.msra.mxu0 0.0
    %2257 = vmatpush.msra.mxu0 0.0
    %2258 = vmatpush.msra.mxu0 0.0
    %2259 = vmatpush.msra.mxu0 0.0
    %2260 = vmatpush.msra.mxu0 0.0
    %2261 = vmatpush.msra.mxu0 0.0
    %2262 = vmatpush.msra.mxu0 0.0
    %2263 = vmatpush.msra.mxu0 0.0
    %2264 = vmatpush.msra.mxu0 0.0
    %v2265 = vand.u32 %v1846, 4294901760
    %v2266 = vsub.f32 %v1846, %v2265
    %v2267 = vand.u32 %v2266, 4294901760
    %2268 = vmatpush.msra.mxu0 %v2267
    %v2269 = vand.u32 %v1840, 4294901760
    %2270 = vmatmul.f32.gmra.mxu0 %v2269
    %v2271 = vpop.f32.mrf.mxu0
    %v2272 = vadd.f32 %v2248, %v2271
    %2273 = vdwg.mxu0
    %2274 = vmatpush.msra.mxu0 0.0
    %2275 = vmatpush.msra.mxu0 0.0
    %2276 = vmatpush.msra.mxu0 0.0
    %2277 = vmatpush.msra.mxu0 0.0
    %2278 = vmatpush.msra.mxu0 0.0
    %2279 = vmatpush.msra.mxu0 0.0
    %2280 = vmatpush.msra.mxu0 0.0
    %2281 = vmatpush.msra.mxu0 0.0
    %2282 = vmatpush.msra.mxu0 0.0
    %2283 = vmatpush.msra.mxu0 0.0
    %2284 = vmatpush.msra.mxu0 0.0
    %2285 = vmatpush.msra.mxu0 0.0
    %2286 = vmatpush.msra.mxu0 0.0
    %2287 = vmatpush.msra.mxu0 0.0
    %2288 = vmatpush.msra.mxu0 0.0
    %v2289 = vand.u32 %v1846, 4294901760
    %2290 = vmatpush.msra.mxu0 %v2289
    %v2291 = vand.u32 %v1840, 4294901760
    %2292 = vmatmul.f32.gmra.mxu0 %v2291
    %v2293 = vpop.f32.mrf.mxu0
    %v2294 = vadd.f32 %v2272, %v2293
    %2295 = vdwg.mxu0
    %2296 = vmatpush.msra.mxu0 0.0
    %2297 = vmatpush.msra.mxu0 0.0
    %2298 = vmatpush.msra.mxu0 0.0
    %2299 = vmatpush.msra.mxu0 0.0
    %2300 = vmatpush.msra.mxu0 0.0
    %2301 = vmatpush.msra.mxu0 0.0
    %2302 = vmatpush.msra.mxu0 0.0
    %2303 = vmatpush.msra.mxu0 0.0
    %2304 = vmatpush.msra.mxu0 0.0
    %2305 = vmatpush.msra.mxu0 0.0
    %2306 = vmatpush.msra.mxu0 0.0
    %2307 = vmatpush.msra.mxu0 0.0
    %2308 = vmatpush.msra.mxu0 0.0
    %2309 = vmatpush.msra.mxu0 0.0
    %2310 = vmatpush.msra.mxu0 0.0
    %v2311 = vand.u32 %v1848, 4294901760
    %2312 = vmatpush.msra.mxu0 %v2311
    %v2313 = vand.u32 %v1840, 4294901760
    %v2314 = vsub.f32 %v1840, %v2313
    %v2315 = vand.u32 %v2314, 4294901760
    %v2316 = vsub.f32 %v2314, %v2315
    %v2317 = vand.u32 %v2316, 4294901760
    %2318 = vmatmul.f32.gmra.mxu0 %v2317
    %v2319 = vpop.f32.mrf.mxu0
    %v2320 = vadd.f32 0.0, %v2319
    %2321 = vdwg.mxu0
    %2322 = vmatpush.msra.mxu0 0.0
    %2323 = vmatpush.msra.mxu0 0.0
    %2324 = vmatpush.msra.mxu0 0.0
    %2325 = vmatpush.msra.mxu0 0.0
    %2326 = vmatpush.msra.mxu0 0.0
    %2327 = vmatpush.msra.mxu0 0.0
    %2328 = vmatpush.msra.mxu0 0.0
    %2329 = vmatpush.msra.mxu0 0.0
    %2330 = vmatpush.msra.mxu0 0.0
    %2331 = vmatpush.msra.mxu0 0.0
    %2332 = vmatpush.msra.mxu0 0.0
    %2333 = vmatpush.msra.mxu0 0.0
    %2334 = vmatpush.msra.mxu0 0.0
    %2335 = vmatpush.msra.mxu0 0.0
    %2336 = vmatpush.msra.mxu0 0.0
    %v2337 = vand.u32 %v1848, 4294901760
    %v2338 = vsub.f32 %v1848, %v2337
    %v2339 = vand.u32 %v2338, 4294901760
    %v2340 = vsub.f32 %v2338, %v2339
    %v2341 = vand.u32 %v2340, 4294901760
    %2342 = vmatpush.msra.mxu0 %v2341
    %v2343 = vand.u32 %v1840, 4294901760
    %2344 = vmatmul.f32.gmra.mxu0 %v2343
    %v2345 = vpop.f32.mrf.mxu0
    %v2346 = vadd.f32 %v2320, %v2345
    %2347 = vdwg.mxu0
    %2348 = vmatpush.msra.mxu0 0.0
    %2349 = vmatpush.msra.mxu0 0.0
    %2350 = vmatpush.msra.mxu0 0.0
    %2351 = vmatpush.msra.mxu0 0.0
    %2352 = vmatpush.msra.mxu0 0.0
    %2353 = vmatpush.msra.mxu0 0.0
    %2354 = vmatpush.msra.mxu0 0.0
    %2355 = vmatpush.msra.mxu0 0.0
    %2356 = vmatpush.msra.mxu0 0.0
    %2357 = vmatpush.msra.mxu0 0.0
    %2358 = vmatpush.msra.mxu0 0.0
    %2359 = vmatpush.msra.mxu0 0.0
    %2360 = vmatpush.msra.mxu0 0.0
    %2361 = vmatpush.msra.mxu0 0.0
    %2362 = vmatpush.msra.mxu0 0.0
    %v2363 = vand.u32 %v1848, 4294901760
    %v2364 = vsub.f32 %v1848, %v2363
    %2365 = vmatpush.msra.mxu0 %v2364
    %v2366 = vand.u32 %v1840, 4294901760
    %v2367 = vsub.f32 %v1840, %v2366
    %2368 = vmatmul.f32.gmra.mxu0 %v2367
    %v2369 = vpop.f32.mrf.mxu0
    %v2370 = vadd.f32 %v2346, %v2369
    %2371 = vdwg.mxu0
    %2372 = vmatpush.msra.mxu0 0.0
    %2373 = vmatpush.msra.mxu0 0.0
    %2374 = vmatpush.msra.mxu0 0.0
    %2375 = vmatpush.msra.mxu0 0.0
    %2376 = vmatpush.msra.mxu0 0.0
    %2377 = vmatpush.msra.mxu0 0.0
    %2378 = vmatpush.msra.mxu0 0.0
    %2379 = vmatpush.msra.mxu0 0.0
    %2380 = vmatpush.msra.mxu0 0.0
    %2381 = vmatpush.msra.mxu0 0.0
    %2382 = vmatpush.msra.mxu0 0.0
    %2383 = vmatpush.msra.mxu0 0.0
    %2384 = vmatpush.msra.mxu0 0.0
    %2385 = vmatpush.msra.mxu0 0.0
    %2386 = vmatpush.msra.mxu0 0.0
    %v2387 = vand.u32 %v1848, 4294901760
    %2388 = vmatpush.msra.mxu0 %v2387
    %v2389 = vand.u32 %v1840, 4294901760
    %v2390 = vsub.f32 %v1840, %v2389
    %v2391 = vand.u32 %v2390, 4294901760
    %2392 = vmatmul.f32.gmra.mxu0 %v2391
    %v2393 = vpop.f32.mrf.mxu0
    %v2394 = vadd.f32 %v2370, %v2393
    %2395 = vdwg.mxu0
    %2396 = vmatpush.msra.mxu0 0.0
    %2397 = vmatpush.msra.mxu0 0.0
    %2398 = vmatpush.msra.mxu0 0.0
    %2399 = vmatpush.msra.mxu0 0.0
    %2400 = vmatpush.msra.mxu0 0.0
    %2401 = vmatpush.msra.mxu0 0.0
    %2402 = vmatpush.msra.mxu0 0.0
    %2403 = vmatpush.msra.mxu0 0.0
    %2404 = vmatpush.msra.mxu0 0.0
    %2405 = vmatpush.msra.mxu0 0.0
    %2406 = vmatpush.msra.mxu0 0.0
    %2407 = vmatpush.msra.mxu0 0.0
    %2408 = vmatpush.msra.mxu0 0.0
    %2409 = vmatpush.msra.mxu0 0.0
    %2410 = vmatpush.msra.mxu0 0.0
    %v2411 = vand.u32 %v1848, 4294901760
    %v2412 = vsub.f32 %v1848, %v2411
    %v2413 = vand.u32 %v2412, 4294901760
    %2414 = vmatpush.msra.mxu0 %v2413
    %v2415 = vand.u32 %v1840, 4294901760
    %2416 = vmatmul.f32.gmra.mxu0 %v2415
    %v2417 = vpop.f32.mrf.mxu0
    %v2418 = vadd.f32 %v2394, %v2417
    %2419 = vdwg.mxu0
    %2420 = vmatpush.msra.mxu0 0.0
    %2421 = vmatpush.msra.mxu0 0.0
    %2422 = vmatpush.msra.mxu0 0.0
    %2423 = vmatpush.msra.mxu0 0.0
    %2424 = vmatpush.msra.mxu0 0.0
    %2425 = vmatpush.msra.mxu0 0.0
    %2426 = vmatpush.msra.mxu0 0.0
    %2427 = vmatpush.msra.mxu0 0.0
    %2428 = vmatpush.msra.mxu0 0.0
    %2429 = vmatpush.msra.mxu0 0.0
    %2430 = vmatpush.msra.mxu0 0.0
    %2431 = vmatpush.msra.mxu0 0.0
    %2432 = vmatpush.msra.mxu0 0.0
    %2433 = vmatpush.msra.mxu0 0.0
    %2434 = vmatpush.msra.mxu0 0.0
    %v2435 = vand.u32 %v1848, 4294901760
    %2436 = vmatpush.msra.mxu0 %v2435
    %v2437 = vand.u32 %v1840, 4294901760
    %2438 = vmatmul.f32.gmra.mxu0 %v2437
    %v2439 = vpop.f32.mrf.mxu0
    %v2440 = vadd.f32 %v2418, %v2439
    %2441 = vdwg.mxu0
    %2442 = vmatpush.msra.mxu0 0.0
    %2443 = vmatpush.msra.mxu0 0.0
    %2444 = vmatpush.msra.mxu0 0.0
    %2445 = vmatpush.msra.mxu0 0.0
    %2446 = vmatpush.msra.mxu0 0.0
    %2447 = vmatpush.msra.mxu0 0.0
    %2448 = vmatpush.msra.mxu0 0.0
    %2449 = vmatpush.msra.mxu0 0.0
    %2450 = vmatpush.msra.mxu0 0.0
    %2451 = vmatpush.msra.mxu0 0.0
    %2452 = vmatpush.msra.mxu0 0.0
    %2453 = vmatpush.msra.mxu0 0.0
    %2454 = vmatpush.msra.mxu0 0.0
    %2455 = vmatpush.msra.mxu0 0.0
    %2456 = vmatpush.msra.mxu0 0.0
    %v2457 = vand.u32 %v1850, 4294901760
    %2458 = vmatpush.msra.mxu0 %v2457
    %v2459 = vand.u32 %v1840, 4294901760
    %v2460 = vsub.f32 %v1840, %v2459
    %v2461 = vand.u32 %v2460, 4294901760
    %v2462 = vsub.f32 %v2460, %v2461
    %v2463 = vand.u32 %v2462, 4294901760
    %2464 = vmatmul.f32.gmra.mxu0 %v2463
    %v2465 = vpop.f32.mrf.mxu0
    %v2466 = vadd.f32 0.0, %v2465
    %2467 = vdwg.mxu0
    %2468 = vmatpush.msra.mxu0 0.0
    %2469 = vmatpush.msra.mxu0 0.0
    %2470 = vmatpush.msra.mxu0 0.0
    %2471 = vmatpush.msra.mxu0 0.0
    %2472 = vmatpush.msra.mxu0 0.0
    %2473 = vmatpush.msra.mxu0 0.0
    %2474 = vmatpush.msra.mxu0 0.0
    %2475 = vmatpush.msra.mxu0 0.0
    %2476 = vmatpush.msra.mxu0 0.0
    %2477 = vmatpush.msra.mxu0 0.0
    %2478 = vmatpush.msra.mxu0 0.0
    %2479 = vmatpush.msra.mxu0 0.0
    %2480 = vmatpush.msra.mxu0 0.0
    %2481 = vmatpush.msra.mxu0 0.0
    %2482 = vmatpush.msra.mxu0 0.0
    %v2483 = vand.u32 %v1850, 4294901760
    %v2484 = vsub.f32 %v1850, %v2483
    %v2485 = vand.u32 %v2484, 4294901760
    %v2486 = vsub.f32 %v2484, %v2485
    %v2487 = vand.u32 %v2486, 4294901760
    %2488 = vmatpush.msra.mxu0 %v2487
    %v2489 = vand.u32 %v1840, 4294901760
    %2490 = vmatmul.f32.gmra.mxu0 %v2489
    %v2491 = vpop.f32.mrf.mxu0
    %v2492 = vadd.f32 %v2466, %v2491
    %2493 = vdwg.mxu0
    %2494 = vmatpush.msra.mxu0 0.0
    %2495 = vmatpush.msra.mxu0 0.0
    %2496 = vmatpush.msra.mxu0 0.0
    %2497 = vmatpush.msra.mxu0 0.0
    %2498 = vmatpush.msra.mxu0 0.0
    %2499 = vmatpush.msra.mxu0 0.0
    %2500 = vmatpush.msra.mxu0 0.0
    %2501 = vmatpush.msra.mxu0 0.0
    %2502 = vmatpush.msra.mxu0 0.0
    %2503 = vmatpush.msra.mxu0 0.0
    %2504 = vmatpush.msra.mxu0 0.0
    %2505 = vmatpush.msra.mxu0 0.0
    %2506 = vmatpush.msra.mxu0 0.0
    %2507 = vmatpush.msra.mxu0 0.0
    %2508 = vmatpush.msra.mxu0 0.0
    %v2509 = vand.u32 %v1850, 4294901760
    %v2510 = vsub.f32 %v1850, %v2509
    %2511 = vmatpush.msra.mxu0 %v2510
    %v2512 = vand.u32 %v1840, 4294901760
    %v2513 = vsub.f32 %v1840, %v2512
    %2514 = vmatmul.f32.gmra.mxu0 %v2513
    %v2515 = vpop.f32.mrf.mxu0
    %v2516 = vadd.f32 %v2492, %v2515
    %2517 = vdwg.mxu0
    %2518 = vmatpush.msra.mxu0 0.0
    %2519 = vmatpush.msra.mxu0 0.0
    %2520 = vmatpush.msra.mxu0 0.0
    %2521 = vmatpush.msra.mxu0 0.0
    %2522 = vmatpush.msra.mxu0 0.0
    %2523 = vmatpush.msra.mxu0 0.0
    %2524 = vmatpush.msra.mxu0 0.0
    %2525 = vmatpush.msra.mxu0 0.0
    %2526 = vmatpush.msra.mxu0 0.0
    %2527 = vmatpush.msra.mxu0 0.0
    %2528 = vmatpush.msra.mxu0 0.0
    %2529 = vmatpush.msra.mxu0 0.0
    %2530 = vmatpush.msra.mxu0 0.0
    %2531 = vmatpush.msra.mxu0 0.0
    %2532 = vmatpush.msra.mxu0 0.0
    %v2533 = vand.u32 %v1850, 4294901760
    %2534 = vmatpush.msra.mxu0 %v2533
    %v2535 = vand.u32 %v1840, 4294901760
    %v2536 = vsub.f32 %v1840, %v2535
    %v2537 = vand.u32 %v2536, 4294901760
    %2538 = vmatmul.f32.gmra.mxu0 %v2537
    %v2539 = vpop.f32.mrf.mxu0
    %v2540 = vadd.f32 %v2516, %v2539
    %2541 = vdwg.mxu0
    %2542 = vmatpush.msra.mxu0 0.0
    %2543 = vmatpush.msra.mxu0 0.0
    %2544 = vmatpush.msra.mxu0 0.0
    %2545 = vmatpush.msra.mxu0 0.0
    %2546 = vmatpush.msra.mxu0 0.0
    %2547 = vmatpush.msra.mxu0 0.0
    %2548 = vmatpush.msra.mxu0 0.0
    %2549 = vmatpush.msra.mxu0 0.0
    %2550 = vmatpush.msra.mxu0 0.0
    %2551 = vmatpush.msra.mxu0 0.0
    %2552 = vmatpush.msra.mxu0 0.0
    %2553 = vmatpush.msra.mxu0 0.0
    %2554 = vmatpush.msra.mxu0 0.0
    %2555 = vmatpush.msra.mxu0 0.0
    %2556 = vmatpush.msra.mxu0 0.0
    %v2557 = vand.u32 %v1850, 4294901760
    %v2558 = vsub.f32 %v1850, %v2557
    %v2559 = vand.u32 %v2558, 4294901760
    %2560 = vmatpush.msra.mxu0 %v2559
    %v2561 = vand.u32 %v1840, 4294901760
    %2562 = vmatmul.f32.gmra.mxu0 %v2561
    %v2563 = vpop.f32.mrf.mxu0
    %v2564 = vadd.f32 %v2540, %v2563
    %2565 = vdwg.mxu0
    %2566 = vmatpush.msra.mxu0 0.0
    %2567 = vmatpush.msra.mxu0 0.0
    %2568 = vmatpush.msra.mxu0 0.0
    %2569 = vmatpush.msra.mxu0 0.0
    %2570 = vmatpush.msra.mxu0 0.0
    %2571 = vmatpush.msra.mxu0 0.0
    %2572 = vmatpush.msra.mxu0 0.0
    %2573 = vmatpush.msra.mxu0 0.0
    %2574 = vmatpush.msra.mxu0 0.0
    %2575 = vmatpush.msra.mxu0 0.0
    %2576 = vmatpush.msra.mxu0 0.0
    %2577 = vmatpush.msra.mxu0 0.0
    %2578 = vmatpush.msra.mxu0 0.0
    %2579 = vmatpush.msra.mxu0 0.0
    %2580 = vmatpush.msra.mxu0 0.0
    %v2581 = vand.u32 %v1850, 4294901760
    %2582 = vmatpush.msra.mxu0 %v2581
    %v2583 = vand.u32 %v1840, 4294901760
    %2584 = vmatmul.f32.gmra.mxu0 %v2583
    %v2585 = vpop.f32.mrf.mxu0
    %v2586 = vadd.f32 %v2564, %v2585
    %2587 = vdwg.mxu0
    %2588 = vmatpush.msra.mxu0 0.0
    %2589 = vmatpush.msra.mxu0 0.0
    %2590 = vmatpush.msra.mxu0 0.0
    %2591 = vmatpush.msra.mxu0 0.0
    %2592 = vmatpush.msra.mxu0 0.0
    %2593 = vmatpush.msra.mxu0 0.0
    %2594 = vmatpush.msra.mxu0 0.0
    %2595 = vmatpush.msra.mxu0 0.0
    %2596 = vmatpush.msra.mxu0 0.0
    %2597 = vmatpush.msra.mxu0 0.0
    %2598 = vmatpush.msra.mxu0 0.0
    %2599 = vmatpush.msra.mxu0 0.0
    %2600 = vmatpush.msra.mxu0 0.0
    %2601 = vmatpush.msra.mxu0 0.0
    %2602 = vmatpush.msra.mxu0 0.0
    %v2603 = vand.u32 %v1852, 4294901760
    %2604 = vmatpush.msra.mxu0 %v2603
    %v2605 = vand.u32 %v1840, 4294901760
    %v2606 = vsub.f32 %v1840, %v2605
    %v2607 = vand.u32 %v2606, 4294901760
    %v2608 = vsub.f32 %v2606, %v2607
    %v2609 = vand.u32 %v2608, 4294901760
    %2610 = vmatmul.f32.gmra.mxu0 %v2609
    %v2611 = vpop.f32.mrf.mxu0
    %v2612 = vadd.f32 0.0, %v2611
    %2613 = vdwg.mxu0
    %2614 = vmatpush.msra.mxu0 0.0
    %2615 = vmatpush.msra.mxu0 0.0
    %2616 = vmatpush.msra.mxu0 0.0
    %2617 = vmatpush.msra.mxu0 0.0
    %2618 = vmatpush.msra.mxu0 0.0
    %2619 = vmatpush.msra.mxu0 0.0
    %2620 = vmatpush.msra.mxu0 0.0
    %2621 = vmatpush.msra.mxu0 0.0
    %2622 = vmatpush.msra.mxu0 0.0
    %2623 = vmatpush.msra.mxu0 0.0
    %2624 = vmatpush.msra.mxu0 0.0
    %2625 = vmatpush.msra.mxu0 0.0
    %2626 = vmatpush.msra.mxu0 0.0
    %2627 = vmatpush.msra.mxu0 0.0
    %2628 = vmatpush.msra.mxu0 0.0
    %v2629 = vand.u32 %v1852, 4294901760
    %v2630 = vsub.f32 %v1852, %v2629
    %v2631 = vand.u32 %v2630, 4294901760
    %v2632 = vsub.f32 %v2630, %v2631
    %v2633 = vand.u32 %v2632, 4294901760
    %2634 = vmatpush.msra.mxu0 %v2633
    %v2635 = vand.u32 %v1840, 4294901760
    %2636 = vmatmul.f32.gmra.mxu0 %v2635
    %v2637 = vpop.f32.mrf.mxu0
    %v2638 = vadd.f32 %v2612, %v2637
    %2639 = vdwg.mxu0
    %2640 = vmatpush.msra.mxu0 0.0
    %2641 = vmatpush.msra.mxu0 0.0
    %2642 = vmatpush.msra.mxu0 0.0
    %2643 = vmatpush.msra.mxu0 0.0
    %2644 = vmatpush.msra.mxu0 0.0
    %2645 = vmatpush.msra.mxu0 0.0
    %2646 = vmatpush.msra.mxu0 0.0
    %2647 = vmatpush.msra.mxu0 0.0
    %2648 = vmatpush.msra.mxu0 0.0
    %2649 = vmatpush.msra.mxu0 0.0
    %2650 = vmatpush.msra.mxu0 0.0
    %2651 = vmatpush.msra.mxu0 0.0
    %2652 = vmatpush.msra.mxu0 0.0
    %2653 = vmatpush.msra.mxu0 0.0
    %2654 = vmatpush.msra.mxu0 0.0
    %v2655 = vand.u32 %v1852, 4294901760
    %v2656 = vsub.f32 %v1852, %v2655
    %2657 = vmatpush.msra.mxu0 %v2656
    %v2658 = vand.u32 %v1840, 4294901760
    %v2659 = vsub.f32 %v1840, %v2658
    %2660 = vmatmul.f32.gmra.mxu0 %v2659
    %v2661 = vpop.f32.mrf.mxu0
    %v2662 = vadd.f32 %v2638, %v2661
    %2663 = vdwg.mxu0
    %2664 = vmatpush.msra.mxu0 0.0
    %2665 = vmatpush.msra.mxu0 0.0
    %2666 = vmatpush.msra.mxu0 0.0
    %2667 = vmatpush.msra.mxu0 0.0
    %2668 = vmatpush.msra.mxu0 0.0
    %2669 = vmatpush.msra.mxu0 0.0
    %2670 = vmatpush.msra.mxu0 0.0
    %2671 = vmatpush.msra.mxu0 0.0
    %2672 = vmatpush.msra.mxu0 0.0
    %2673 = vmatpush.msra.mxu0 0.0
    %2674 = vmatpush.msra.mxu0 0.0
    %2675 = vmatpush.msra.mxu0 0.0
    %2676 = vmatpush.msra.mxu0 0.0
    %2677 = vmatpush.msra.mxu0 0.0
    %2678 = vmatpush.msra.mxu0 0.0
    %v2679 = vand.u32 %v1852, 4294901760
    %2680 = vmatpush.msra.mxu0 %v2679
    %v2681 = vand.u32 %v1840, 4294901760
    %v2682 = vsub.f32 %v1840, %v2681
    %v2683 = vand.u32 %v2682, 4294901760
    %2684 = vmatmul.f32.gmra.mxu0 %v2683
    %v2685 = vpop.f32.mrf.mxu0
    %v2686 = vadd.f32 %v2662, %v2685
    %2687 = vdwg.mxu0
    %2688 = vmatpush.msra.mxu0 0.0
    %2689 = vmatpush.msra.mxu0 0.0
    %2690 = vmatpush.msra.mxu0 0.0
    %2691 = vmatpush.msra.mxu0 0.0
    %2692 = vmatpush.msra.mxu0 0.0
    %2693 = vmatpush.msra.mxu0 0.0
    %2694 = vmatpush.msra.mxu0 0.0
    %2695 = vmatpush.msra.mxu0 0.0
    %2696 = vmatpush.msra.mxu0 0.0
    %2697 = vmatpush.msra.mxu0 0.0
    %2698 = vmatpush.msra.mxu0 0.0
    %2699 = vmatpush.msra.mxu0 0.0
    %2700 = vmatpush.msra.mxu0 0.0
    %2701 = vmatpush.msra.mxu0 0.0
    %2702 = vmatpush.msra.mxu0 0.0
    %v2703 = vand.u32 %v1852, 4294901760
    %v2704 = vsub.f32 %v1852, %v2703
    %v2705 = vand.u32 %v2704, 4294901760
    %2706 = vmatpush.msra.mxu0 %v2705
    %v2707 = vand.u32 %v1840, 4294901760
    %2708 = vmatmul.f32.gmra.mxu0 %v2707
    %v2709 = vpop.f32.mrf.mxu0
    %v2710 = vadd.f32 %v2686, %v2709
    %2711 = vdwg.mxu0
    %2712 = vmatpush.msra.mxu0 0.0
    %2713 = vmatpush.msra.mxu0 0.0
    %2714 = vmatpush.msra.mxu0 0.0
    %2715 = vmatpush.msra.mxu0 0.0
    %2716 = vmatpush.msra.mxu0 0.0
    %2717 = vmatpush.msra.mxu0 0.0
    %2718 = vmatpush.msra.mxu0 0.0
    %2719 = vmatpush.msra.mxu0 0.0
    %2720 = vmatpush.msra.mxu0 0.0
    %2721 = vmatpush.msra.mxu0 0.0
    %2722 = vmatpush.msra.mxu0 0.0
    %2723 = vmatpush.msra.mxu0 0.0
    %2724 = vmatpush.msra.mxu0 0.0
    %2725 = vmatpush.msra.mxu0 0.0
    %2726 = vmatpush.msra.mxu0 0.0
    %v2727 = vand.u32 %v1852, 4294901760
    %2728 = vmatpush.msra.mxu0 %v2727
    %v2729 = vand.u32 %v1840, 4294901760
    %2730 = vmatmul.f32.gmra.mxu0 %v2729
    %v2731 = vpop.f32.mrf.mxu0
    %v2732 = vadd.f32 %v2710, %v2731
    %2733 = vdwg.mxu0
    %2734 = vmatpush.msra.mxu0 0.0
    %2735 = vmatpush.msra.mxu0 0.0
    %2736 = vmatpush.msra.mxu0 0.0
    %2737 = vmatpush.msra.mxu0 0.0
    %2738 = vmatpush.msra.mxu0 0.0
    %2739 = vmatpush.msra.mxu0 0.0
    %2740 = vmatpush.msra.mxu0 0.0
    %2741 = vmatpush.msra.mxu0 0.0
    %2742 = vmatpush.msra.mxu0 0.0
    %2743 = vmatpush.msra.mxu0 0.0
    %2744 = vmatpush.msra.mxu0 0.0
    %2745 = vmatpush.msra.mxu0 0.0
    %2746 = vmatpush.msra.mxu0 0.0
    %2747 = vmatpush.msra.mxu0 0.0
    %2748 = vmatpush.msra.mxu0 0.0
    %v2749 = vand.u32 %v1854, 4294901760
    %2750 = vmatpush.msra.mxu0 %v2749
    %v2751 = vand.u32 %v1840, 4294901760
    %v2752 = vsub.f32 %v1840, %v2751
    %v2753 = vand.u32 %v2752, 4294901760
    %v2754 = vsub.f32 %v2752, %v2753
    %v2755 = vand.u32 %v2754, 4294901760
    %2756 = vmatmul.f32.gmra.mxu0 %v2755
    %v2757 = vpop.f32.mrf.mxu0
    %v2758 = vadd.f32 0.0, %v2757
    %2759 = vdwg.mxu0
    %2760 = vmatpush.msra.mxu0 0.0
    %2761 = vmatpush.msra.mxu0 0.0
    %2762 = vmatpush.msra.mxu0 0.0
    %2763 = vmatpush.msra.mxu0 0.0
    %2764 = vmatpush.msra.mxu0 0.0
    %2765 = vmatpush.msra.mxu0 0.0
    %2766 = vmatpush.msra.mxu0 0.0
    %2767 = vmatpush.msra.mxu0 0.0
    %2768 = vmatpush.msra.mxu0 0.0
    %2769 = vmatpush.msra.mxu0 0.0
    %2770 = vmatpush.msra.mxu0 0.0
    %2771 = vmatpush.msra.mxu0 0.0
    %2772 = vmatpush.msra.mxu0 0.0
    %2773 = vmatpush.msra.mxu0 0.0
    %2774 = vmatpush.msra.mxu0 0.0
    %v2775 = vand.u32 %v1854, 4294901760
    %v2776 = vsub.f32 %v1854, %v2775
    %v2777 = vand.u32 %v2776, 4294901760
    %v2778 = vsub.f32 %v2776, %v2777
    %v2779 = vand.u32 %v2778, 4294901760
    %2780 = vmatpush.msra.mxu0 %v2779
    %v2781 = vand.u32 %v1840, 4294901760
    %2782 = vmatmul.f32.gmra.mxu0 %v2781
    %v2783 = vpop.f32.mrf.mxu0
    %v2784 = vadd.f32 %v2758, %v2783
    %2785 = vdwg.mxu0
    %2786 = vmatpush.msra.mxu0 0.0
    %2787 = vmatpush.msra.mxu0 0.0
    %2788 = vmatpush.msra.mxu0 0.0
    %2789 = vmatpush.msra.mxu0 0.0
    %2790 = vmatpush.msra.mxu0 0.0
    %2791 = vmatpush.msra.mxu0 0.0
    %2792 = vmatpush.msra.mxu0 0.0
    %2793 = vmatpush.msra.mxu0 0.0
    %2794 = vmatpush.msra.mxu0 0.0
    %2795 = vmatpush.msra.mxu0 0.0
    %2796 = vmatpush.msra.mxu0 0.0
    %2797 = vmatpush.msra.mxu0 0.0
    %2798 = vmatpush.msra.mxu0 0.0
    %2799 = vmatpush.msra.mxu0 0.0
    %2800 = vmatpush.msra.mxu0 0.0
    %v2801 = vand.u32 %v1854, 4294901760
    %v2802 = vsub.f32 %v1854, %v2801
    %2803 = vmatpush.msra.mxu0 %v2802
    %v2804 = vand.u32 %v1840, 4294901760
    %v2805 = vsub.f32 %v1840, %v2804
    %2806 = vmatmul.f32.gmra.mxu0 %v2805
    %v2807 = vpop.f32.mrf.mxu0
    %v2808 = vadd.f32 %v2784, %v2807
    %2809 = vdwg.mxu0
    %2810 = vmatpush.msra.mxu0 0.0
    %2811 = vmatpush.msra.mxu0 0.0
    %2812 = vmatpush.msra.mxu0 0.0
    %2813 = vmatpush.msra.mxu0 0.0
    %2814 = vmatpush.msra.mxu0 0.0
    %2815 = vmatpush.msra.mxu0 0.0
    %2816 = vmatpush.msra.mxu0 0.0
    %2817 = vmatpush.msra.mxu0 0.0
    %2818 = vmatpush.msra.mxu0 0.0
    %2819 = vmatpush.msra.mxu0 0.0
    %2820 = vmatpush.msra.mxu0 0.0
    %2821 = vmatpush.msra.mxu0 0.0
    %2822 = vmatpush.msra.mxu0 0.0
    %2823 = vmatpush.msra.mxu0 0.0
    %2824 = vmatpush.msra.mxu0 0.0
    %v2825 = vand.u32 %v1854, 4294901760
    %2826 = vmatpush.msra.mxu0 %v2825
    %v2827 = vand.u32 %v1840, 4294901760
    %v2828 = vsub.f32 %v1840, %v2827
    %v2829 = vand.u32 %v2828, 4294901760
    %2830 = vmatmul.f32.gmra.mxu0 %v2829
    %v2831 = vpop.f32.mrf.mxu0
    %v2832 = vadd.f32 %v2808, %v2831
    %2833 = vdwg.mxu0
    %2834 = vmatpush.msra.mxu0 0.0
    %2835 = vmatpush.msra.mxu0 0.0
    %2836 = vmatpush.msra.mxu0 0.0
    %2837 = vmatpush.msra.mxu0 0.0
    %2838 = vmatpush.msra.mxu0 0.0
    %2839 = vmatpush.msra.mxu0 0.0
    %2840 = vmatpush.msra.mxu0 0.0
    %2841 = vmatpush.msra.mxu0 0.0
    %2842 = vmatpush.msra.mxu0 0.0
    %2843 = vmatpush.msra.mxu0 0.0
    %2844 = vmatpush.msra.mxu0 0.0
    %2845 = vmatpush.msra.mxu0 0.0
    %2846 = vmatpush.msra.mxu0 0.0
    %2847 = vmatpush.msra.mxu0 0.0
    %2848 = vmatpush.msra.mxu0 0.0
    %v2849 = vand.u32 %v1854, 4294901760
    %v2850 = vsub.f32 %v1854, %v2849
    %v2851 = vand.u32 %v2850, 4294901760
    %2852 = vmatpush.msra.mxu0 %v2851
    %v2853 = vand.u32 %v1840, 4294901760
    %2854 = vmatmul.f32.gmra.mxu0 %v2853
    %v2855 = vpop.f32.mrf.mxu0
    %v2856 = vadd.f32 %v2832, %v2855
    %2857 = vdwg.mxu0
    %2858 = vmatpush.msra.mxu0 0.0
    %2859 = vmatpush.msra.mxu0 0.0
    %2860 = vmatpush.msra.mxu0 0.0
    %2861 = vmatpush.msra.mxu0 0.0
    %2862 = vmatpush.msra.mxu0 0.0
    %2863 = vmatpush.msra.mxu0 0.0
    %2864 = vmatpush.msra.mxu0 0.0
    %2865 = vmatpush.msra.mxu0 0.0
    %2866 = vmatpush.msra.mxu0 0.0
    %2867 = vmatpush.msra.mxu0 0.0
    %2868 = vmatpush.msra.mxu0 0.0
    %2869 = vmatpush.msra.mxu0 0.0
    %2870 = vmatpush.msra.mxu0 0.0
    %2871 = vmatpush.msra.mxu0 0.0
    %2872 = vmatpush.msra.mxu0 0.0
    %v2873 = vand.u32 %v1854, 4294901760
    %2874 = vmatpush.msra.mxu0 %v2873
    %v2875 = vand.u32 %v1840, 4294901760
    %2876 = vmatmul.f32.gmra.mxu0 %v2875
    %v2877 = vpop.f32.mrf.mxu0
    %v2878 = vadd.f32 %v2856, %v2877
    %2879 = vdwg.mxu0
    %2880 = vmatpush.msra.mxu0 0.0
    %2881 = vmatpush.msra.mxu0 0.0
    %2882 = vmatpush.msra.mxu0 0.0
    %2883 = vmatpush.msra.mxu0 0.0
    %2884 = vmatpush.msra.mxu0 0.0
    %2885 = vmatpush.msra.mxu0 0.0
    %2886 = vmatpush.msra.mxu0 0.0
    %2887 = vmatpush.msra.mxu0 0.0
    %2888 = vmatpush.msra.mxu0 0.0
    %2889 = vmatpush.msra.mxu0 0.0
    %2890 = vmatpush.msra.mxu0 0.0
    %2891 = vmatpush.msra.mxu0 0.0
    %2892 = vmatpush.msra.mxu0 0.0
    %2893 = vmatpush.msra.mxu0 0.0
    %2894 = vmatpush.msra.mxu0 0.0
    %v2895 = vand.u32 %v1856, 4294901760
    %2896 = vmatpush.msra.mxu0 %v2895
    %v2897 = vand.u32 %v1840, 4294901760
    %v2898 = vsub.f32 %v1840, %v2897
    %v2899 = vand.u32 %v2898, 4294901760
    %v2900 = vsub.f32 %v2898, %v2899
    %v2901 = vand.u32 %v2900, 4294901760
    %2902 = vmatmul.f32.gmra.mxu0 %v2901
    %v2903 = vpop.f32.mrf.mxu0
    %v2904 = vadd.f32 0.0, %v2903
    %2905 = vdwg.mxu0
    %2906 = vmatpush.msra.mxu0 0.0
    %2907 = vmatpush.msra.mxu0 0.0
    %2908 = vmatpush.msra.mxu0 0.0
    %2909 = vmatpush.msra.mxu0 0.0
    %2910 = vmatpush.msra.mxu0 0.0
    %2911 = vmatpush.msra.mxu0 0.0
    %2912 = vmatpush.msra.mxu0 0.0
    %2913 = vmatpush.msra.mxu0 0.0
    %2914 = vmatpush.msra.mxu0 0.0
    %2915 = vmatpush.msra.mxu0 0.0
    %2916 = vmatpush.msra.mxu0 0.0
    %2917 = vmatpush.msra.mxu0 0.0
    %2918 = vmatpush.msra.mxu0 0.0
    %2919 = vmatpush.msra.mxu0 0.0
    %2920 = vmatpush.msra.mxu0 0.0
    %v2921 = vand.u32 %v1856, 4294901760
    %v2922 = vsub.f32 %v1856, %v2921
    %v2923 = vand.u32 %v2922, 4294901760
    %v2924 = vsub.f32 %v2922, %v2923
    %v2925 = vand.u32 %v2924, 4294901760
    %2926 = vmatpush.msra.mxu0 %v2925
    %v2927 = vand.u32 %v1840, 4294901760
    %2928 = vmatmul.f32.gmra.mxu0 %v2927
    %v2929 = vpop.f32.mrf.mxu0
    %v2930 = vadd.f32 %v2904, %v2929
    %2931 = vdwg.mxu0
    %2932 = vmatpush.msra.mxu0 0.0
    %2933 = vmatpush.msra.mxu0 0.0
    %2934 = vmatpush.msra.mxu0 0.0
    %2935 = vmatpush.msra.mxu0 0.0
    %2936 = vmatpush.msra.mxu0 0.0
    %2937 = vmatpush.msra.mxu0 0.0
    %2938 = vmatpush.msra.mxu0 0.0
    %2939 = vmatpush.msra.mxu0 0.0
    %2940 = vmatpush.msra.mxu0 0.0
    %2941 = vmatpush.msra.mxu0 0.0
    %2942 = vmatpush.msra.mxu0 0.0
    %2943 = vmatpush.msra.mxu0 0.0
    %2944 = vmatpush.msra.mxu0 0.0
    %2945 = vmatpush.msra.mxu0 0.0
    %2946 = vmatpush.msra.mxu0 0.0
    %v2947 = vand.u32 %v1856, 4294901760
    %v2948 = vsub.f32 %v1856, %v2947
    %2949 = vmatpush.msra.mxu0 %v2948
    %v2950 = vand.u32 %v1840, 4294901760
    %v2951 = vsub.f32 %v1840, %v2950
    %2952 = vmatmul.f32.gmra.mxu0 %v2951
    %v2953 = vpop.f32.mrf.mxu0
    %v2954 = vadd.f32 %v2930, %v2953
    %2955 = vdwg.mxu0
    %2956 = vmatpush.msra.mxu0 0.0
    %2957 = vmatpush.msra.mxu0 0.0
    %2958 = vmatpush.msra.mxu0 0.0
    %2959 = vmatpush.msra.mxu0 0.0
    %2960 = vmatpush.msra.mxu0 0.0
    %2961 = vmatpush.msra.mxu0 0.0
    %2962 = vmatpush.msra.mxu0 0.0
    %2963 = vmatpush.msra.mxu0 0.0
    %2964 = vmatpush.msra.mxu0 0.0
    %2965 = vmatpush.msra.mxu0 0.0
    %2966 = vmatpush.msra.mxu0 0.0
    %2967 = vmatpush.msra.mxu0 0.0
    %2968 = vmatpush.msra.mxu0 0.0
    %2969 = vmatpush.msra.mxu0 0.0
    %2970 = vmatpush.msra.mxu0 0.0
    %v2971 = vand.u32 %v1856, 4294901760
    %2972 = vmatpush.msra.mxu0 %v2971
    %v2973 = vand.u32 %v1840, 4294901760
    %v2974 = vsub.f32 %v1840, %v2973
    %v2975 = vand.u32 %v2974, 4294901760
    %2976 = vmatmul.f32.gmra.mxu0 %v2975
    %v2977 = vpop.f32.mrf.mxu0
    %v2978 = vadd.f32 %v2954, %v2977
    %2979 = vdwg.mxu0
    %2980 = vmatpush.msra.mxu0 0.0
    %2981 = vmatpush.msra.mxu0 0.0
    %2982 = vmatpush.msra.mxu0 0.0
    %2983 = vmatpush.msra.mxu0 0.0
    %2984 = vmatpush.msra.mxu0 0.0
    %2985 = vmatpush.msra.mxu0 0.0
    %2986 = vmatpush.msra.mxu0 0.0
    %2987 = vmatpush.msra.mxu0 0.0
    %2988 = vmatpush.msra.mxu0 0.0
    %2989 = vmatpush.msra.mxu0 0.0
    %2990 = vmatpush.msra.mxu0 0.0
    %2991 = vmatpush.msra.mxu0 0.0
    %2992 = vmatpush.msra.mxu0 0.0
    %2993 = vmatpush.msra.mxu0 0.0
    %2994 = vmatpush.msra.mxu0 0.0
    %v2995 = vand.u32 %v1856, 4294901760
    %v2996 = vsub.f32 %v1856, %v2995
    %v2997 = vand.u32 %v2996, 4294901760
    %2998 = vmatpush.msra.mxu0 %v2997
    %v2999 = vand.u32 %v1840, 4294901760
    %3000 = vmatmul.f32.gmra.mxu0 %v2999
    %v3001 = vpop.f32.mrf.mxu0
    %v3002 = vadd.f32 %v2978, %v3001
    %3003 = vdwg.mxu0
    %3004 = vmatpush.msra.mxu0 0.0
    %3005 = vmatpush.msra.mxu0 0.0
    %3006 = vmatpush.msra.mxu0 0.0
    %3007 = vmatpush.msra.mxu0 0.0
    %3008 = vmatpush.msra.mxu0 0.0
    %3009 = vmatpush.msra.mxu0 0.0
    %3010 = vmatpush.msra.mxu0 0.0
    %3011 = vmatpush.msra.mxu0 0.0
    %3012 = vmatpush.msra.mxu0 0.0
    %3013 = vmatpush.msra.mxu0 0.0
    %3014 = vmatpush.msra.mxu0 0.0
    %3015 = vmatpush.msra.mxu0 0.0
    %3016 = vmatpush.msra.mxu0 0.0
    %3017 = vmatpush.msra.mxu0 0.0
    %3018 = vmatpush.msra.mxu0 0.0
    %v3019 = vand.u32 %v1856, 4294901760
    %3020 = vmatpush.msra.mxu0 %v3019
    %v3021 = vand.u32 %v1840, 4294901760
    %3022 = vmatmul.f32.gmra.mxu0 %v3021
    %v3023 = vpop.f32.mrf.mxu0
    %v3024 = vadd.f32 %v3002, %v3023
    %3025 = vdwg.mxu0
    %v3026 = vsub.f32 %v2002, %v1780
    %v3027 = vsub.f32 %v2148, %v1781
    %v3028 = vsub.f32 %v2294, %v1782
    %v3029 = vsub.f32 %v2440, %v1783
    %v3030 = vsub.f32 %v2586, %v1784
    %v3031 = vsub.f32 %v2732, %v1785
    %v3032 = vsub.f32 %v2878, %v1786
    %v3033 = vsub.f32 %v3024, %v1787
    %v3034 = vlaneseq
    %v3035 = vshrl.u32 %v3034, 7
    %vm3036 = vcmp.eq.s32.totalorder %v3035, 2
    %v3037 = vsel %vm3036, 2.0, %v2002
    %v3038 = vsel %vm3036, 2.0, %v2148
    %v3039 = vsel %vm3036, 2.0, %v2294
    %v3040 = vsel %vm3036, 2.0, %v2440
    %v3041 = vsel %vm3036, 2.0, %v2586
    %v3042 = vsel %vm3036, 2.0, %v2732
    %v3043 = vsel %vm3036, 2.0, %v2878
    %v3044 = vsel %vm3036, 2.0, %v3024
    %v3046 = vperm.slane %v1836, 0
    %v3047 = vperm.slane %v1836, 1
    %v3048 = vperm.slane %v1836, 2
    %v3049 = vperm.slane %v1836, 3
    %v3050 = vperm.slane %v1836, 4
    %v3051 = vperm.slane %v1836, 5
    %v3052 = vperm.slane %v1836, 6
    %v3053 = vperm.slane %v1836, 7
    %vm3062 = vcmp.ge.f32.partialorder %v3046, %v3026
    %vm3063 = vcmp.ge.f32.partialorder %v3047, %v3027
    %vm3064 = vcmp.ge.f32.partialorder %v3048, %v3028
    %vm3065 = vcmp.ge.f32.partialorder %v3049, %v3029
    %vm3066 = vcmp.ge.f32.partialorder %v3050, %v3030
    %vm3067 = vcmp.ge.f32.partialorder %v3051, %v3031
    %vm3068 = vcmp.ge.f32.partialorder %v3052, %v3032
    %vm3069 = vcmp.ge.f32.partialorder %v3053, %v3033
    %vm3070 = vcmp.lt.f32.partialorder %v3046, %v3037
    %vm3071 = vcmp.lt.f32.partialorder %v3047, %v3038
    %vm3072 = vcmp.lt.f32.partialorder %v3048, %v3039
    %vm3073 = vcmp.lt.f32.partialorder %v3049, %v3040
    %vm3074 = vcmp.lt.f32.partialorder %v3050, %v3041
    %vm3075 = vcmp.lt.f32.partialorder %v3051, %v3042
    %vm3076 = vcmp.lt.f32.partialorder %v3052, %v3043
    %vm3077 = vcmp.lt.f32.partialorder %v3053, %v3044
    %vm3078 = vmand %vm3062, %vm3070
    %vm3079 = vmand %vm3063, %vm3071
    %vm3080 = vmand %vm3064, %vm3072
    %vm3081 = vmand %vm3065, %vm3073
    %vm3082 = vmand %vm3066, %vm3074
    %vm3083 = vmand %vm3067, %vm3075
    %vm3084 = vmand %vm3068, %vm3076
    %vm3085 = vmand %vm3069, %vm3077
    %v3086 = vsel %vm3078, 1, 0
    %v3087 = vsel %vm3079, 1, 0
    %v3088 = vsel %vm3080, 1, 0
    %v3089 = vsel %vm3081, 1, 0
    %v3090 = vsel %vm3082, 1, 0
    %v3091 = vsel %vm3083, 1, 0
    %v3092 = vsel %vm3084, 1, 0
    %v3093 = vsel %vm3085, 1, 0
    %v3094 = vcvt.s32.f32 %v3086
    %v3095 = vcvt.s32.f32 %v3087
    %v3096 = vcvt.s32.f32 %v3088
    %v3097 = vcvt.s32.f32 %v3089
    %v3098 = vcvt.s32.f32 %v3090
    %v3099 = vcvt.s32.f32 %v3091
    %v3100 = vcvt.s32.f32 %v3092
    %v3101 = vcvt.s32.f32 %v3093
    %v3102 = vmul.f32 %v1780, %v299
    %v3103 = vmul.f32 %v1781, %v484
    %v3104 = vmul.f32 %v1782, %v669
    %v3105 = vmul.f32 %v1783, %v854
    %v3106 = vmul.f32 %v1784, %v1039
    %v3107 = vmul.f32 %v1785, %v1224
    %v3108 = vmul.f32 %v1786, %v1409
    %v3109 = vmul.f32 %v1787, %v1594
    %s3110 = smul.u32 0, 1024
    %v3111 = vlaneseq
    %v3112 = vand.u32 %v3111, 127
    %v3113 = vadd.s32 %v3112, 128
    %v3114 = vadd.s32 %v3112, 256
    %v3115 = vadd.s32 %v3112, 384
    %v3116 = vadd.s32 %v3112, 512
    %v3117 = vadd.s32 %v3112, 640
    %v3118 = vadd.s32 %v3112, 768
    %v3119 = vadd.s32 %v3112, 896
    %v3120 = vstv %s3110
    %v3121 = vadd.s32 %v3120, %v3112
    %v3122 = vadd.s32 %v3120, %v3113
    %v3123 = vadd.s32 %v3120, %v3114
    %v3124 = vadd.s32 %v3120, %v3115
    %v3125 = vadd.s32 %v3120, %v3116
    %v3126 = vadd.s32 %v3120, %v3117
    %v3127 = vadd.s32 %v3120, %v3118
    %v3128 = vadd.s32 %v3120, %v3119
    %vm3129 = vcmp.lt.s32.totalorder %v3121, 1000
    %vm3130 = vcmp.lt.s32.totalorder %v3122, 1000
    %vm3131 = vcmp.lt.s32.totalorder %v3123, 1000
    %vm3132 = vcmp.lt.s32.totalorder %v3124, 1000
    %vm3133 = vcmp.lt.s32.totalorder %v3125, 1000
    %vm3134 = vcmp.lt.s32.totalorder %v3126, 1000
    %vm3135 = vcmp.lt.s32.totalorder %v3127, 1000
    %vm3136 = vcmp.lt.s32.totalorder %v3128, 1000
    %v3137 = vsel %vm3129, 1, 0
    %v3138 = vsel %vm3130, 1, 0
    %v3139 = vsel %vm3131, 1, 0
    %v3140 = vsel %vm3132, 1, 0
    %v3141 = vsel %vm3133, 1, 0
    %v3142 = vsel %vm3134, 1, 0
    %v3143 = vsel %vm3135, 1, 0
    %v3144 = vsel %vm3136, 1, 0
    %v3145 = vcvt.s32.f32 %v3137
    %v3146 = vcvt.s32.f32 %v3138
    %v3147 = vcvt.s32.f32 %v3139
    %v3148 = vcvt.s32.f32 %v3140
    %v3149 = vcvt.s32.f32 %v3141
    %v3150 = vcvt.s32.f32 %v3142
    %v3151 = vcvt.s32.f32 %v3143
    %v3152 = vcvt.s32.f32 %v3144
    %v3153 = vmul.f32 %v3094, %v3145
    %v3154 = vmul.f32 %v3095, %v3146
    %v3155 = vmul.f32 %v3096, %v3147
    %v3156 = vmul.f32 %v3097, %v3148
    %v3157 = vmul.f32 %v3098, %v3149
    %v3158 = vmul.f32 %v3099, %v3150
    %v3159 = vmul.f32 %v3100, %v3151
    %v3160 = vmul.f32 %v3101, %v3152
    %v3161 = vmul.f32 %v3102, %v3145
    %v3162 = vmul.f32 %v3103, %v3146
    %v3163 = vmul.f32 %v3104, %v3147
    %v3164 = vmul.f32 %v3105, %v3148
    %v3165 = vmul.f32 %v3106, %v3149
    %v3166 = vmul.f32 %v3107, %v3150
    %v3167 = vmul.f32 %v3108, %v3151
    %v3168 = vmul.f32 %v3109, %v3152
    %v3169 = vsel %vm1635, %v3161, 0.0
    %v3170 = vsel %vm1635, %v3162, 0.0
    %v3171 = vadd.f32 %v3169, %v3170
    %v3172 = vsel %vm1635, %v3163, 0.0
    %v3173 = vadd.f32 %v3171, %v3172
    %v3174 = vsel %vm1635, %v3164, 0.0
    %v3175 = vadd.f32 %v3173, %v3174
    %v3176 = vsel %vm1635, %v3165, 0.0
    %v3177 = vadd.f32 %v3175, %v3176
    %v3178 = vsel %vm1635, %v3166, 0.0
    %v3179 = vadd.f32 %v3177, %v3178
    %v3180 = vsel %vm1635, %v3167, 0.0
    %v3181 = vadd.f32 %v3179, %v3180
    %v3182 = vsel %vm1635, %v3168, 0.0
    %v3183 = vadd.f32 %v3181, %v3182
    %3184 = vadd.xlane.f32.xlu0 %v3183
    %v3185 = vpop.xlane.xlu0 %3184
    %vm3186 = vcmask 2048
    %3187 = vst.msk [vmem:[%s8] sm:$0x7] %vm3186, %v3185
    %v3188 = vmul.f32 %v3153, %v299
    %v3189 = vmul.f32 %v3154, %v484
    %v3190 = vmul.f32 %v3155, %v669
    %v3191 = vmul.f32 %v3156, %v854
    %v3192 = vmul.f32 %v3157, %v1039
    %v3193 = vmul.f32 %v3158, %v1224
    %v3194 = vmul.f32 %v3159, %v1409
    %v3195 = vmul.f32 %v3160, %v1594
    %v3196 = vsel %vm1635, %v3188, 0.0
    %v3197 = vsel %vm1635, %v3189, 0.0
    %v3198 = vadd.f32 %v3196, %v3197
    %v3199 = vsel %vm1635, %v3190, 0.0
    %v3200 = vadd.f32 %v3198, %v3199
    %v3201 = vsel %vm1635, %v3191, 0.0
    %v3202 = vadd.f32 %v3200, %v3201
    %v3203 = vsel %vm1635, %v3192, 0.0
    %v3204 = vadd.f32 %v3202, %v3203
    %v3205 = vsel %vm1635, %v3193, 0.0
    %v3206 = vadd.f32 %v3204, %v3205
    %v3207 = vsel %vm1635, %v3194, 0.0
    %v3208 = vadd.f32 %v3206, %v3207
    %v3209 = vsel %vm1635, %v3195, 0.0
    %v3210 = vadd.f32 %v3208, %v3209
    %3211 = vadd.xlane.f32.xlu0 %v3210
    %v3212 = vpop.xlane.xlu0 %3211
    %3213 = vst.msk [vmem:[%s9] sm:$0x7] %vm3186, %v3212
    %v3214 = vmul.f32 %v3153, %v1828
    %v3215 = vmul.f32 %v3154, %v1829
    %v3216 = vmul.f32 %v3155, %v1830
    %v3217 = vmul.f32 %v3156, %v1831
    %v3218 = vmul.f32 %v3157, %v1832
    %v3219 = vmul.f32 %v3158, %v1833
    %v3220 = vmul.f32 %v3159, %v1834
    %v3221 = vmul.f32 %v3160, %v1835
    %v3222 = vsel %vm1635, %v3214, 0.0
    %v3223 = vsel %vm1635, %v3215, 0.0
    %v3224 = vadd.f32 %v3222, %v3223
    %v3225 = vsel %vm1635, %v3216, 0.0
    %v3226 = vadd.f32 %v3224, %v3225
    %v3227 = vsel %vm1635, %v3217, 0.0
    %v3228 = vadd.f32 %v3226, %v3227
    %v3229 = vsel %vm1635, %v3218, 0.0
    %v3230 = vadd.f32 %v3228, %v3229
    %v3231 = vsel %vm1635, %v3219, 0.0
    %v3232 = vadd.f32 %v3230, %v3231
    %v3233 = vsel %vm1635, %v3220, 0.0
    %v3234 = vadd.f32 %v3232, %v3233
    %v3235 = vsel %vm1635, %v3221, 0.0
    %v3236 = vadd.f32 %v3234, %v3235
    %3237 = vadd.xlane.f32.xlu0 %v3236
    %v3238 = vpop.xlane.xlu0 %3237
    %3239 = vst.msk [vmem:[%s10] sm:$0x7] %vm3186, %v3238
    // Predicated region
    $region38: #{tpu_custom_call.1} parent=1 // pred_check
      _
    $region39: #{tpu_custom_call.1} parent=1 // pred_check_branch
      %3241 = sbr.rel (0) target = $region41
    $region40: #{tpu_custom_call.1} parent=1 // pred_region
      %3243 = vsyncadd [#allocation4], 0
      %s3245 = sshll.u32 [#allocation8], 4
      %s3246 = int_to_ptr.vmem [resolvable:$true] %s3245
      %s3247 = sshll.u32 %s6, 4
      %s3248 = int_to_ptr.hbm [resolvable:$true] %s3247
      %3250 = dma.vmem_to_hbm [thread:$0]  %s3246, 512, %s3248, [#allocation4]
    $region41: #{tpu_custom_call.1} parent=1 // pred_fallthru
      _
    // Predicated region
    $region42: #{tpu_custom_call.1} parent=1 // pred_check
      _
    $region43: #{tpu_custom_call.1} parent=1 // pred_check_branch
      %3252 = sbr.rel (0) target = $region45
    $region44: #{tpu_custom_call.1} parent=1 // pred_region
      %3254 = vsyncadd [#allocation10], 0
      %s3256 = sshll.u32 [#allocation9], 4
      %s3257 = int_to_ptr.vmem [resolvable:$true] %s3256
      %s3258 = sshll.u32 %s7, 4
      %s3259 = int_to_ptr.hbm [resolvable:$true] %s3258
      %3261 = dma.vmem_to_hbm [thread:$0]  %s3257, 512, %s3259, [#allocation10]
    $region45: #{tpu_custom_call.1} parent=1 // pred_fallthru
      _
    // Predicated region
    $region46: #{tpu_custom_call.1} parent=1 // pred_check
      _
    $region47: #{tpu_custom_call.1} parent=1 // pred_check_branch
      %3263 = sbr.rel (0) target = $region49
    $region48: #{tpu_custom_call.1} parent=1 // pred_region
      _
    $region49: #{tpu_custom_call.1} parent=1 // pred_fallthru
      _
    // Predicated region
    $region50: #{tpu_custom_call.1} parent=1 // pred_check
      _
    $region51: #{tpu_custom_call.1} parent=1 // pred_check_branch
      %3265 = sbr.rel (0) target = $region53
    $region52: #{tpu_custom_call.1} parent=1 // pred_region
      _
    $region53: #{tpu_custom_call.1} parent=1 // pred_fallthru
      _
    // Predicated region
    $region54: #{tpu_custom_call.1} parent=1 // pred_check
      _
    $region55: #{tpu_custom_call.1} parent=1 // pred_check_branch
      %3267 = sbr.rel (0) target = $region57
    $region56: #{tpu_custom_call.1} parent=1 // pred_region
      _
    $region57: #{tpu_custom_call.1} parent=1 // pred_fallthru
      _
    // Predicated region
    $region58: #{tpu_custom_call.1} parent=1 // pred_check
      _
    $region59: #{tpu_custom_call.1} parent=1 // pred_check_branch
      %3269 = sbr.rel (0) target = $region61
    $region60: #{tpu_custom_call.1} parent=1 // pred_region
      %3271 = dma.done [#allocation4], 512
    $region61: #{tpu_custom_call.1} parent=1 // pred_fallthru
      _
    // Predicated region
    $region62: #{tpu_custom_call.1} parent=1 // pred_check
      _
    $region63: #{tpu_custom_call.1} parent=1 // pred_check_branch
      %3273 = sbr.rel (0) target = $region65
    $region64: #{tpu_custom_call.1} parent=1 // pred_region
      %3275 = dma.done [#allocation10], 512
    $region65: #{tpu_custom_call.1} parent=1 // pred_fallthru
      _
    // Predicated region
    $region66: #{tpu_custom_call.1} parent=1 // pred_check
      _
    $region67: #{tpu_custom_call.1} parent=1 // pred_check_branch
      %3277 = sbr.rel (0) target = $region69
    $region68: #{tpu_custom_call.1} parent=1 // pred_region
      _
    $region69: #{tpu_custom_call.1} parent=1 // pred_fallthru
      _
    // Predicated region
    $region70: #{tpu_custom_call.1} parent=1 // pred_check
      _
    $region71: #{tpu_custom_call.1} parent=1 // pred_check_branch
      %3279 = sbr.rel (0) target = $region73
    $region72: #{tpu_custom_call.1} parent=1 // pred_region
      _
    $region73: #{tpu_custom_call.1} parent=1 // pred_fallthru
      _
    // Predicated region
    $region74: #{tpu_custom_call.1} parent=1 // pred_check
      _
    $region75: #{tpu_custom_call.1} parent=1 // pred_check_branch
      %3281 = sbr.rel (0) target = $region77
    $region76: #{tpu_custom_call.1} parent=1 // pred_region
      _
    $region77: #{tpu_custom_call.1} parent=1 // pred_fallthru
      _
    %3282 = vsyncpa [#allocation3], 1
    %3283 = vsyncpa [#allocation6], 1
    %3284 = vsyncpa [#allocation4], 1
    %3285 = vsyncpa [#allocation10], 1

</llo_original>
